<compile_context>
chip_gen: v5e
topology: v5e:2x2
jax: 0.10.0
libtpu: 0.0.40
codegen_flags: <defaults>
</compile_context>

<pallas_src>
import numpy as np
import jax
import jax.numpy as jnp
from jax import lax
from jax.experimental import pallas as pl
from jax.experimental.pallas import tpu as pltpu

VMEM_LIMIT = 48 * 1024 * 1024  # above default scoped limit on v5e/v6e, < v7x physical


# --------------------------- Haar (db1) filters ------------------------------
def make_db1_filters():
    """Replicates wavelet.create_wavelet_filter('db1', ...) (Haar), no pywt needed."""
    s = np.float32(1.0 / np.sqrt(2.0))
    dec_lo = np.array([s, s], np.float32)
    dec_hi = np.array([s, -s], np.float32)
    rec_lo = np.array([s, s], np.float32)
    rec_hi = np.array([s, -s], np.float32)
    dec = np.stack([np.outer(dec_lo, dec_lo),
                    np.outer(dec_hi, dec_lo),
                    np.outer(dec_lo, dec_hi),
                    np.outer(dec_hi, dec_hi)], axis=0)   # (4, 2, 2): LL, LH, HL, HH
    rec = np.stack([np.outer(rec_lo, rec_lo),
                    np.outer(rec_hi, rec_lo),
                    np.outer(rec_lo, rec_hi),
                    np.outer(rec_hi, rec_hi)], axis=0)   # (4, 2, 2)
    return dec, rec


# ----------------------- base depthwise conv (NHWC) ---------------------------
def _make_base_conv_kernel(K, C):
    p = K // 2

    def kernel(x_ref, w_ref, s_ref, b_ref, out_ref, pad_ref):
        # x_ref/out_ref: (1, H, W, C); w_ref: (K*K, C); s_ref/b_ref: (1, C)
        # pad_ref: (H+2p, W+2p, C) f32 scratch (zero halo for 'same' padding)
        H, W = out_ref.shape[1], out_ref.shape[2]
        pad_ref[...] = jnp.zeros_like(pad_ref)
        pad_ref[p:p + H, p:p + W, :] = x_ref[0].astype(jnp.float32)
        w = w_ref[...].astype(jnp.float32)            # (K*K, C)
        scale = s_ref[0:1, :].astype(jnp.float32)     # (1, C)
        bias = b_ref[0:1, :].astype(jnp.float32)      # (1, C)
        acc = jnp.zeros((H, W, C), jnp.float32)
        for dh in range(K):
            for dw in range(K):
                acc = acc + pad_ref[dh:dh + H, dw:dw + W, :] * w[dh * K + dw:dh * K + dw + 1, :]
        out_ref[...] = (scale * (acc + bias)).astype(out_ref.dtype)[None]

    return kernel


def base_depthwise_conv(x_nhwc, w_kk_c, scale_c, bias_c, K):
    """y = scale * (depthwise_conv_same(x) + bias), NHWC, channels on lanes."""
    B, H, W, C = x_nhwc.shape
    p = K // 2
    return pl.pallas_call(
        _make_base_conv_kernel(K, C),
        out_shape=jax.ShapeDtypeStruct((B, H, W, C), x_nhwc.dtype),
        grid=(B,),
        in_specs=[
            pl.BlockSpec((1, H, W, C), lambda b: (b, 0, 0, 0)),
            pl.BlockSpec((K * K, C), lambda b: (0, 0)),
            pl.BlockSpec((1, C), lambda b: (0, 0)),
            pl.BlockSpec((1, C), lambda b: (0, 0)),
        ],
        out_specs=pl.BlockSpec((1, H, W, C), lambda b: (b, 0, 0, 0)),
        scratch_shapes=[pltpu.VMEM((H + 2 * p, W + 2 * p, C), jnp.float32)],
        compiler_params=pltpu.CompilerParams(
            dimension_semantics=("parallel",), vmem_limit_bytes=VMEM_LIMIT),
    )(x_nhwc, w_kk_c, scale_c.reshape(1, C), bias_c.reshape(1, C))


# -------- forward level: fused Haar DWT + wavelet depthwise conv + scale ------
def _make_fwd_level_kernel(K, C, dec):
    p = K // 2
    d = np.asarray(dec, np.float32)

    def kernel(x_ref, w_ref, s_ref, ll_ref, bands_ref, pad_ref):
        # x_ref: (1, Hh, 2, Wh, 2C) phase-blocked view of the full-res LL input
        # ll_ref: (1, Hh, Wh, C) raw LL band (input of the next level)
        # bands_ref: (1, Hh, Wh, 4C) conv'd + scaled bands, band-major [LL,LH,HL,HH]
        # pad_ref: (Hh+2p, Wh+2p, 4C) f32 scratch
        Hh, Wh = ll_ref.shape[1], ll_ref.shape[2]
        # phases ph[a][c] = x[2i+a, 2j+c, :]
        ph = [[x_ref[0, :, a, :, c * C:(c + 1) * C].astype(jnp.float32)
               for c in range(2)] for a in range(2)]
        bands = []
        for k in range(4):
            bk = (float(d[k, 0, 0]) * ph[0][0] + float(d[k, 0, 1]) * ph[0][1]
                  + float(d[k, 1, 0]) * ph[1][0] + float(d[k, 1, 1]) * ph[1][1])
            bands.append(bk)
        ll_ref[...] = bands[0].astype(ll_ref.dtype)[None]

        # zero-padded VMEM halo buffer holding all 4 bands
        pad_ref[...] = jnp.zeros_like(pad_ref)
        for k in range(4):
            pad_ref[p:p + Hh, p:p + Wh, k * C:(k + 1) * C] = bands[k]

        # depthwise KxK 'same' conv over all 4C channels + per-channel scale
        w = w_ref[...].astype(jnp.float32)            # (K*K, 4C)
        scale = s_ref[0:1, :].astype(jnp.float32)     # (1, 4C)
        acc = jnp.zeros((Hh, Wh, 4 * C), jnp.float32)
        for dh in range(K):
            for dw in range(K):
                acc = acc + pad_ref[dh:dh + Hh, dw:dw + Wh, :] * w[dh * K + dw:dh * K + dw + 1, :]
        bands_ref[...] = (acc * scale).astype(bands_ref.dtype)[None]

    return kernel


def fwd_level(ll_nhwc, w_kk_4c, scale_4c, dec, K):
    B, He, We, C = ll_nhwc.shape
    Hh, Wh = He // 2, We // 2
    p = K // 2
    x_view = ll_nhwc.reshape(B, Hh, 2, Wh, 2 * C)     # free contiguous reshape
    raw_ll, bands = pl.pallas_call(
        _make_fwd_level_kernel(K, C, dec),
        out_shape=(jax.ShapeDtypeStruct((B, Hh, Wh, C), ll_nhwc.dtype),
                   jax.ShapeDtypeStruct((B, Hh, Wh, 4 * C), ll_nhwc.dtype)),
        grid=(B,),
        in_specs=[
            pl.BlockSpec((1, Hh, 2, Wh, 2 * C), lambda b: (b, 0, 0, 0, 0)),
            pl.BlockSpec((K * K, 4 * C), lambda b: (0, 0)),
            pl.BlockSpec((1, 4 * C), lambda b: (0, 0)),
        ],
        out_specs=(pl.BlockSpec((1, Hh, Wh, C), lambda b: (b, 0, 0, 0)),
                   pl.BlockSpec((1, Hh, Wh, 4 * C), lambda b: (b, 0, 0, 0))),
        scratch_shapes=[pltpu.VMEM((Hh + 2 * p, Wh + 2 * p, 4 * C), jnp.float32)],
        compiler_params=pltpu.CompilerParams(
            dimension_semantics=("parallel",), vmem_limit_bytes=VMEM_LIMIT),
    )(x_view, w_kk_4c, scale_4c.reshape(1, 4 * C))
    return raw_ll, bands


# ------- inverse level: fused (LL residual add + Haar IDWT [+ base add]) -------
def _make_inv_level_kernel(C, rec, has_add, has_base):
    r = np.asarray(rec, np.float32)

    def kernel(*refs):
        i = 0
        bands_ref = refs[i]; i += 1
        add_ref = None
        base_ref = None
        if has_add:
            add_ref = refs[i]; i += 1
        if has_base:
            base_ref = refs[i]; i += 1
        out_ref = refs[i]   # (1, Hh, 2, Wh, 2C) phase-blocked full-res output

        b = [bands_ref[0, :, :, k * C:(k + 1) * C].astype(jnp.float32) for k in range(4)]
        if has_add:
            b[0] = b[0] + add_ref[0].astype(jnp.float32)
        for a in range(2):
            for c in range(2):
                val = (float(r[0, a, c]) * b[0] + float(r[1, a, c]) * b[1]
                       + float(r[2, a, c]) * b[2] + float(r[3, a, c]) * b[3])
                if has_base:
                    val = val + base_ref[0, :, a, :, c * C:(c + 1) * C].astype(jnp.float32)
                out_ref[0:1, :, a:a + 1, :, c * C:(c + 1) * C] = (
                    val.astype(out_ref.dtype)[None, :, None, :, :])

    return kernel


def inv_level(bands, ll_add, base_view, rec):
    B, Hh, Wh, C4 = bands.shape
    C = C4 // 4
    has_add = ll_add is not None
    has_base = base_view is not None
    inputs = [bands]
    in_specs = [pl.BlockSpec((1, Hh, Wh, 4 * C), lambda b: (b, 0, 0, 0))]
    if has_add:
        inputs.append(ll_add)
        in_specs.append(pl.BlockSpec((1, Hh, Wh, C), lambda b: (b, 0, 0, 0)))
    if has_base:
        inputs.append(base_view)
        in_specs.append(pl.BlockSpec((1, Hh, 2, Wh, 2 * C), lambda b: (b, 0, 0, 0, 0)))
    out = pl.pallas_call(
        _make_inv_level_kernel(C, rec, has_add, has_base),
        out_shape=jax.ShapeDtypeStruct((B, Hh, 2, Wh, 2 * C), bands.dtype),
        grid=(B,),
        in_specs=in_specs,
        out_specs=pl.BlockSpec((1, Hh, 2, Wh, 2 * C), lambda b: (b, 0, 0, 0, 0)),
        compiler_params=pltpu.CompilerParams(
            dimension_semantics=("parallel",), vmem_limit_bytes=VMEM_LIMIT),
    )(*inputs)
    return out.reshape(B, 2 * Hh, 2 * Wh, C)          # free contiguous reshape


# ------------------------ weight layout preparation ---------------------------
def _prep_base_weight(w, K):
    # torch layout (C, K, K) -> kernel layout (K*K, C)
    C = w.shape[0]
    return jnp.transpose(w, (1, 2, 0)).reshape(K * K, C)


def _prep_wavelet_weight(w, C, K):
    # torch layout (4C, K, K), channel = c*4 + band -> (K*K, 4C), channel = band*C + c
    wr = jnp.transpose(w.reshape(C, 4, K, K), (2, 3, 1, 0))   # (kh, kw, band, c)
    return wr.reshape(K * K, 4 * C)


def _prep_wavelet_scale(s, C):
    # torch index c*4+band -> band*C + c
    return jnp.transpose(s.reshape(C, 4), (1, 0)).reshape(4 * C)


# ------------------------------ WTConv2d forward -------------------------------
def wtconv2d_forward(x, params):
    """WTConv2d forward (stride=1). x: (B, C, H, W) float32 (NCHW, like PyTorch)."""
    dec, rec = params["dec_f"], params["rec_f"]
    K = params["kernel_size"]
    assert K % 2 == 1, "padding='same' handling assumes an odd kernel_size"
    wt_levels = len(params["wavelet_conv_w"])
    B, C, H, W = x.shape

    x_nhwc = jnp.transpose(x, (0, 2, 3, 1))

    # base depthwise conv + bias + scale
    base = base_depthwise_conv(x_nhwc, _prep_base_weight(params["base_conv_w"], K),
                               params["base_scale"], params["base_conv_b"], K)
    if wt_levels == 0:
        return jnp.transpose(base, (0, 3, 1, 2))

    # forward wavelet levels (fused DWT + depthwise conv + scale)
    ll = x_nhwc
    bands_list, shapes = [], []
    for i in range(wt_levels):
        Hc, Wc = ll.shape[1], ll.shape[2]
        shapes.append((Hc, Wc))
        if Hc % 2 or Wc % 2:
            ll = jnp.pad(ll, ((0, 0), (0, Hc % 2), (0, Wc % 2), (0, 0)))
        raw_ll, bands = fwd_level(
            ll,
            _prep_wavelet_weight(params["wavelet_conv_w"][i], C, K),
            _prep_wavelet_scale(params["wavelet_scale"][i], C),
            dec, K)
        bands_list.append(bands)
        ll = raw_ll

    # inverse levels (fused residual add + IDWT; base add fused at level 0)
    base_fusable = (H % 2 == 0) and (W % 2 == 0)
    next_ll = None
    for i in range(wt_levels - 1, -1, -1):
        fuse = base_fusable and (i == 0)
        base_view = base.reshape(B, H // 2, 2, W // 2, 2 * C) if fuse else None
        recon = inv_level(bands_list[i], next_ll, base_view, rec)
        Hc, Wc = shapes[i]
        if recon.shape[1] != Hc or recon.shape[2] != Wc:
            recon = recon[:, :Hc, :Wc, :]
        next_ll = recon

    out_nhwc = next_ll if base_fusable else (base + next_ll)
    # stride == 1 -> self.do_stride is None (AvgPool2d skipped)
    return jnp.transpose(out_nhwc, (0, 3, 1, 2))


# ------------------------------ pure-JAX reference ------------------------------
def _ref_depthwise(u, w, K, bias=None):
    Cu = u.shape[1]
    y = lax.conv_general_dilated(u, w.reshape(Cu, 1, K, K), (1, 1), "SAME",
                                 dimension_numbers=("NCHW", "OIHW", "NCHW"),
                                 feature_group_count=Cu)
    if bias is not None:
        y = y + bias.reshape(1, Cu, 1, 1)
    return y


def _ref_dwt(u, dec):
    B, C, He, We = u.shape
    ur = u.reshape(B, C, He // 2, 2, We // 2, 2)
    ph = [[ur[:, :, :, a, :, c] for c in range(2)] for a in range(2)]
    bands = []
    for k in range(4):
        bands.append(float(dec[k, 0, 0]) * ph[0][0] + float(dec[k, 0, 1]) * ph[0][1]
                     + float(dec[k, 1, 0]) * ph[1][0] + float(dec[k, 1, 1]) * ph[1][1])
    return jnp.stack(bands, axis=2)                    # (B, C, 4, Hh, Wh)


def _ref_idwt(bands, rec):
    B, C, _, Hh, Wh = bands.shape
    quads = [[None, None], [None, None]]
    for a in range(2):
        for c in range(2):
            quads[a][c] = (float(rec[0, a, c]) * bands[:, :, 0]
                           + float(rec[1, a, c]) * bands[:, :, 1]
                           + float(rec[2, a, c]) * bands[:, :, 2]
                           + float(rec[3, a, c]) * bands[:, :, 3])
    qa = [jnp.stack([quads[a][0], quads[a][1]], axis=-1) for a in range(2)]  # (B,C,Hh,Wh,2)
    q = jnp.stack(qa, axis=3)                                                # (B,C,Hh,2,Wh,2)
    return q.reshape(B, C, 2 * Hh, 2 * Wh)


def wtconv2d_reference(x, params):
    dec, rec = params["dec_f"], params["rec_f"]
    K = params["kernel_size"]
    wt_levels = len(params["wavelet_conv_w"])
    B, C = x.shape[0], x.shape[1]
    lls, hs, shapes = [], [], []
    curr = x
    for i in range(wt_levels):
        shapes.append(curr.shape)
        ph, pw = curr.shape[2] % 2, curr.shape[3] % 2
        if ph or pw:
            curr = jnp.pad(curr, ((0, 0), (0, 0), (0, ph), (0, pw)))
        bands = _ref_dwt(curr, dec)
        curr = bands[:, :, 0]
        Hh, Wh = bands.shape[3], bands.shape[4]
        tag = bands.reshape(B, C * 4, Hh, Wh)
        tag = params["wavelet_scale"][i].reshape(1, C * 4, 1, 1) * _ref_depthwise(
            tag, params["wavelet_conv_w"][i], K)
        tag = tag.reshape(B, C, 4, Hh, Wh)
        lls.append(tag[:, :, 0])
        hs.append(tag[:, :, 1:4])
    next_ll = jnp.zeros_like(lls[-1])
    for i in range(wt_levels - 1, -1, -1):
        cur_ll = lls.pop() + next_ll
        cur = jnp.concatenate([cur_ll[:, :, None], hs.pop()], axis=2)
        sh = shapes.pop()
        next_ll = _ref_idwt(cur, rec)[:, :, :sh[2], :sh[3]]
    base = params["base_scale"].reshape(1, C, 1, 1) * _ref_depthwise(
        x, params["base_conv_w"], K, params["base_conv_b"])
    return base + next_ll


# --------------------------------- parameters ----------------------------------
def init_params(C, wt_levels, K, key):
    dec_f, rec_f = make_db1_filters()
    keys = jax.random.split(key, 2 + wt_levels)
    return {
        "kernel_size": K,
        "dec_f": dec_f, "rec_f": rec_f,
        # base_conv: depthwise Conv2d(C, C, K, groups=C, bias=True)
        "base_conv_w": 0.1 * jax.random.normal(keys[0], (C, K, K), jnp.float32),
        "base_conv_b": 0.1 * jax.random.normal(keys[1], (C,), jnp.float32),
        # _ScaleModule([1, C, 1, 1], init_scale=1.0)
        "base_scale": jnp.ones((C,), jnp.float32),
        # wavelet_convs[i]: depthwise Conv2d(4C, 4C, K, groups=4C, bias=False)
        "wavelet_conv_w": [0.1 * jax.random.normal(keys[2 + i], (4 * C, K, K), jnp.float32)
                           for i in range(wt_levels)],
        # _ScaleModule([1, 4C, 1, 1], init_scale=0.1)
        "wavelet_scale": [jnp.full((4 * C,), 0.1, jnp.float32) for _ in range(wt_levels)],
    }


# ------------------------------------ main --------------------------------------
if __name__ == "__main__":
    B, C, H, W = 2, 4, 16, 16
    wt_levels, K = 2, 5
    key = jax.random.PRNGKey(0)
    kx, kp, kx2 = jax.random.split(key, 3)
    x = jax.random.normal(kx, (B, C, H, W), jnp.float32)
    params = init_params(C, wt_levels, K, kp)

    # full WTConv2d forward via Pallas kernels
    out = jax.block_until_ready(wtconv2d_forward(x, params))
    assert out.shape == (B, C, H, W)
    assert bool(jnp.all(jnp.isfinite(out)))

    # check against a pure-JAX / lax.conv reference of the whole module
    ref = jax.block_until_ready(wtconv2d_reference(x, params))
    np.testing.assert_allclose(np.asarray(out), np.asarray(ref), atol=2e-4, rtol=2e-4)

    # sanity: Haar filters are a perfect-reconstruction pair
    xr = _ref_idwt(_ref_dwt(x, params["dec_f"]), params["rec_f"])
    np.testing.assert_allclose(np.asarray(xr), np.asarray(x), atol=1e-5, rtol=1e-5)

    # odd-size path (exercises pad-then-crop at the deeper level)
    x2 = jax.random.normal(kx2, (1, C, 14, 14), jnp.float32)
    out2 = jax.block_until_ready(wtconv2d_forward(x2, params))
    ref2 = jax.block_until_ready(wtconv2d_reference(x2, params))
    np.testing.assert_allclose(np.asarray(out2), np.asarray(ref2), atol=2e-4, rtol=2e-4)

    print("KERNEL_OK")
</pallas_src>

<mosaic_0001>
module attributes {stable_mosaic.version = 11 : i64} {
  func.func @kernel(%arg0: i32, %arg1: memref<1x16x16x4xf32, #tpu.memory_space<vmem>>, %arg2: memref<25x4xf32, #tpu.memory_space<vmem>>, %arg3: memref<1x4xf32, #tpu.memory_space<vmem>>, %arg4: memref<1x4xf32, #tpu.memory_space<vmem>>, %arg5: memref<1x16x16x4xf32, #tpu.memory_space<vmem>>, %arg6: memref<20x20x4xf32, #tpu.memory_space<vmem>>) attributes {dimension_semantics = [#tpu.dimension_semantics<parallel>], iteration_bounds = array<i64: 2>, scalar_prefetch = 0 : i64, scratch_operands = 1 : i64, tpu.core_type = #tpu.core_type<tc>, window_params = [{transform_indices = @transform_0, window_bounds = array<i64: 1, 16, 16, 4>}, {pipeline_mode = #tpu.pipeline_mode<synchronous>, transform_indices = @transform_1, window_bounds = array<i64: 25, 4>}, {pipeline_mode = #tpu.pipeline_mode<synchronous>, transform_indices = @transform_2, window_bounds = array<i64: 1, 4>}, {pipeline_mode = #tpu.pipeline_mode<synchronous>, transform_indices = @transform_3, window_bounds = array<i64: 1, 4>}, {transform_indices = @transform_4, window_bounds = array<i64: 1, 16, 16, 4>}]} {
    %cst = arith.constant 0.000000e+00 : f32
    %0 = vector.broadcast %cst : f32 to vector<20x20x4xf32>
    %c0 = arith.constant 0 : index
    %c0_0 = arith.constant 0 : index
    %c0_1 = arith.constant 0 : index
    %1 = vector.load %arg6[%c0, %c0_0, %c0_1] : memref<20x20x4xf32, #tpu.memory_space<vmem>>, vector<20x20x4xf32>
    tpu.vector_store %arg6[%c0, %c0_0, %c0_1], %0 {strides = array<i32>} : memref<20x20x4xf32, #tpu.memory_space<vmem>>, vector<20x20x4xf32>,
    %c0_2 = arith.constant 0 : index
    %c0_3 = arith.constant 0 : index
    %c0_4 = arith.constant 0 : index
    %c0_5 = arith.constant 0 : index
    %2 = vector.load %arg1[%c0_2, %c0_3, %c0_4, %c0_5] : memref<1x16x16x4xf32, #tpu.memory_space<vmem>>, vector<1x16x16x4xf32>
    %3 = vector.shape_cast %2 : vector<1x16x16x4xf32> to vector<16x16x4xf32>
    %c2 = arith.constant 2 : index
    %c2_6 = arith.constant 2 : index
    %c0_7 = arith.constant 0 : index
    %4 = vector.load %arg6[%c2, %c2_6, %c0_7] : memref<20x20x4xf32, #tpu.memory_space<vmem>>, vector<16x16x4xf32>
    tpu.vector_store %arg6[%c2, %c2_6, %c0_7], %3 {strides = array<i32>} : memref<20x20x4xf32, #tpu.memory_space<vmem>>, vector<16x16x4xf32>,
    %c0_8 = arith.constant 0 : index
    %c0_9 = arith.constant 0 : index
    %5 = vector.load %arg2[%c0_8, %c0_9] : memref<25x4xf32, #tpu.memory_space<vmem>>, vector<25x4xf32>
    %c0_10 = arith.constant 0 : index
    %c0_11 = arith.constant 0 : index
    %6 = vector.load %arg3[%c0_10, %c0_11] : memref<1x4xf32, #tpu.memory_space<vmem>>, vector<1x4xf32>
    %c0_12 = arith.constant 0 : index
    %c0_13 = arith.constant 0 : index
    %7 = vector.load %arg4[%c0_12, %c0_13] : memref<1x4xf32, #tpu.memory_space<vmem>>, vector<1x4xf32>
    %cst_14 = arith.constant 0.000000e+00 : f32
    %8 = vector.broadcast %cst_14 : f32 to vector<16x16x4xf32>
    %c0_15 = arith.constant 0 : index
    %c0_16 = arith.constant 0 : index
    %c0_17 = arith.constant 0 : index
    %9 = vector.load %arg6[%c0_15, %c0_16, %c0_17] : memref<20x20x4xf32, #tpu.memory_space<vmem>>, vector<16x16x4xf32>
    %10 = vector.extract_strided_slice %5 {offsets = [0, 0], sizes = [1, 4], strides = [1, 1]} : vector<25x4xf32> to vector<1x4xf32>
    %11 = vector.shape_cast %10 : vector<1x4xf32> to vector<1x1x4xf32>
    %12 = vector.broadcast %11 : vector<1x1x4xf32> to vector<16x16x4xf32>
    %13 = arith.mulf %9, %12 : vector<16x16x4xf32>
    %14 = arith.addf %8, %13 : vector<16x16x4xf32>
    %c0_18 = arith.constant 0 : index
    %c1 = arith.constant 1 : index
    %c0_19 = arith.constant 0 : index
    %15 = vector.load %arg6[%c0_18, %c1, %c0_19] : memref<20x20x4xf32, #tpu.memory_space<vmem>>, vector<16x16x4xf32>
    %16 = vector.extract_strided_slice %5 {offsets = [1, 0], sizes = [1, 4], strides = [1, 1]} : vector<25x4xf32> to vector<1x4xf32>
    %17 = vector.shape_cast %16 : vector<1x4xf32> to vector<1x1x4xf32>
    %18 = vector.broadcast %17 : vector<1x1x4xf32> to vector<16x16x4xf32>
    %19 = arith.mulf %15, %18 : vector<16x16x4xf32>
    %20 = arith.addf %14, %19 : vector<16x16x4xf32>
    %c0_20 = arith.constant 0 : index
    %c2_21 = arith.constant 2 : index
    %c0_22 = arith.constant 0 : index
    %21 = vector.load %arg6[%c0_20, %c2_21, %c0_22] : memref<20x20x4xf32, #tpu.memory_space<vmem>>, vector<16x16x4xf32>
    %22 = vector.extract_strided_slice %5 {offsets = [2, 0], sizes = [1, 4], strides = [1, 1]} : vector<25x4xf32> to vector<1x4xf32>
    %23 = vector.shape_cast %22 : vector<1x4xf32> to vector<1x1x4xf32>
    %24 = vector.broadcast %23 : vector<1x1x4xf32> to vector<16x16x4xf32>
    %25 = arith.mulf %21, %24 : vector<16x16x4xf32>
    %26 = arith.addf %20, %25 : vector<16x16x4xf32>
    %c0_23 = arith.constant 0 : index
    %c3 = arith.constant 3 : index
    %c0_24 = arith.constant 0 : index
    %27 = vector.load %arg6[%c0_23, %c3, %c0_24] : memref<20x20x4xf32, #tpu.memory_space<vmem>>, vector<16x16x4xf32>
    %28 = vector.extract_strided_slice %5 {offsets = [3, 0], sizes = [1, 4], strides = [1, 1]} : vector<25x4xf32> to vector<1x4xf32>
    %29 = vector.shape_cast %28 : vector<1x4xf32> to vector<1x1x4xf32>
    %30 = vector.broadcast %29 : vector<1x1x4xf32> to vector<16x16x4xf32>
    %31 = arith.mulf %27, %30 : vector<16x16x4xf32>
    %32 = arith.addf %26, %31 : vector<16x16x4xf32>
    %c0_25 = arith.constant 0 : index
    %c4 = arith.constant 4 : index
    %c0_26 = arith.constant 0 : index
    %33 = vector.load %arg6[%c0_25, %c4, %c0_26] : memref<20x20x4xf32, #tpu.memory_space<vmem>>, vector<16x16x4xf32>
    %34 = vector.extract_strided_slice %5 {offsets = [4, 0], sizes = [1, 4], strides = [1, 1]} : vector<25x4xf32> to vector<1x4xf32>
    %35 = vector.shape_cast %34 : vector<1x4xf32> to vector<1x1x4xf32>
    %36 = vector.broadcast %35 : vector<1x1x4xf32> to vector<16x16x4xf32>
    %37 = arith.mulf %33, %36 : vector<16x16x4xf32>
    %38 = arith.addf %32, %37 : vector<16x16x4xf32>
    %c1_27 = arith.constant 1 : index
    %c0_28 = arith.constant 0 : index
    %c0_29 = arith.constant 0 : index
    %39 = vector.load %arg6[%c1_27, %c0_28, %c0_29] : memref<20x20x4xf32, #tpu.memory_space<vmem>>, vector<16x16x4xf32>
    %40 = vector.extract_strided_slice %5 {offsets = [5, 0], sizes = [1, 4], strides = [1, 1]} : vector<25x4xf32> to vector<1x4xf32>
    %41 = vector.shape_cast %40 : vector<1x4xf32> to vector<1x1x4xf32>
    %42 = vector.broadcast %41 : vector<1x1x4xf32> to vector<16x16x4xf32>
    %43 = arith.mulf %39, %42 : vector<16x16x4xf32>
    %44 = arith.addf %38, %43 : vector<16x16x4xf32>
    %c1_30 = arith.constant 1 : index
    %c1_31 = arith.constant 1 : index
    %c0_32 = arith.constant 0 : index
    %45 = vector.load %arg6[%c1_30, %c1_31, %c0_32] : memref<20x20x4xf32, #tpu.memory_space<vmem>>, vector<16x16x4xf32>
    %46 = vector.extract_strided_slice %5 {offsets = [6, 0], sizes = [1, 4], strides = [1, 1]} : vector<25x4xf32> to vector<1x4xf32>
    %47 = vector.shape_cast %46 : vector<1x4xf32> to vector<1x1x4xf32>
    %48 = vector.broadcast %47 : vector<1x1x4xf32> to vector<16x16x4xf32>
    %49 = arith.mulf %45, %48 : vector<16x16x4xf32>
    %50 = arith.addf %44, %49 : vector<16x16x4xf32>
    %c1_33 = arith.constant 1 : index
    %c2_34 = arith.constant 2 : index
    %c0_35 = arith.constant 0 : index
    %51 = vector.load %arg6[%c1_33, %c2_34, %c0_35] : memref<20x20x4xf32, #tpu.memory_space<vmem>>, vector<16x16x4xf32>
    %52 = vector.extract_strided_slice %5 {offsets = [7, 0], sizes = [1, 4], strides = [1, 1]} : vector<25x4xf32> to vector<1x4xf32>
    %53 = vector.shape_cast %52 : vector<1x4xf32> to vector<1x1x4xf32>
    %54 = vector.broadcast %53 : vector<1x1x4xf32> to vector<16x16x4xf32>
    %55 = arith.mulf %51, %54 : vector<16x16x4xf32>
    %56 = arith.addf %50, %55 : vector<16x16x4xf32>
    %c1_36 = arith.constant 1 : index
    %c3_37 = arith.constant 3 : index
    %c0_38 = arith.constant 0 : index
    %57 = vector.load %arg6[%c1_36, %c3_37, %c0_38] : memref<20x20x4xf32, #tpu.memory_space<vmem>>, vector<16x16x4xf32>
    %58 = vector.extract_strided_slice %5 {offsets = [8, 0], sizes = [1, 4], strides = [1, 1]} : vector<25x4xf32> to vector<1x4xf32>
    %59 = vector.shape_cast %58 : vector<1x4xf32> to vector<1x1x4xf32>
    %60 = vector.broadcast %59 : vector<1x1x4xf32> to vector<16x16x4xf32>
    %61 = arith.mulf %57, %60 : vector<16x16x4xf32>
    %62 = arith.addf %56, %61 : vector<16x16x4xf32>
    %c1_39 = arith.constant 1 : index
    %c4_40 = arith.constant 4 : index
    %c0_41 = arith.constant 0 : index
    %63 = vector.load %arg6[%c1_39, %c4_40, %c0_41] : memref<20x20x4xf32, #tpu.memory_space<vmem>>, vector<16x16x4xf32>
    %64 = vector.extract_strided_slice %5 {offsets = [9, 0], sizes = [1, 4], strides = [1, 1]} : vector<25x4xf32> to vector<1x4xf32>
    %65 = vector.shape_cast %64 : vector<1x4xf32> to vector<1x1x4xf32>
    %66 = vector.broadcast %65 : vector<1x1x4xf32> to vector<16x16x4xf32>
    %67 = arith.mulf %63, %66 : vector<16x16x4xf32>
    %68 = arith.addf %62, %67 : vector<16x16x4xf32>
    %c2_42 = arith.constant 2 : index
    %c0_43 = arith.constant 0 : index
    %c0_44 = arith.constant 0 : index
    %69 = vector.load %arg6[%c2_42, %c0_43, %c0_44] : memref<20x20x4xf32, #tpu.memory_space<vmem>>, vector<16x16x4xf32>
    %70 = vector.extract_strided_slice %5 {offsets = [10, 0], sizes = [1, 4], strides = [1, 1]} : vector<25x4xf32> to vector<1x4xf32>
    %71 = vector.shape_cast %70 : vector<1x4xf32> to vector<1x1x4xf32>
    %72 = vector.broadcast %71 : vector<1x1x4xf32> to vector<16x16x4xf32>
    %73 = arith.mulf %69, %72 : vector<16x16x4xf32>
    %74 = arith.addf %68, %73 : vector<16x16x4xf32>
    %c2_45 = arith.constant 2 : index
    %c1_46 = arith.constant 1 : index
    %c0_47 = arith.constant 0 : index
    %75 = vector.load %arg6[%c2_45, %c1_46, %c0_47] : memref<20x20x4xf32, #tpu.memory_space<vmem>>, vector<16x16x4xf32>
    %76 = vector.extract_strided_slice %5 {offsets = [11, 0], sizes = [1, 4], strides = [1, 1]} : vector<25x4xf32> to vector<1x4xf32>
    %77 = vector.shape_cast %76 : vector<1x4xf32> to vector<1x1x4xf32>
    %78 = vector.broadcast %77 : vector<1x1x4xf32> to vector<16x16x4xf32>
    %79 = arith.mulf %75, %78 : vector<16x16x4xf32>
    %80 = arith.addf %74, %79 : vector<16x16x4xf32>
    %c2_48 = arith.constant 2 : index
    %c2_49 = arith.constant 2 : index
    %c0_50 = arith.constant 0 : index
    %81 = vector.load %arg6[%c2_48, %c2_49, %c0_50] : memref<20x20x4xf32, #tpu.memory_space<vmem>>, vector<16x16x4xf32>
    %82 = vector.extract_strided_slice %5 {offsets = [12, 0], sizes = [1, 4], strides = [1, 1]} : vector<25x4xf32> to vector<1x4xf32>
    %83 = vector.shape_cast %82 : vector<1x4xf32> to vector<1x1x4xf32>
    %84 = vector.broadcast %83 : vector<1x1x4xf32> to vector<16x16x4xf32>
    %85 = arith.mulf %81, %84 : vector<16x16x4xf32>
    %86 = arith.addf %80, %85 : vector<16x16x4xf32>
    %c2_51 = arith.constant 2 : index
    %c3_52 = arith.constant 3 : index
    %c0_53 = arith.constant 0 : index
    %87 = vector.load %arg6[%c2_51, %c3_52, %c0_53] : memref<20x20x4xf32, #tpu.memory_space<vmem>>, vector<16x16x4xf32>
    %88 = vector.extract_strided_slice %5 {offsets = [13, 0], sizes = [1, 4], strides = [1, 1]} : vector<25x4xf32> to vector<1x4xf32>
    %89 = vector.shape_cast %88 : vector<1x4xf32> to vector<1x1x4xf32>
    %90 = vector.broadcast %89 : vector<1x1x4xf32> to vector<16x16x4xf32>
    %91 = arith.mulf %87, %90 : vector<16x16x4xf32>
    %92 = arith.addf %86, %91 : vector<16x16x4xf32>
    %c2_54 = arith.constant 2 : index
    %c4_55 = arith.constant 4 : index
    %c0_56 = arith.constant 0 : index
    %93 = vector.load %arg6[%c2_54, %c4_55, %c0_56] : memref<20x20x4xf32, #tpu.memory_space<vmem>>, vector<16x16x4xf32>
    %94 = vector.extract_strided_slice %5 {offsets = [14, 0], sizes = [1, 4], strides = [1, 1]} : vector<25x4xf32> to vector<1x4xf32>
    %95 = vector.shape_cast %94 : vector<1x4xf32> to vector<1x1x4xf32>
    %96 = vector.broadcast %95 : vector<1x1x4xf32> to vector<16x16x4xf32>
    %97 = arith.mulf %93, %96 : vector<16x16x4xf32>
    %98 = arith.addf %92, %97 : vector<16x16x4xf32>
    %c3_57 = arith.constant 3 : index
    %c0_58 = arith.constant 0 : index
    %c0_59 = arith.constant 0 : index
    %99 = vector.load %arg6[%c3_57, %c0_58, %c0_59] : memref<20x20x4xf32, #tpu.memory_space<vmem>>, vector<16x16x4xf32>
    %100 = vector.extract_strided_slice %5 {offsets = [15, 0], sizes = [1, 4], strides = [1, 1]} : vector<25x4xf32> to vector<1x4xf32>
    %101 = vector.shape_cast %100 : vector<1x4xf32> to vector<1x1x4xf32>
    %102 = vector.broadcast %101 : vector<1x1x4xf32> to vector<16x16x4xf32>
    %103 = arith.mulf %99, %102 : vector<16x16x4xf32>
    %104 = arith.addf %98, %103 : vector<16x16x4xf32>
    %c3_60 = arith.constant 3 : index
    %c1_61 = arith.constant 1 : index
    %c0_62 = arith.constant 0 : index
    %105 = vector.load %arg6[%c3_60, %c1_61, %c0_62] : memref<20x20x4xf32, #tpu.memory_space<vmem>>, vector<16x16x4xf32>
    %106 = vector.extract_strided_slice %5 {offsets = [16, 0], sizes = [1, 4], strides = [1, 1]} : vector<25x4xf32> to vector<1x4xf32>
    %107 = vector.shape_cast %106 : vector<1x4xf32> to vector<1x1x4xf32>
    %108 = vector.broadcast %107 : vector<1x1x4xf32> to vector<16x16x4xf32>
    %109 = arith.mulf %105, %108 : vector<16x16x4xf32>
    %110 = arith.addf %104, %109 : vector<16x16x4xf32>
    %c3_63 = arith.constant 3 : index
    %c2_64 = arith.constant 2 : index
    %c0_65 = arith.constant 0 : index
    %111 = vector.load %arg6[%c3_63, %c2_64, %c0_65] : memref<20x20x4xf32, #tpu.memory_space<vmem>>, vector<16x16x4xf32>
    %112 = vector.extract_strided_slice %5 {offsets = [17, 0], sizes = [1, 4], strides = [1, 1]} : vector<25x4xf32> to vector<1x4xf32>
    %113 = vector.shape_cast %112 : vector<1x4xf32> to vector<1x1x4xf32>
    %114 = vector.broadcast %113 : vector<1x1x4xf32> to vector<16x16x4xf32>
    %115 = arith.mulf %111, %114 : vector<16x16x4xf32>
    %116 = arith.addf %110, %115 : vector<16x16x4xf32>
    %c3_66 = arith.constant 3 : index
    %c3_67 = arith.constant 3 : index
    %c0_68 = arith.constant 0 : index
    %117 = vector.load %arg6[%c3_66, %c3_67, %c0_68] : memref<20x20x4xf32, #tpu.memory_space<vmem>>, vector<16x16x4xf32>
    %118 = vector.extract_strided_slice %5 {offsets = [18, 0], sizes = [1, 4], strides = [1, 1]} : vector<25x4xf32> to vector<1x4xf32>
    %119 = vector.shape_cast %118 : vector<1x4xf32> to vector<1x1x4xf32>
    %120 = vector.broadcast %119 : vector<1x1x4xf32> to vector<16x16x4xf32>
    %121 = arith.mulf %117, %120 : vector<16x16x4xf32>
    %122 = arith.addf %116, %121 : vector<16x16x4xf32>
    %c3_69 = arith.constant 3 : index
    %c4_70 = arith.constant 4 : index
    %c0_71 = arith.constant 0 : index
    %123 = vector.load %arg6[%c3_69, %c4_70, %c0_71] : memref<20x20x4xf32, #tpu.memory_space<vmem>>, vector<16x16x4xf32>
    %124 = vector.extract_strided_slice %5 {offsets = [19, 0], sizes = [1, 4], strides = [1, 1]} : vector<25x4xf32> to vector<1x4xf32>
    %125 = vector.shape_cast %124 : vector<1x4xf32> to vector<1x1x4xf32>
    %126 = vector.broadcast %125 : vector<1x1x4xf32> to vector<16x16x4xf32>
    %127 = arith.mulf %123, %126 : vector<16x16x4xf32>
    %128 = arith.addf %122, %127 : vector<16x16x4xf32>
    %c4_72 = arith.constant 4 : index
    %c0_73 = arith.constant 0 : index
    %c0_74 = arith.constant 0 : index
    %129 = vector.load %arg6[%c4_72, %c0_73, %c0_74] : memref<20x20x4xf32, #tpu.memory_space<vmem>>, vector<16x16x4xf32>
    %130 = vector.extract_strided_slice %5 {offsets = [20, 0], sizes = [1, 4], strides = [1, 1]} : vector<25x4xf32> to vector<1x4xf32>
    %131 = vector.shape_cast %130 : vector<1x4xf32> to vector<1x1x4xf32>
    %132 = vector.broadcast %131 : vector<1x1x4xf32> to vector<16x16x4xf32>
    %133 = arith.mulf %129, %132 : vector<16x16x4xf32>
    %134 = arith.addf %128, %133 : vector<16x16x4xf32>
    %c4_75 = arith.constant 4 : index
    %c1_76 = arith.constant 1 : index
    %c0_77 = arith.constant 0 : index
    %135 = vector.load %arg6[%c4_75, %c1_76, %c0_77] : memref<20x20x4xf32, #tpu.memory_space<vmem>>, vector<16x16x4xf32>
    %136 = vector.extract_strided_slice %5 {offsets = [21, 0], sizes = [1, 4], strides = [1, 1]} : vector<25x4xf32> to vector<1x4xf32>
    %137 = vector.shape_cast %136 : vector<1x4xf32> to vector<1x1x4xf32>
    %138 = vector.broadcast %137 : vector<1x1x4xf32> to vector<16x16x4xf32>
    %139 = arith.mulf %135, %138 : vector<16x16x4xf32>
    %140 = arith.addf %134, %139 : vector<16x16x4xf32>
    %c4_78 = arith.constant 4 : index
    %c2_79 = arith.constant 2 : index
    %c0_80 = arith.constant 0 : index
    %141 = vector.load %arg6[%c4_78, %c2_79, %c0_80] : memref<20x20x4xf32, #tpu.memory_space<vmem>>, vector<16x16x4xf32>
    %142 = vector.extract_strided_slice %5 {offsets = [22, 0], sizes = [1, 4], strides = [1, 1]} : vector<25x4xf32> to vector<1x4xf32>
    %143 = vector.shape_cast %142 : vector<1x4xf32> to vector<1x1x4xf32>
    %144 = vector.broadcast %143 : vector<1x1x4xf32> to vector<16x16x4xf32>
    %145 = arith.mulf %141, %144 : vector<16x16x4xf32>
    %146 = arith.addf %140, %145 : vector<16x16x4xf32>
    %c4_81 = arith.constant 4 : index
    %c3_82 = arith.constant 3 : index
    %c0_83 = arith.constant 0 : index
    %147 = vector.load %arg6[%c4_81, %c3_82, %c0_83] : memref<20x20x4xf32, #tpu.memory_space<vmem>>, vector<16x16x4xf32>
    %148 = vector.extract_strided_slice %5 {offsets = [23, 0], sizes = [1, 4], strides = [1, 1]} : vector<25x4xf32> to vector<1x4xf32>
    %149 = vector.shape_cast %148 : vector<1x4xf32> to vector<1x1x4xf32>
    %150 = vector.broadcast %149 : vector<1x1x4xf32> to vector<16x16x4xf32>
    %151 = arith.mulf %147, %150 : vector<16x16x4xf32>
    %152 = arith.addf %146, %151 : vector<16x16x4xf32>
    %c4_84 = arith.constant 4 : index
    %c4_85 = arith.constant 4 : index
    %c0_86 = arith.constant 0 : index
    %153 = vector.load %arg6[%c4_84, %c4_85, %c0_86] : memref<20x20x4xf32, #tpu.memory_space<vmem>>, vector<16x16x4xf32>
    %154 = vector.extract_strided_slice %5 {offsets = [24, 0], sizes = [1, 4], strides = [1, 1]} : vector<25x4xf32> to vector<1x4xf32>
    %155 = vector.shape_cast %154 : vector<1x4xf32> to vector<1x1x4xf32>
    %156 = vector.broadcast %155 : vector<1x1x4xf32> to vector<16x16x4xf32>
    %157 = arith.mulf %153, %156 : vector<16x16x4xf32>
    %158 = arith.addf %152, %157 : vector<16x16x4xf32>
    %159 = vector.shape_cast %7 : vector<1x4xf32> to vector<1x1x4xf32>
    %160 = vector.broadcast %159 : vector<1x1x4xf32> to vector<16x16x4xf32>
    %161 = arith.addf %158, %160 : vector<16x16x4xf32>
    %162 = vector.shape_cast %6 : vector<1x4xf32> to vector<1x1x4xf32>
    %163 = vector.broadcast %162 : vector<1x1x4xf32> to vector<16x16x4xf32>
    %164 = arith.mulf %163, %161 : vector<16x16x4xf32>
    %165 = vector.shape_cast %164 : vector<16x16x4xf32> to vector<1x16x16x4xf32>
    %c0_87 = arith.constant 0 : index
    %c0_88 = arith.constant 0 : index
    %c0_89 = arith.constant 0 : index
    %c0_90 = arith.constant 0 : index
    %166 = vector.load %arg5[%c0_87, %c0_88, %c0_89, %c0_90] : memref<1x16x16x4xf32, #tpu.memory_space<vmem>>, vector<1x16x16x4xf32>
    tpu.vector_store %arg5[%c0_87, %c0_88, %c0_89, %c0_90], %165 {strides = array<i32>} : memref<1x16x16x4xf32, #tpu.memory_space<vmem>>, vector<1x16x16x4xf32>,
    return
  }
  func.func @transform_0(%arg0: i32) -> (i32, i32, i32, i32) {
    %c0_i32 = arith.constant 0 : i32
    %c0_i32_0 = arith.constant 0 : i32
    %c0_i32_1 = arith.constant 0 : i32
    %c0_i32_2 = arith.constant 0 : i32
    return %arg0, %c0_i32, %c0_i32_0, %c0_i32_1 : i32, i32, i32, i32
  }
  func.func @transform_1(%arg0: i32) -> (i32, i32) {
    %c0_i32 = arith.constant 0 : i32
    %c0_i32_0 = arith.constant 0 : i32
    %c0_i32_1 = arith.constant 0 : i32
    return %c0_i32, %c0_i32_0 : i32, i32
  }
  func.func @transform_2(%arg0: i32) -> (i32, i32) {
    %c0_i32 = arith.constant 0 : i32
    %c0_i32_0 = arith.constant 0 : i32
    %c0_i32_1 = arith.constant 0 : i32
    return %c0_i32, %c0_i32_0 : i32, i32
  }
  func.func @transform_3(%arg0: i32) -> (i32, i32) {
    %c0_i32 = arith.constant 0 : i32
    %c0_i32_0 = arith.constant 0 : i32
    %c0_i32_1 = arith.constant 0 : i32
    return %c0_i32, %c0_i32_0 : i32, i32
  }
  func.func @transform_4(%arg0: i32) -> (i32, i32, i32, i32) {
    %c0_i32 = arith.constant 0 : i32
    %c0_i32_0 = arith.constant 0 : i32
    %c0_i32_1 = arith.constant 0 : i32
    %c0_i32_2 = arith.constant 0 : i32
    return %arg0, %c0_i32, %c0_i32_0, %c0_i32_1 : i32, i32, i32, i32
  }
}

</mosaic_0001>

<llo_original>
// kernel: tpu_custom_call.1
$region0: #{tpu_custom_call.1}
  #allocation0 [shape = 'u32[]', space=smem, size = 0x4, offset = 0x4, fixed_abs, tag = 'smem constant byte address 0x4 - core index']
  #allocation1 [shape = 'u32[72,128]{1,0:T(1,128)}', space=vmem, size = 0x9000, scoped, tag = 'internal scratch']
  #allocation2 [shape = 'f32[20,20,4]{2,1,0:T(8,128)}', space=vmem, size = 0x3c000, scoped, tag = 'scratch operand']
  %s0 = inlined_call_operand.vmem [shape: f32[2,16,16,4], index: 0, kind: input, shape index: {}]
  %s1 = inlined_call_operand.vmem [shape: f32[25,4], index: 1, kind: input, shape index: {}]
  %s2 = inlined_call_operand.vmem [shape: f32[1,4], index: 2, kind: input, shape index: {}]
  %s3 = inlined_call_operand.vmem [shape: f32[1,4], index: 3, kind: input, shape index: {}]
  %s4 = inlined_call_operand.vmem [shape: f32[2,16,16,4], index: 4, kind: output, shape index: {}]
  %s5 = sld [smem:[#allocation0]]
  $region49: #{tpu_custom_call.1} parent=0
    _
  %s7 = ssub.s32 1, %s5
  %s8 = scalar_select 0, %s7, %s5
  loop: start=0, step=1, limit=4
  $region2: #{tpu_custom_call.1} parent=0 // loop_pre_header
    _
  $region3: #{tpu_custom_call.1} parent=0 // loop_header
    %s10 = sphi 0, %s14
    %p11 = scmp.ge.s32.totalorder %s10, 4
    %s20 = sphi 0, %s22
    %s23 = sphi 0, %s20
    %s24 = sphi 0, %s23
    %s40 = sphi 0, %s24
    %s44 = sphi 0, %s44
    %s46 = sphi 0, %s44
    %s47 = sphi 0, %s46
    %s61 = sphi 0, %s47
    %s65 = sphi 0, %s65
    %s67 = sphi 0, %s65
    %s68 = sphi 0, %s67
    %s82 = sphi 0, %s68
    %s86 = sphi 0, %s86
    %s88 = sphi 0, %s86
    %s89 = sphi 0, %s88
    %s103 = sphi 0, %s89
    %s109 = sphi 0, %s111
    %s112 = sphi 0, %s109
    %s113 = sphi 0, %s112
    %s129 = sphi 0, %s113
  $region4: #{tpu_custom_call.1} parent=0 // loop_header_branch
    %13 = sbr.rel (%p11) target = $region8
  $region5: #{tpu_custom_call.1} parent=0 // loop_body
    %s15 = ssub.s32 %s10, 1
    %s16 = ssub.s32 %s10, 2
    %s17 = sadd.s32 %s10, 1
    %s18 = ssub.s32 %s10, %s17
    %p19 = scmp.eq.s32.totalorder %s18, 0
    %s21 = sadd.s32 %s20, 1
    %s22 = scalar_select %p19, %s20, %s21
    %p25 = pneg %p19
    %p26 = scmp.eq.s32.totalorder %s10, 1
    %p27 = por %p25, %p26
    %p28 = scmp.ne.s32.totalorder %s20, %s23
    %p29 = scmp.eq.s32.totalorder %s10, 0
    %p30 = por %p28, %p29
    %p31 = scmp.ne.s32.totalorder %s20, %s23
    %p32 = scmp.eq.s32.totalorder %s15, 1
    %p33 = por %p31, %p32
    %p34 = scmp.ne.s32.totalorder %s23, %s24
    %p35 = scmp.eq.s32.totalorder %s15, 0
    %p36 = por %p34, %p35
    %p37 = scmp.ne.s32.totalorder %s23, %s24
    %p38 = scmp.eq.s32.totalorder %s16, 1
    %p39 = por %p37, %p38
    %p41 = scmp.ne.s32.totalorder %s24, %s40
    %p42 = scmp.eq.s32.totalorder %s16, 0
    %p43 = por %p41, %p42
    %s45 = sadd.s32 %s44, 1
    %p48 = scmp.eq.s32.totalorder %s10, 1
    %p49 = scmp.ne.s32.totalorder %s44, %s46
    %p50 = scmp.eq.s32.totalorder %s10, 0
    %p51 = por %p49, %p50
    %p52 = scmp.ne.s32.totalorder %s44, %s46
    %p53 = scmp.eq.s32.totalorder %s15, 1
    %p54 = por %p52, %p53
    %p55 = scmp.ne.s32.totalorder %s46, %s47
    %p56 = scmp.eq.s32.totalorder %s15, 0
    %p57 = por %p55, %p56
    %p58 = scmp.ne.s32.totalorder %s46, %s47
    %p59 = scmp.eq.s32.totalorder %s16, 1
    %p60 = por %p58, %p59
    %p62 = scmp.ne.s32.totalorder %s47, %s61
    %p63 = scmp.eq.s32.totalorder %s16, 0
    %p64 = por %p62, %p63
    %s66 = sadd.s32 %s65, 1
    %p69 = scmp.eq.s32.totalorder %s10, 1
    %p70 = scmp.ne.s32.totalorder %s65, %s67
    %p71 = scmp.eq.s32.totalorder %s10, 0
    %p72 = por %p70, %p71
    %p73 = scmp.ne.s32.totalorder %s65, %s67
    %p74 = scmp.eq.s32.totalorder %s15, 1
    %p75 = por %p73, %p74
    %p76 = scmp.ne.s32.totalorder %s67, %s68
    %p77 = scmp.eq.s32.totalorder %s15, 0
    %p78 = por %p76, %p77
    %p79 = scmp.ne.s32.totalorder %s67, %s68
    %p80 = scmp.eq.s32.totalorder %s16, 1
    %p81 = por %p79, %p80
    %p83 = scmp.ne.s32.totalorder %s68, %s82
    %p84 = scmp.eq.s32.totalorder %s16, 0
    %p85 = por %p83, %p84
    %s87 = sadd.s32 %s86, 1
    %p90 = scmp.eq.s32.totalorder %s10, 1
    %p91 = scmp.ne.s32.totalorder %s86, %s88
    %p92 = scmp.eq.s32.totalorder %s10, 0
    %p93 = por %p91, %p92
    %p94 = scmp.ne.s32.totalorder %s86, %s88
    %p95 = scmp.eq.s32.totalorder %s15, 1
    %p96 = por %p94, %p95
    %p97 = scmp.ne.s32.totalorder %s88, %s89
    %p98 = scmp.eq.s32.totalorder %s15, 0
    %p99 = por %p97, %p98
    %p100 = scmp.ne.s32.totalorder %s88, %s89
    %p101 = scmp.eq.s32.totalorder %s16, 1
    %p102 = por %p100, %p101
    %p104 = scmp.ne.s32.totalorder %s89, %s103
    %p105 = scmp.eq.s32.totalorder %s16, 0
    %p106 = por %p104, %p105
    %s107 = ssub.s32 %s10, %s17
    %p108 = scmp.eq.s32.totalorder %s107, 0
    %s110 = sadd.s32 %s109, 1
    %s111 = scalar_select %p108, %s109, %s110
    %p114 = pneg %p108
    %p115 = scmp.eq.s32.totalorder %s10, 1
    %p116 = por %p114, %p115
    %p117 = scmp.ne.s32.totalorder %s109, %s112
    %p118 = scmp.eq.s32.totalorder %s10, 0
    %p119 = por %p117, %p118
    %p120 = scmp.ne.s32.totalorder %s109, %s112
    %p121 = scmp.eq.s32.totalorder %s15, 1
    %p122 = por %p120, %p121
    %p123 = scmp.ne.s32.totalorder %s112, %s113
    %p124 = scmp.eq.s32.totalorder %s15, 0
    %p125 = por %p123, %p124
    %p126 = scmp.ne.s32.totalorder %s112, %s113
    %p127 = scmp.eq.s32.totalorder %s16, 1
    %p128 = por %p126, %p127
    %p130 = scmp.ne.s32.totalorder %s113, %s129
    %p131 = scmp.eq.s32.totalorder %s16, 0
    %p132 = por %p130, %p131
    %p133 = scmp.le.s32.totalorder 1, %s10
    %p134 = scmp.lt.s32.totalorder %s10, 3
    %p135 = pnand %p133, %p134
    %p136 = pneg %p135
    // Predicated region
    $region9: #{tpu_custom_call.1} parent=5 // pred_check
      _
    $region10: #{tpu_custom_call.1} parent=5 // pred_check_branch
      %138 = sbr.rel (%p135) target = $region12
    $region11: #{tpu_custom_call.1} parent=5 // pred_region
      %s139 = ssub.s32 %s10, 1
      // Predicated region
      $region13: #{tpu_custom_call.1} parent=11 // pred_check
        %p140 = pneg %p57
      $region14: #{tpu_custom_call.1} parent=11 // pred_check_branch
        %142 = sbr.rel (%p140) target = $region16
      $region15: #{tpu_custom_call.1} parent=11 // pred_region
        _
      $region16: #{tpu_custom_call.1} parent=11 // pred_fallthru
        _
      // Predicated region
      $region17: #{tpu_custom_call.1} parent=11 // pred_check
        %p143 = pneg %p78
      $region18: #{tpu_custom_call.1} parent=11 // pred_check_branch
        %145 = sbr.rel (%p143) target = $region20
      $region19: #{tpu_custom_call.1} parent=11 // pred_region
        _
      $region20: #{tpu_custom_call.1} parent=11 // pred_fallthru
        _
      // Predicated region
      $region21: #{tpu_custom_call.1} parent=11 // pred_check
        %p146 = pneg %p99
      $region22: #{tpu_custom_call.1} parent=11 // pred_check_branch
        %148 = sbr.rel (%p146) target = $region24
      $region23: #{tpu_custom_call.1} parent=11 // pred_region
        _
      $region24: #{tpu_custom_call.1} parent=11 // pred_fallthru
        _
    $region12: #{tpu_custom_call.1} parent=5 // pred_fallthru
      _
    %p149 = scmp.lt.s32.totalorder %s10, 2
    // Predicated region
    $region25: #{tpu_custom_call.1} parent=5 // pred_check
      %p150 = pneg %p149
    $region26: #{tpu_custom_call.1} parent=5 // pred_check_branch
      %152 = sbr.rel (%p150) target = $region28
    $region27: #{tpu_custom_call.1} parent=5 // pred_region
      // Predicated region
      $region29: #{tpu_custom_call.1} parent=27 // pred_check
        %p153 = pneg %p30
      $region30: #{tpu_custom_call.1} parent=27 // pred_check_branch
        %155 = sbr.rel (%p153) target = $region32
      $region31: #{tpu_custom_call.1} parent=27 // pred_region
        %p156 = scmp.lt.s32.totalorder %s10, 1
        %s157 = scalar_select %p156, %s10, 1
        %s158 = smul.addr %s157, 32
        %s159 = smul.addr %s158, 8
        %s160 = scalar_lea.vmem %s0, %s159
      $region32: #{tpu_custom_call.1} parent=27 // pred_fallthru
        _
    $region28: #{tpu_custom_call.1} parent=5 // pred_fallthru
      _
    %p161 = scmp.le.s32.totalorder 1, %s10
    %p162 = scmp.lt.s32.totalorder %s10, 3
    %p163 = pnand %p161, %p162
    %p164 = pneg %p163
    // Predicated region
    $region33: #{tpu_custom_call.1} parent=5 // pred_check
      _
    $region34: #{tpu_custom_call.1} parent=5 // pred_check_branch
      %166 = sbr.rel (%p163) target = $region36
    $region35: #{tpu_custom_call.1} parent=5 // pred_region
      %s167 = ssub.s32 %s10, 1
      %p168 = scmp.lt.s32.totalorder %s15, 1
      %s169 = scalar_select %p168, %s15, 1
      %s170 = smul.addr %s169, 32
      %s171 = smul.addr %s170, 8
      %s172 = scalar_lea.vmem %s0, %s171
      %p173 = pneg %p36
      %p174 = pneg %p33
      %p175 = pneg %p57
      %p176 = pneg %p54
      %p177 = pneg %p78
      %p178 = pneg %p75
      %p179 = pneg %p99
      %p180 = pneg %p96
      %p181 = pneg %p125
      %p182 = pneg %p122
      %p183 = scmp.lt.s32.totalorder %s15, 1
      %s184 = scalar_select %p183, %s15, 1
      %s185 = smul.addr %s184, 32
      %s186 = smul.addr %s185, 8
      %s187 = scalar_lea.vmem %s4, %s186
      %p188 = scmp.lt.s32.totalorder %s15, 1
      %s189 = scalar_select %p188, %s15, 1
      %s190 = smul.addr %s189, 32
      %s191 = smul.addr %s190, 8
      %s192 = scalar_lea.vmem %s0, %s191
      %p193 = scmp.lt.s32.totalorder %s15, 1
      %s194 = scalar_select %p193, %s15, 1
      %s195 = smul.addr %s194, 32
      %s196 = smul.addr %s195, 8
      %s197 = scalar_lea.vmem %s4, %s196
      %vm198 = vcmask 31744
      %199 = vst.msk [vmem:[#allocation2] sm:$0xff] %vm198, 0.0
      %200 = vst.msk [vmem:[#allocation2 + $0x8] sm:$0xff] %vm198, 0.0
      %vm201 = vcmask 27648
      %202 = vst.msk [vmem:[#allocation2 + $0x10] sm:$0xf] %vm201, 0.0
      %203 = vst.msk [vmem:[#allocation2 + $0x18] sm:$0xff] %vm198, 0.0
      %204 = vst.msk [vmem:[#allocation2 + $0x20] sm:$0xff] %vm198, 0.0
      %205 = vst.msk [vmem:[#allocation2 + $0x28] sm:$0xf] %vm201, 0.0
      %206 = vst.msk [vmem:[#allocation2 + $0x30] sm:$0xff] %vm198, 0.0
      %207 = vst.msk [vmem:[#allocation2 + $0x38] sm:$0xff] %vm198, 0.0
      %208 = vst.msk [vmem:[#allocation2 + $0x40] sm:$0xf] %vm201, 0.0
      %209 = vst.msk [vmem:[#allocation2 + $0x48] sm:$0xff] %vm198, 0.0
      %210 = vst.msk [vmem:[#allocation2 + $0x50] sm:$0xff] %vm198, 0.0
      %211 = vst.msk [vmem:[#allocation2 + $0x58] sm:$0xf] %vm201, 0.0
      %212 = vst.msk [vmem:[#allocation2 + $0x60] sm:$0xff] %vm198, 0.0
      %213 = vst.msk [vmem:[#allocation2 + $0x68] sm:$0xff] %vm198, 0.0
      %214 = vst.msk [vmem:[#allocation2 + $0x70] sm:$0xf] %vm201, 0.0
      %215 = vst.msk [vmem:[#allocation2 + $0x78] sm:$0xff] %vm198, 0.0
      %216 = vst.msk [vmem:[#allocation2 + $0x80] sm:$0xff] %vm198, 0.0
      %217 = vst.msk [vmem:[#allocation2 + $0x88] sm:$0xf] %vm201, 0.0
      %218 = vst.msk [vmem:[#allocation2 + $0x90] sm:$0xff] %vm198, 0.0
      %219 = vst.msk [vmem:[#allocation2 + $0x98] sm:$0xff] %vm198, 0.0
      %220 = vst.msk [vmem:[#allocation2 + $0xa0] sm:$0xf] %vm201, 0.0
      %221 = vst.msk [vmem:[#allocation2 + $0xa8] sm:$0xff] %vm198, 0.0
      %222 = vst.msk [vmem:[#allocation2 + $0xb0] sm:$0xff] %vm198, 0.0
      %223 = vst.msk [vmem:[#allocation2 + $0xb8] sm:$0xf] %vm201, 0.0
      %224 = vst.msk [vmem:[#allocation2 + $0xc0] sm:$0xff] %vm198, 0.0
      %225 = vst.msk [vmem:[#allocation2 + $0xc8] sm:$0xff] %vm198, 0.0
      %226 = vst.msk [vmem:[#allocation2 + $0xd0] sm:$0xf] %vm201, 0.0
      %227 = vst.msk [vmem:[#allocation2 + $0xd8] sm:$0xff] %vm198, 0.0
      %228 = vst.msk [vmem:[#allocation2 + $0xe0] sm:$0xff] %vm198, 0.0
      %229 = vst.msk [vmem:[#allocation2 + $0xe8] sm:$0xf] %vm201, 0.0
      %230 = vst.msk [vmem:[#allocation2 + $0xf0] sm:$0xff] %vm198, 0.0
      %231 = vst.msk [vmem:[#allocation2 + $0xf8] sm:$0xff] %vm198, 0.0
      %232 = vst.msk [vmem:[#allocation2 + $0x100] sm:$0xf] %vm201, 0.0
      %233 = vst.msk [vmem:[#allocation2 + $0x108] sm:$0xff] %vm198, 0.0
      %234 = vst.msk [vmem:[#allocation2 + $0x110] sm:$0xff] %vm198, 0.0
      %235 = vst.msk [vmem:[#allocation2 + $0x118] sm:$0xf] %vm201, 0.0
      %236 = vst.msk [vmem:[#allocation2 + $0x120] sm:$0xff] %vm198, 0.0
      %237 = vst.msk [vmem:[#allocation2 + $0x128] sm:$0xff] %vm198, 0.0
      %238 = vst.msk [vmem:[#allocation2 + $0x130] sm:$0xf] %vm201, 0.0
      %239 = vst.msk [vmem:[#allocation2 + $0x138] sm:$0xff] %vm198, 0.0
      %240 = vst.msk [vmem:[#allocation2 + $0x140] sm:$0xff] %vm198, 0.0
      %241 = vst.msk [vmem:[#allocation2 + $0x148] sm:$0xf] %vm201, 0.0
      %242 = vst.msk [vmem:[#allocation2 + $0x150] sm:$0xff] %vm198, 0.0
      %243 = vst.msk [vmem:[#allocation2 + $0x158] sm:$0xff] %vm198, 0.0
      %244 = vst.msk [vmem:[#allocation2 + $0x160] sm:$0xf] %vm201, 0.0
      %245 = vst.msk [vmem:[#allocation2 + $0x168] sm:$0xff] %vm198, 0.0
      %246 = vst.msk [vmem:[#allocation2 + $0x170] sm:$0xff] %vm198, 0.0
      %247 = vst.msk [vmem:[#allocation2 + $0x178] sm:$0xf] %vm201, 0.0
      %248 = vst.msk [vmem:[#allocation2 + $0x180] sm:$0xff] %vm198, 0.0
      %249 = vst.msk [vmem:[#allocation2 + $0x188] sm:$0xff] %vm198, 0.0
      %250 = vst.msk [vmem:[#allocation2 + $0x190] sm:$0xf] %vm201, 0.0
      %251 = vst.msk [vmem:[#allocation2 + $0x198] sm:$0xff] %vm198, 0.0
      %252 = vst.msk [vmem:[#allocation2 + $0x1a0] sm:$0xff] %vm198, 0.0
      %253 = vst.msk [vmem:[#allocation2 + $0x1a8] sm:$0xf] %vm201, 0.0
      %254 = vst.msk [vmem:[#allocation2 + $0x1b0] sm:$0xff] %vm198, 0.0
      %255 = vst.msk [vmem:[#allocation2 + $0x1b8] sm:$0xff] %vm198, 0.0
      %256 = vst.msk [vmem:[#allocation2 + $0x1c0] sm:$0xf] %vm201, 0.0
      %257 = vst.msk [vmem:[#allocation2 + $0x1c8] sm:$0xff] %vm198, 0.0
      %258 = vst.msk [vmem:[#allocation2 + $0x1d0] sm:$0xff] %vm198, 0.0
      %259 = vst.msk [vmem:[#allocation2 + $0x1d8] sm:$0xf] %vm201, 0.0
      %v260 = vld [vmem:[%s192] sm:$0xff]
      %v261 = vld [vmem:[%s192 + $0x8] sm:$0xff]
      %v262 = vld [vmem:[%s192 + $0x10] sm:$0xff]
      %v263 = vld [vmem:[%s192 + $0x18] sm:$0xff]
      %v264 = vld [vmem:[%s192 + $0x20] sm:$0xff]
      %v265 = vld [vmem:[%s192 + $0x28] sm:$0xff]
      %v266 = vld [vmem:[%s192 + $0x30] sm:$0xff]
      %v267 = vld [vmem:[%s192 + $0x38] sm:$0xff]
      %v268 = vld [vmem:[%s192 + $0x40] sm:$0xff]
      %v269 = vld [vmem:[%s192 + $0x48] sm:$0xff]
      %v270 = vld [vmem:[%s192 + $0x50] sm:$0xff]
      %v271 = vld [vmem:[%s192 + $0x58] sm:$0xff]
      %v272 = vld [vmem:[%s192 + $0x60] sm:$0xff]
      %v273 = vld [vmem:[%s192 + $0x68] sm:$0xff]
      %v274 = vld [vmem:[%s192 + $0x70] sm:$0xff]
      %v275 = vld [vmem:[%s192 + $0x78] sm:$0xff]
      %v276 = vld [vmem:[%s192 + $0x80] sm:$0xff]
      %v277 = vld [vmem:[%s192 + $0x88] sm:$0xff]
      %v278 = vld [vmem:[%s192 + $0x90] sm:$0xff]
      %v279 = vld [vmem:[%s192 + $0x98] sm:$0xff]
      %v280 = vld [vmem:[%s192 + $0xa0] sm:$0xff]
      %v281 = vld [vmem:[%s192 + $0xa8] sm:$0xff]
      %v282 = vld [vmem:[%s192 + $0xb0] sm:$0xff]
      %v283 = vld [vmem:[%s192 + $0xb8] sm:$0xff]
      %v284 = vld [vmem:[%s192 + $0xc0] sm:$0xff]
      %v285 = vld [vmem:[%s192 + $0xc8] sm:$0xff]
      %v286 = vld [vmem:[%s192 + $0xd0] sm:$0xff]
      %v287 = vld [vmem:[%s192 + $0xd8] sm:$0xff]
      %v288 = vld [vmem:[%s192 + $0xe0] sm:$0xff]
      %v289 = vld [vmem:[%s192 + $0xe8] sm:$0xff]
      %v290 = vld [vmem:[%s192 + $0xf0] sm:$0xff]
      %v291 = vld [vmem:[%s192 + $0xf8] sm:$0xff]
      %s292 = scalar_lea.vmem [#allocation2], 48
      %293 = vst.msk [vmem:[%s292 + $0x2] sm:$0xff] %vm198, %v260
      %294 = vst.msk [vmem:[%s292 + $0xa] sm:$0xff] %vm198, %v261
      %295 = vst.msk [vmem:[%s292 + $0x1a] sm:$0xff] %vm198, %v262
      %296 = vst.msk [vmem:[%s292 + $0x22] sm:$0xff] %vm198, %v263
      %297 = vst.msk [vmem:[%s292 + $0x32] sm:$0xff] %vm198, %v264
      %298 = vst.msk [vmem:[%s292 + $0x3a] sm:$0xff] %vm198, %v265
      %299 = vst.msk [vmem:[%s292 + $0x4a] sm:$0xff] %vm198, %v266
      %300 = vst.msk [vmem:[%s292 + $0x52] sm:$0xff] %vm198, %v267
      %301 = vst.msk [vmem:[%s292 + $0x62] sm:$0xff] %vm198, %v268
      %302 = vst.msk [vmem:[%s292 + $0x6a] sm:$0xff] %vm198, %v269
      %303 = vst.msk [vmem:[%s292 + $0x7a] sm:$0xff] %vm198, %v270
      %304 = vst.msk [vmem:[%s292 + $0x82] sm:$0xff] %vm198, %v271
      %305 = vst.msk [vmem:[%s292 + $0x92] sm:$0xff] %vm198, %v272
      %306 = vst.msk [vmem:[%s292 + $0x9a] sm:$0xff] %vm198, %v273
      %307 = vst.msk [vmem:[%s292 + $0xaa] sm:$0xff] %vm198, %v274
      %308 = vst.msk [vmem:[%s292 + $0xb2] sm:$0xff] %vm198, %v275
      %309 = vst.msk [vmem:[%s292 + $0xc2] sm:$0xff] %vm198, %v276
      %310 = vst.msk [vmem:[%s292 + $0xca] sm:$0xff] %vm198, %v277
      %311 = vst.msk [vmem:[%s292 + $0xda] sm:$0xff] %vm198, %v278
      %312 = vst.msk [vmem:[%s292 + $0xe2] sm:$0xff] %vm198, %v279
      %313 = vst.msk [vmem:[%s292 + $0xf2] sm:$0xff] %vm198, %v280
      %314 = vst.msk [vmem:[%s292 + $0xfa] sm:$0xff] %vm198, %v281
      %315 = vst.msk [vmem:[%s292 + $0x10a] sm:$0xff] %vm198, %v282
      %316 = vst.msk [vmem:[%s292 + $0x112] sm:$0xff] %vm198, %v283
      %317 = vst.msk [vmem:[%s292 + $0x122] sm:$0xff] %vm198, %v284
      %318 = vst.msk [vmem:[%s292 + $0x12a] sm:$0xff] %vm198, %v285
      %319 = vst.msk [vmem:[%s292 + $0x13a] sm:$0xff] %vm198, %v286
      %320 = vst.msk [vmem:[%s292 + $0x142] sm:$0xff] %vm198, %v287
      %321 = vst.msk [vmem:[%s292 + $0x152] sm:$0xff] %vm198, %v288
      %322 = vst.msk [vmem:[%s292 + $0x15a] sm:$0xff] %vm198, %v289
      %323 = vst.msk [vmem:[%s292 + $0x16a] sm:$0xff] %vm198, %v290
      %324 = vst.msk [vmem:[%s292 + $0x172] sm:$0xff] %vm198, %v291
      %v325 = vld [vmem:[%s1] sm:$0xff]
      %v326 = vld [vmem:[%s1 + $0x8] sm:$0xff]
      %v327 = vld [vmem:[%s1 + $0x10] sm:$0xff]
      %v328 = vld [vmem:[%s1 + $0x18] sm:$0x1]
      %v329 = vld [vmem:[%s2] sm:$0x1]
      %v330 = vld [vmem:[%s3] sm:$0x1]
      %v331 = vld [vmem:[#allocation2] sm:$0xff]
      %v332 = vld [vmem:[#allocation2 + $0x8] sm:$0xff]
      %v333 = vld [vmem:[#allocation2 + $0x18] sm:$0xff]
      %v334 = vld [vmem:[#allocation2 + $0x20] sm:$0xff]
      %v335 = vld [vmem:[#allocation2 + $0x30] sm:$0xff]
      %v336 = vld [vmem:[#allocation2 + $0x38] sm:$0xff]
      %v337 = vld [vmem:[#allocation2 + $0x48] sm:$0xff]
      %v338 = vld [vmem:[#allocation2 + $0x50] sm:$0xff]
      %v339 = vld [vmem:[#allocation2 + $0x60] sm:$0xff]
      %v340 = vld [vmem:[#allocation2 + $0x68] sm:$0xff]
      %v341 = vld [vmem:[#allocation2 + $0x78] sm:$0xff]
      %v342 = vld [vmem:[#allocation2 + $0x80] sm:$0xff]
      %v343 = vld [vmem:[#allocation2 + $0x90] sm:$0xff]
      %v344 = vld [vmem:[#allocation2 + $0x98] sm:$0xff]
      %v345 = vld [vmem:[#allocation2 + $0xa8] sm:$0xff]
      %v346 = vld [vmem:[#allocation2 + $0xb0] sm:$0xff]
      %v347 = vld [vmem:[#allocation2 + $0xc0] sm:$0xff]
      %v348 = vld [vmem:[#allocation2 + $0xc8] sm:$0xff]
      %v349 = vld [vmem:[#allocation2 + $0xd8] sm:$0xff]
      %v350 = vld [vmem:[#allocation2 + $0xe0] sm:$0xff]
      %v351 = vld [vmem:[#allocation2 + $0xf0] sm:$0xff]
      %v352 = vld [vmem:[#allocation2 + $0xf8] sm:$0xff]
      %v353 = vld [vmem:[#allocation2 + $0x108] sm:$0xff]
      %v354 = vld [vmem:[#allocation2 + $0x110] sm:$0xff]
      %v355 = vld [vmem:[#allocation2 + $0x120] sm:$0xff]
      %v356 = vld [vmem:[#allocation2 + $0x128] sm:$0xff]
      %v357 = vld [vmem:[#allocation2 + $0x138] sm:$0xff]
      %v358 = vld [vmem:[#allocation2 + $0x140] sm:$0xff]
      %v359 = vld [vmem:[#allocation2 + $0x150] sm:$0xff]
      %v360 = vld [vmem:[#allocation2 + $0x158] sm:$0xff]
      %v361 = vld [vmem:[#allocation2 + $0x168] sm:$0xff]
      %v362 = vld [vmem:[#allocation2 + $0x170] sm:$0xff]
      %v363 = vperm.slane %v325, 0
      %v364 = vmul.f32 %v331, %v363
      %v365 = vmul.f32 %v332, %v363
      %v366 = vmul.f32 %v333, %v363
      %v367 = vmul.f32 %v334, %v363
      %v368 = vmul.f32 %v335, %v363
      %v369 = vmul.f32 %v336, %v363
      %v370 = vmul.f32 %v337, %v363
      %v371 = vmul.f32 %v338, %v363
      %v372 = vmul.f32 %v339, %v363
      %v373 = vmul.f32 %v340, %v363
      %v374 = vmul.f32 %v341, %v363
      %v375 = vmul.f32 %v342, %v363
      %v376 = vmul.f32 %v343, %v363
      %v377 = vmul.f32 %v344, %v363
      %v378 = vmul.f32 %v345, %v363
      %v379 = vmul.f32 %v346, %v363
      %v380 = vmul.f32 %v347, %v363
      %v381 = vmul.f32 %v348, %v363
      %v382 = vmul.f32 %v349, %v363
      %v383 = vmul.f32 %v350, %v363
      %v384 = vmul.f32 %v351, %v363
      %v385 = vmul.f32 %v352, %v363
      %v386 = vmul.f32 %v353, %v363
      %v387 = vmul.f32 %v354, %v363
      %v388 = vmul.f32 %v355, %v363
      %v389 = vmul.f32 %v356, %v363
      %v390 = vmul.f32 %v357, %v363
      %v391 = vmul.f32 %v358, %v363
      %v392 = vmul.f32 %v359, %v363
      %v393 = vmul.f32 %v360, %v363
      %v394 = vmul.f32 %v361, %v363
      %v395 = vmul.f32 %v362, %v363
      %v396 = vadd.f32 %v364, 0.0
      %v397 = vadd.f32 %v365, 0.0
      %v398 = vadd.f32 %v366, 0.0
      %v399 = vadd.f32 %v367, 0.0
      %v400 = vadd.f32 %v368, 0.0
      %v401 = vadd.f32 %v369, 0.0
      %v402 = vadd.f32 %v370, 0.0
      %v403 = vadd.f32 %v371, 0.0
      %v404 = vadd.f32 %v372, 0.0
      %v405 = vadd.f32 %v373, 0.0
      %v406 = vadd.f32 %v374, 0.0
      %v407 = vadd.f32 %v375, 0.0
      %v408 = vadd.f32 %v376, 0.0
      %v409 = vadd.f32 %v377, 0.0
      %v410 = vadd.f32 %v378, 0.0
      %v411 = vadd.f32 %v379, 0.0
      %v412 = vadd.f32 %v380, 0.0
      %v413 = vadd.f32 %v381, 0.0
      %v414 = vadd.f32 %v382, 0.0
      %v415 = vadd.f32 %v383, 0.0
      %v416 = vadd.f32 %v384, 0.0
      %v417 = vadd.f32 %v385, 0.0
      %v418 = vadd.f32 %v386, 0.0
      %v419 = vadd.f32 %v387, 0.0
      %v420 = vadd.f32 %v388, 0.0
      %v421 = vadd.f32 %v389, 0.0
      %v422 = vadd.f32 %v390, 0.0
      %v423 = vadd.f32 %v391, 0.0
      %v424 = vadd.f32 %v392, 0.0
      %v425 = vadd.f32 %v393, 0.0
      %v426 = vadd.f32 %v394, 0.0
      %v427 = vadd.f32 %v395, 0.0
      %v428 = vld [vmem:[#allocation2 + $0x1] sm:$0xff]
      %v429 = vld [vmem:[#allocation2 + $0x9] sm:$0xff]
      %v430 = vld [vmem:[#allocation2 + $0x19] sm:$0xff]
      %v431 = vld [vmem:[#allocation2 + $0x21] sm:$0xff]
      %v432 = vld [vmem:[#allocation2 + $0x31] sm:$0xff]
      %v433 = vld [vmem:[#allocation2 + $0x39] sm:$0xff]
      %v434 = vld [vmem:[#allocation2 + $0x49] sm:$0xff]
      %v435 = vld [vmem:[#allocation2 + $0x51] sm:$0xff]
      %v436 = vld [vmem:[#allocation2 + $0x61] sm:$0xff]
      %v437 = vld [vmem:[#allocation2 + $0x69] sm:$0xff]
      %v438 = vld [vmem:[#allocation2 + $0x79] sm:$0xff]
      %v439 = vld [vmem:[#allocation2 + $0x81] sm:$0xff]
      %v440 = vld [vmem:[#allocation2 + $0x91] sm:$0xff]
      %v441 = vld [vmem:[#allocation2 + $0x99] sm:$0xff]
      %v442 = vld [vmem:[#allocation2 + $0xa9] sm:$0xff]
      %v443 = vld [vmem:[#allocation2 + $0xb1] sm:$0xff]
      %v444 = vld [vmem:[#allocation2 + $0xc1] sm:$0xff]
      %v445 = vld [vmem:[#allocation2 + $0xc9] sm:$0xff]
      %v446 = vld [vmem:[#allocation2 + $0xd9] sm:$0xff]
      %v447 = vld [vmem:[#allocation2 + $0xe1] sm:$0xff]
      %v448 = vld [vmem:[#allocation2 + $0xf1] sm:$0xff]
      %v449 = vld [vmem:[#allocation2 + $0xf9] sm:$0xff]
      %v450 = vld [vmem:[#allocation2 + $0x109] sm:$0xff]
      %v451 = vld [vmem:[#allocation2 + $0x111] sm:$0xff]
      %v452 = vld [vmem:[#allocation2 + $0x121] sm:$0xff]
      %v453 = vld [vmem:[#allocation2 + $0x129] sm:$0xff]
      %v454 = vld [vmem:[#allocation2 + $0x139] sm:$0xff]
      %v455 = vld [vmem:[#allocation2 + $0x141] sm:$0xff]
      %v456 = vld [vmem:[#allocation2 + $0x151] sm:$0xff]
      %v457 = vld [vmem:[#allocation2 + $0x159] sm:$0xff]
      %v458 = vld [vmem:[#allocation2 + $0x169] sm:$0xff]
      %v459 = vld [vmem:[#allocation2 + $0x171] sm:$0xff]
      %v460 = vperm.slane %v325, 1
      %v461 = vmul.f32 %v428, %v460
      %v462 = vmul.f32 %v429, %v460
      %v463 = vmul.f32 %v430, %v460
      %v464 = vmul.f32 %v431, %v460
      %v465 = vmul.f32 %v432, %v460
      %v466 = vmul.f32 %v433, %v460
      %v467 = vmul.f32 %v434, %v460
      %v468 = vmul.f32 %v435, %v460
      %v469 = vmul.f32 %v436, %v460
      %v470 = vmul.f32 %v437, %v460
      %v471 = vmul.f32 %v438, %v460
      %v472 = vmul.f32 %v439, %v460
      %v473 = vmul.f32 %v440, %v460
      %v474 = vmul.f32 %v441, %v460
      %v475 = vmul.f32 %v442, %v460
      %v476 = vmul.f32 %v443, %v460
      %v477 = vmul.f32 %v444, %v460
      %v478 = vmul.f32 %v445, %v460
      %v479 = vmul.f32 %v446, %v460
      %v480 = vmul.f32 %v447, %v460
      %v481 = vmul.f32 %v448, %v460
      %v482 = vmul.f32 %v449, %v460
      %v483 = vmul.f32 %v450, %v460
      %v484 = vmul.f32 %v451, %v460
      %v485 = vmul.f32 %v452, %v460
      %v486 = vmul.f32 %v453, %v460
      %v487 = vmul.f32 %v454, %v460
      %v488 = vmul.f32 %v455, %v460
      %v489 = vmul.f32 %v456, %v460
      %v490 = vmul.f32 %v457, %v460
      %v491 = vmul.f32 %v458, %v460
      %v492 = vmul.f32 %v459, %v460
      %v493 = vadd.f32 %v396, %v461
      %v494 = vadd.f32 %v397, %v462
      %v495 = vadd.f32 %v398, %v463
      %v496 = vadd.f32 %v399, %v464
      %v497 = vadd.f32 %v400, %v465
      %v498 = vadd.f32 %v401, %v466
      %v499 = vadd.f32 %v402, %v467
      %v500 = vadd.f32 %v403, %v468
      %v501 = vadd.f32 %v404, %v469
      %v502 = vadd.f32 %v405, %v470
      %v503 = vadd.f32 %v406, %v471
      %v504 = vadd.f32 %v407, %v472
      %v505 = vadd.f32 %v408, %v473
      %v506 = vadd.f32 %v409, %v474
      %v507 = vadd.f32 %v410, %v475
      %v508 = vadd.f32 %v411, %v476
      %v509 = vadd.f32 %v412, %v477
      %v510 = vadd.f32 %v413, %v478
      %v511 = vadd.f32 %v414, %v479
      %v512 = vadd.f32 %v415, %v480
      %v513 = vadd.f32 %v416, %v481
      %v514 = vadd.f32 %v417, %v482
      %v515 = vadd.f32 %v418, %v483
      %v516 = vadd.f32 %v419, %v484
      %v517 = vadd.f32 %v420, %v485
      %v518 = vadd.f32 %v421, %v486
      %v519 = vadd.f32 %v422, %v487
      %v520 = vadd.f32 %v423, %v488
      %v521 = vadd.f32 %v424, %v489
      %v522 = vadd.f32 %v425, %v490
      %v523 = vadd.f32 %v426, %v491
      %v524 = vadd.f32 %v427, %v492
      %v525 = vld [vmem:[#allocation2 + $0x2] sm:$0xff]
      %v526 = vld [vmem:[#allocation2 + $0xa] sm:$0xff]
      %v527 = vld [vmem:[#allocation2 + $0x1a] sm:$0xff]
      %v528 = vld [vmem:[#allocation2 + $0x22] sm:$0xff]
      %v529 = vld [vmem:[#allocation2 + $0x32] sm:$0xff]
      %v530 = vld [vmem:[#allocation2 + $0x3a] sm:$0xff]
      %v531 = vld [vmem:[#allocation2 + $0x4a] sm:$0xff]
      %v532 = vld [vmem:[#allocation2 + $0x52] sm:$0xff]
      %v533 = vld [vmem:[#allocation2 + $0x62] sm:$0xff]
      %v534 = vld [vmem:[#allocation2 + $0x6a] sm:$0xff]
      %v535 = vld [vmem:[#allocation2 + $0x7a] sm:$0xff]
      %v536 = vld [vmem:[#allocation2 + $0x82] sm:$0xff]
      %v537 = vld [vmem:[#allocation2 + $0x92] sm:$0xff]
      %v538 = vld [vmem:[#allocation2 + $0x9a] sm:$0xff]
      %v539 = vld [vmem:[#allocation2 + $0xaa] sm:$0xff]
      %v540 = vld [vmem:[#allocation2 + $0xb2] sm:$0xff]
      %v541 = vld [vmem:[#allocation2 + $0xc2] sm:$0xff]
      %v542 = vld [vmem:[#allocation2 + $0xca] sm:$0xff]
      %v543 = vld [vmem:[#allocation2 + $0xda] sm:$0xff]
      %v544 = vld [vmem:[#allocation2 + $0xe2] sm:$0xff]
      %v545 = vld [vmem:[#allocation2 + $0xf2] sm:$0xff]
      %v546 = vld [vmem:[#allocation2 + $0xfa] sm:$0xff]
      %v547 = vld [vmem:[#allocation2 + $0x10a] sm:$0xff]
      %v548 = vld [vmem:[#allocation2 + $0x112] sm:$0xff]
      %v549 = vld [vmem:[#allocation2 + $0x122] sm:$0xff]
      %v550 = vld [vmem:[#allocation2 + $0x12a] sm:$0xff]
      %v551 = vld [vmem:[#allocation2 + $0x13a] sm:$0xff]
      %v552 = vld [vmem:[#allocation2 + $0x142] sm:$0xff]
      %v553 = vld [vmem:[#allocation2 + $0x152] sm:$0xff]
      %v554 = vld [vmem:[#allocation2 + $0x15a] sm:$0xff]
      %v555 = vld [vmem:[#allocation2 + $0x16a] sm:$0xff]
      %v556 = vld [vmem:[#allocation2 + $0x172] sm:$0xff]
      %v557 = vperm.slane %v325, 2
      %v558 = vmul.f32 %v525, %v557
      %v559 = vmul.f32 %v526, %v557
      %v560 = vmul.f32 %v527, %v557
      %v561 = vmul.f32 %v528, %v557
      %v562 = vmul.f32 %v529, %v557
      %v563 = vmul.f32 %v530, %v557
      %v564 = vmul.f32 %v531, %v557
      %v565 = vmul.f32 %v532, %v557
      %v566 = vmul.f32 %v533, %v557
      %v567 = vmul.f32 %v534, %v557
      %v568 = vmul.f32 %v535, %v557
      %v569 = vmul.f32 %v536, %v557
      %v570 = vmul.f32 %v537, %v557
      %v571 = vmul.f32 %v538, %v557
      %v572 = vmul.f32 %v539, %v557
      %v573 = vmul.f32 %v540, %v557
      %v574 = vmul.f32 %v541, %v557
      %v575 = vmul.f32 %v542, %v557
      %v576 = vmul.f32 %v543, %v557
      %v577 = vmul.f32 %v544, %v557
      %v578 = vmul.f32 %v545, %v557
      %v579 = vmul.f32 %v546, %v557
      %v580 = vmul.f32 %v547, %v557
      %v581 = vmul.f32 %v548, %v557
      %v582 = vmul.f32 %v549, %v557
      %v583 = vmul.f32 %v550, %v557
      %v584 = vmul.f32 %v551, %v557
      %v585 = vmul.f32 %v552, %v557
      %v586 = vmul.f32 %v553, %v557
      %v587 = vmul.f32 %v554, %v557
      %v588 = vmul.f32 %v555, %v557
      %v589 = vmul.f32 %v556, %v557
      %v590 = vadd.f32 %v493, %v558
      %v591 = vadd.f32 %v494, %v559
      %v592 = vadd.f32 %v495, %v560
      %v593 = vadd.f32 %v496, %v561
      %v594 = vadd.f32 %v497, %v562
      %v595 = vadd.f32 %v498, %v563
      %v596 = vadd.f32 %v499, %v564
      %v597 = vadd.f32 %v500, %v565
      %v598 = vadd.f32 %v501, %v566
      %v599 = vadd.f32 %v502, %v567
      %v600 = vadd.f32 %v503, %v568
      %v601 = vadd.f32 %v504, %v569
      %v602 = vadd.f32 %v505, %v570
      %v603 = vadd.f32 %v506, %v571
      %v604 = vadd.f32 %v507, %v572
      %v605 = vadd.f32 %v508, %v573
      %v606 = vadd.f32 %v509, %v574
      %v607 = vadd.f32 %v510, %v575
      %v608 = vadd.f32 %v511, %v576
      %v609 = vadd.f32 %v512, %v577
      %v610 = vadd.f32 %v513, %v578
      %v611 = vadd.f32 %v514, %v579
      %v612 = vadd.f32 %v515, %v580
      %v613 = vadd.f32 %v516, %v581
      %v614 = vadd.f32 %v517, %v582
      %v615 = vadd.f32 %v518, %v583
      %v616 = vadd.f32 %v519, %v584
      %v617 = vadd.f32 %v520, %v585
      %v618 = vadd.f32 %v521, %v586
      %v619 = vadd.f32 %v522, %v587
      %v620 = vadd.f32 %v523, %v588
      %v621 = vadd.f32 %v524, %v589
      %v622 = vld [vmem:[#allocation2 + $0x3] sm:$0xff]
      %v623 = vld [vmem:[#allocation2 + $0xb] sm:$0xff]
      %v624 = vld [vmem:[#allocation2 + $0x1b] sm:$0xff]
      %v625 = vld [vmem:[#allocation2 + $0x23] sm:$0xff]
      %v626 = vld [vmem:[#allocation2 + $0x33] sm:$0xff]
      %v627 = vld [vmem:[#allocation2 + $0x3b] sm:$0xff]
      %v628 = vld [vmem:[#allocation2 + $0x4b] sm:$0xff]
      %v629 = vld [vmem:[#allocation2 + $0x53] sm:$0xff]
      %v630 = vld [vmem:[#allocation2 + $0x63] sm:$0xff]
      %v631 = vld [vmem:[#allocation2 + $0x6b] sm:$0xff]
      %v632 = vld [vmem:[#allocation2 + $0x7b] sm:$0xff]
      %v633 = vld [vmem:[#allocation2 + $0x83] sm:$0xff]
      %v634 = vld [vmem:[#allocation2 + $0x93] sm:$0xff]
      %v635 = vld [vmem:[#allocation2 + $0x9b] sm:$0xff]
      %v636 = vld [vmem:[#allocation2 + $0xab] sm:$0xff]
      %v637 = vld [vmem:[#allocation2 + $0xb3] sm:$0xff]
      %v638 = vld [vmem:[#allocation2 + $0xc3] sm:$0xff]
      %v639 = vld [vmem:[#allocation2 + $0xcb] sm:$0xff]
      %v640 = vld [vmem:[#allocation2 + $0xdb] sm:$0xff]
      %v641 = vld [vmem:[#allocation2 + $0xe3] sm:$0xff]
      %v642 = vld [vmem:[#allocation2 + $0xf3] sm:$0xff]
      %v643 = vld [vmem:[#allocation2 + $0xfb] sm:$0xff]
      %v644 = vld [vmem:[#allocation2 + $0x10b] sm:$0xff]
      %v645 = vld [vmem:[#allocation2 + $0x113] sm:$0xff]
      %v646 = vld [vmem:[#allocation2 + $0x123] sm:$0xff]
      %v647 = vld [vmem:[#allocation2 + $0x12b] sm:$0xff]
      %v648 = vld [vmem:[#allocation2 + $0x13b] sm:$0xff]
      %v649 = vld [vmem:[#allocation2 + $0x143] sm:$0xff]
      %v650 = vld [vmem:[#allocation2 + $0x153] sm:$0xff]
      %v651 = vld [vmem:[#allocation2 + $0x15b] sm:$0xff]
      %v652 = vld [vmem:[#allocation2 + $0x16b] sm:$0xff]
      %v653 = vld [vmem:[#allocation2 + $0x173] sm:$0xff]
      %v654 = vperm.slane %v325, 3
      %v655 = vmul.f32 %v622, %v654
      %v656 = vmul.f32 %v623, %v654
      %v657 = vmul.f32 %v624, %v654
      %v658 = vmul.f32 %v625, %v654
      %v659 = vmul.f32 %v626, %v654
      %v660 = vmul.f32 %v627, %v654
      %v661 = vmul.f32 %v628, %v654
      %v662 = vmul.f32 %v629, %v654
      %v663 = vmul.f32 %v630, %v654
      %v664 = vmul.f32 %v631, %v654
      %v665 = vmul.f32 %v632, %v654
      %v666 = vmul.f32 %v633, %v654
      %v667 = vmul.f32 %v634, %v654
      %v668 = vmul.f32 %v635, %v654
      %v669 = vmul.f32 %v636, %v654
      %v670 = vmul.f32 %v637, %v654
      %v671 = vmul.f32 %v638, %v654
      %v672 = vmul.f32 %v639, %v654
      %v673 = vmul.f32 %v640, %v654
      %v674 = vmul.f32 %v641, %v654
      %v675 = vmul.f32 %v642, %v654
      %v676 = vmul.f32 %v643, %v654
      %v677 = vmul.f32 %v644, %v654
      %v678 = vmul.f32 %v645, %v654
      %v679 = vmul.f32 %v646, %v654
      %v680 = vmul.f32 %v647, %v654
      %v681 = vmul.f32 %v648, %v654
      %v682 = vmul.f32 %v649, %v654
      %v683 = vmul.f32 %v650, %v654
      %v684 = vmul.f32 %v651, %v654
      %v685 = vmul.f32 %v652, %v654
      %v686 = vmul.f32 %v653, %v654
      %v687 = vadd.f32 %v590, %v655
      %v688 = vadd.f32 %v591, %v656
      %v689 = vadd.f32 %v592, %v657
      %v690 = vadd.f32 %v593, %v658
      %v691 = vadd.f32 %v594, %v659
      %v692 = vadd.f32 %v595, %v660
      %v693 = vadd.f32 %v596, %v661
      %v694 = vadd.f32 %v597, %v662
      %v695 = vadd.f32 %v598, %v663
      %v696 = vadd.f32 %v599, %v664
      %v697 = vadd.f32 %v600, %v665
      %v698 = vadd.f32 %v601, %v666
      %v699 = vadd.f32 %v602, %v667
      %v700 = vadd.f32 %v603, %v668
      %v701 = vadd.f32 %v604, %v669
      %v702 = vadd.f32 %v605, %v670
      %v703 = vadd.f32 %v606, %v671
      %v704 = vadd.f32 %v607, %v672
      %v705 = vadd.f32 %v608, %v673
      %v706 = vadd.f32 %v609, %v674
      %v707 = vadd.f32 %v610, %v675
      %v708 = vadd.f32 %v611, %v676
      %v709 = vadd.f32 %v612, %v677
      %v710 = vadd.f32 %v613, %v678
      %v711 = vadd.f32 %v614, %v679
      %v712 = vadd.f32 %v615, %v680
      %v713 = vadd.f32 %v616, %v681
      %v714 = vadd.f32 %v617, %v682
      %v715 = vadd.f32 %v618, %v683
      %v716 = vadd.f32 %v619, %v684
      %v717 = vadd.f32 %v620, %v685
      %v718 = vadd.f32 %v621, %v686
      %v719 = vld [vmem:[#allocation2 + $0x4] sm:$0xff]
      %v720 = vld [vmem:[#allocation2 + $0xc] sm:$0xff]
      %v721 = vld [vmem:[#allocation2 + $0x1c] sm:$0xff]
      %v722 = vld [vmem:[#allocation2 + $0x24] sm:$0xff]
      %v723 = vld [vmem:[#allocation2 + $0x34] sm:$0xff]
      %v724 = vld [vmem:[#allocation2 + $0x3c] sm:$0xff]
      %v725 = vld [vmem:[#allocation2 + $0x4c] sm:$0xff]
      %v726 = vld [vmem:[#allocation2 + $0x54] sm:$0xff]
      %v727 = vld [vmem:[#allocation2 + $0x64] sm:$0xff]
      %v728 = vld [vmem:[#allocation2 + $0x6c] sm:$0xff]
      %v729 = vld [vmem:[#allocation2 + $0x7c] sm:$0xff]
      %v730 = vld [vmem:[#allocation2 + $0x84] sm:$0xff]
      %v731 = vld [vmem:[#allocation2 + $0x94] sm:$0xff]
      %v732 = vld [vmem:[#allocation2 + $0x9c] sm:$0xff]
      %v733 = vld [vmem:[#allocation2 + $0xac] sm:$0xff]
      %v734 = vld [vmem:[#allocation2 + $0xb4] sm:$0xff]
      %v735 = vld [vmem:[#allocation2 + $0xc4] sm:$0xff]
      %v736 = vld [vmem:[#allocation2 + $0xcc] sm:$0xff]
      %v737 = vld [vmem:[#allocation2 + $0xdc] sm:$0xff]
      %v738 = vld [vmem:[#allocation2 + $0xe4] sm:$0xff]
      %v739 = vld [vmem:[#allocation2 + $0xf4] sm:$0xff]
      %v740 = vld [vmem:[#allocation2 + $0xfc] sm:$0xff]
      %v741 = vld [vmem:[#allocation2 + $0x10c] sm:$0xff]
      %v742 = vld [vmem:[#allocation2 + $0x114] sm:$0xff]
      %v743 = vld [vmem:[#allocation2 + $0x124] sm:$0xff]
      %v744 = vld [vmem:[#allocation2 + $0x12c] sm:$0xff]
      %v745 = vld [vmem:[#allocation2 + $0x13c] sm:$0xff]
      %v746 = vld [vmem:[#allocation2 + $0x144] sm:$0xff]
      %v747 = vld [vmem:[#allocation2 + $0x154] sm:$0xff]
      %v748 = vld [vmem:[#allocation2 + $0x15c] sm:$0xff]
      %v749 = vld [vmem:[#allocation2 + $0x16c] sm:$0xff]
      %v750 = vld [vmem:[#allocation2 + $0x174] sm:$0xff]
      %v751 = vperm.slane %v325, 4
      %v752 = vmul.f32 %v719, %v751
      %v753 = vmul.f32 %v720, %v751
      %v754 = vmul.f32 %v721, %v751
      %v755 = vmul.f32 %v722, %v751
      %v756 = vmul.f32 %v723, %v751
      %v757 = vmul.f32 %v724, %v751
      %v758 = vmul.f32 %v725, %v751
      %v759 = vmul.f32 %v726, %v751
      %v760 = vmul.f32 %v727, %v751
      %v761 = vmul.f32 %v728, %v751
      %v762 = vmul.f32 %v729, %v751
      %v763 = vmul.f32 %v730, %v751
      %v764 = vmul.f32 %v731, %v751
      %v765 = vmul.f32 %v732, %v751
      %v766 = vmul.f32 %v733, %v751
      %v767 = vmul.f32 %v734, %v751
      %v768 = vmul.f32 %v735, %v751
      %v769 = vmul.f32 %v736, %v751
      %v770 = vmul.f32 %v737, %v751
      %v771 = vmul.f32 %v738, %v751
      %v772 = vmul.f32 %v739, %v751
      %v773 = vmul.f32 %v740, %v751
      %v774 = vmul.f32 %v741, %v751
      %v775 = vmul.f32 %v742, %v751
      %v776 = vmul.f32 %v743, %v751
      %v777 = vmul.f32 %v744, %v751
      %v778 = vmul.f32 %v745, %v751
      %v779 = vmul.f32 %v746, %v751
      %v780 = vmul.f32 %v747, %v751
      %v781 = vmul.f32 %v748, %v751
      %v782 = vmul.f32 %v749, %v751
      %v783 = vmul.f32 %v750, %v751
      %v784 = vadd.f32 %v687, %v752
      %v785 = vadd.f32 %v688, %v753
      %v786 = vadd.f32 %v689, %v754
      %v787 = vadd.f32 %v690, %v755
      %v788 = vadd.f32 %v691, %v756
      %v789 = vadd.f32 %v692, %v757
      %v790 = vadd.f32 %v693, %v758
      %v791 = vadd.f32 %v694, %v759
      %v792 = vadd.f32 %v695, %v760
      %v793 = vadd.f32 %v696, %v761
      %v794 = vadd.f32 %v697, %v762
      %v795 = vadd.f32 %v698, %v763
      %v796 = vadd.f32 %v699, %v764
      %v797 = vadd.f32 %v700, %v765
      %v798 = vadd.f32 %v701, %v766
      %v799 = vadd.f32 %v702, %v767
      %v800 = vadd.f32 %v703, %v768
      %v801 = vadd.f32 %v704, %v769
      %v802 = vadd.f32 %v705, %v770
      %v803 = vadd.f32 %v706, %v771
      %v804 = vadd.f32 %v707, %v772
      %v805 = vadd.f32 %v708, %v773
      %v806 = vadd.f32 %v709, %v774
      %v807 = vadd.f32 %v710, %v775
      %v808 = vadd.f32 %v711, %v776
      %v809 = vadd.f32 %v712, %v777
      %v810 = vadd.f32 %v713, %v778
      %v811 = vadd.f32 %v714, %v779
      %v812 = vadd.f32 %v715, %v780
      %v813 = vadd.f32 %v716, %v781
      %v814 = vadd.f32 %v717, %v782
      %v815 = vadd.f32 %v718, %v783
      %s816 = scalar_lea.vmem [#allocation2], 24
      %v817 = vld [vmem:[%s816] sm:$0xff]
      %v818 = vld [vmem:[%s816 + $0x8] sm:$0xff]
      %v819 = vld [vmem:[%s816 + $0x18] sm:$0xff]
      %v820 = vld [vmem:[%s816 + $0x20] sm:$0xff]
      %v821 = vld [vmem:[%s816 + $0x30] sm:$0xff]
      %v822 = vld [vmem:[%s816 + $0x38] sm:$0xff]
      %v823 = vld [vmem:[%s816 + $0x48] sm:$0xff]
      %v824 = vld [vmem:[%s816 + $0x50] sm:$0xff]
      %v825 = vld [vmem:[%s816 + $0x60] sm:$0xff]
      %v826 = vld [vmem:[%s816 + $0x68] sm:$0xff]
      %v827 = vld [vmem:[%s816 + $0x78] sm:$0xff]
      %v828 = vld [vmem:[%s816 + $0x80] sm:$0xff]
      %v829 = vld [vmem:[%s816 + $0x90] sm:$0xff]
      %v830 = vld [vmem:[%s816 + $0x98] sm:$0xff]
      %v831 = vld [vmem:[%s816 + $0xa8] sm:$0xff]
      %v832 = vld [vmem:[%s816 + $0xb0] sm:$0xff]
      %v833 = vld [vmem:[%s816 + $0xc0] sm:$0xff]
      %v834 = vld [vmem:[%s816 + $0xc8] sm:$0xff]
      %v835 = vld [vmem:[%s816 + $0xd8] sm:$0xff]
      %v836 = vld [vmem:[%s816 + $0xe0] sm:$0xff]
      %v837 = vld [vmem:[%s816 + $0xf0] sm:$0xff]
      %v838 = vld [vmem:[%s816 + $0xf8] sm:$0xff]
      %v839 = vld [vmem:[%s816 + $0x108] sm:$0xff]
      %v840 = vld [vmem:[%s816 + $0x110] sm:$0xff]
      %v841 = vld [vmem:[%s816 + $0x120] sm:$0xff]
      %v842 = vld [vmem:[%s816 + $0x128] sm:$0xff]
      %v843 = vld [vmem:[%s816 + $0x138] sm:$0xff]
      %v844 = vld [vmem:[%s816 + $0x140] sm:$0xff]
      %v845 = vld [vmem:[%s816 + $0x150] sm:$0xff]
      %v846 = vld [vmem:[%s816 + $0x158] sm:$0xff]
      %v847 = vld [vmem:[%s816 + $0x168] sm:$0xff]
      %v848 = vld [vmem:[%s816 + $0x170] sm:$0xff]
      %v849 = vperm.slane %v325, 5
      %v850 = vmul.f32 %v817, %v849
      %v851 = vmul.f32 %v818, %v849
      %v852 = vmul.f32 %v819, %v849
      %v853 = vmul.f32 %v820, %v849
      %v854 = vmul.f32 %v821, %v849
      %v855 = vmul.f32 %v822, %v849
      %v856 = vmul.f32 %v823, %v849
      %v857 = vmul.f32 %v824, %v849
      %v858 = vmul.f32 %v825, %v849
      %v859 = vmul.f32 %v826, %v849
      %v860 = vmul.f32 %v827, %v849
      %v861 = vmul.f32 %v828, %v849
      %v862 = vmul.f32 %v829, %v849
      %v863 = vmul.f32 %v830, %v849
      %v864 = vmul.f32 %v831, %v849
      %v865 = vmul.f32 %v832, %v849
      %v866 = vmul.f32 %v833, %v849
      %v867 = vmul.f32 %v834, %v849
      %v868 = vmul.f32 %v835, %v849
      %v869 = vmul.f32 %v836, %v849
      %v870 = vmul.f32 %v837, %v849
      %v871 = vmul.f32 %v838, %v849
      %v872 = vmul.f32 %v839, %v849
      %v873 = vmul.f32 %v840, %v849
      %v874 = vmul.f32 %v841, %v849
      %v875 = vmul.f32 %v842, %v849
      %v876 = vmul.f32 %v843, %v849
      %v877 = vmul.f32 %v844, %v849
      %v878 = vmul.f32 %v845, %v849
      %v879 = vmul.f32 %v846, %v849
      %v880 = vmul.f32 %v847, %v849
      %v881 = vmul.f32 %v848, %v849
      %v882 = vadd.f32 %v784, %v850
      %v883 = vadd.f32 %v785, %v851
      %v884 = vadd.f32 %v786, %v852
      %v885 = vadd.f32 %v787, %v853
      %v886 = vadd.f32 %v788, %v854
      %v887 = vadd.f32 %v789, %v855
      %v888 = vadd.f32 %v790, %v856
      %v889 = vadd.f32 %v791, %v857
      %v890 = vadd.f32 %v792, %v858
      %v891 = vadd.f32 %v793, %v859
      %v892 = vadd.f32 %v794, %v860
      %v893 = vadd.f32 %v795, %v861
      %v894 = vadd.f32 %v796, %v862
      %v895 = vadd.f32 %v797, %v863
      %v896 = vadd.f32 %v798, %v864
      %v897 = vadd.f32 %v799, %v865
      %v898 = vadd.f32 %v800, %v866
      %v899 = vadd.f32 %v801, %v867
      %v900 = vadd.f32 %v802, %v868
      %v901 = vadd.f32 %v803, %v869
      %v902 = vadd.f32 %v804, %v870
      %v903 = vadd.f32 %v805, %v871
      %v904 = vadd.f32 %v806, %v872
      %v905 = vadd.f32 %v807, %v873
      %v906 = vadd.f32 %v808, %v874
      %v907 = vadd.f32 %v809, %v875
      %v908 = vadd.f32 %v810, %v876
      %v909 = vadd.f32 %v811, %v877
      %v910 = vadd.f32 %v812, %v878
      %v911 = vadd.f32 %v813, %v879
      %v912 = vadd.f32 %v814, %v880
      %v913 = vadd.f32 %v815, %v881
      %v914 = vld [vmem:[%s816 + $0x1] sm:$0xff]
      %v915 = vld [vmem:[%s816 + $0x9] sm:$0xff]
      %v916 = vld [vmem:[%s816 + $0x19] sm:$0xff]
      %v917 = vld [vmem:[%s816 + $0x21] sm:$0xff]
      %v918 = vld [vmem:[%s816 + $0x31] sm:$0xff]
      %v919 = vld [vmem:[%s816 + $0x39] sm:$0xff]
      %v920 = vld [vmem:[%s816 + $0x49] sm:$0xff]
      %v921 = vld [vmem:[%s816 + $0x51] sm:$0xff]
      %v922 = vld [vmem:[%s816 + $0x61] sm:$0xff]
      %v923 = vld [vmem:[%s816 + $0x69] sm:$0xff]
      %v924 = vld [vmem:[%s816 + $0x79] sm:$0xff]
      %v925 = vld [vmem:[%s816 + $0x81] sm:$0xff]
      %v926 = vld [vmem:[%s816 + $0x91] sm:$0xff]
      %v927 = vld [vmem:[%s816 + $0x99] sm:$0xff]
      %v928 = vld [vmem:[%s816 + $0xa9] sm:$0xff]
      %v929 = vld [vmem:[%s816 + $0xb1] sm:$0xff]
      %v930 = vld [vmem:[%s816 + $0xc1] sm:$0xff]
      %v931 = vld [vmem:[%s816 + $0xc9] sm:$0xff]
      %v932 = vld [vmem:[%s816 + $0xd9] sm:$0xff]
      %v933 = vld [vmem:[%s816 + $0xe1] sm:$0xff]
      %v934 = vld [vmem:[%s816 + $0xf1] sm:$0xff]
      %v935 = vld [vmem:[%s816 + $0xf9] sm:$0xff]
      %v936 = vld [vmem:[%s816 + $0x109] sm:$0xff]
      %v937 = vld [vmem:[%s816 + $0x111] sm:$0xff]
      %v938 = vld [vmem:[%s816 + $0x121] sm:$0xff]
      %v939 = vld [vmem:[%s816 + $0x129] sm:$0xff]
      %v940 = vld [vmem:[%s816 + $0x139] sm:$0xff]
      %v941 = vld [vmem:[%s816 + $0x141] sm:$0xff]
      %v942 = vld [vmem:[%s816 + $0x151] sm:$0xff]
      %v943 = vld [vmem:[%s816 + $0x159] sm:$0xff]
      %v944 = vld [vmem:[%s816 + $0x169] sm:$0xff]
      %v945 = vld [vmem:[%s816 + $0x171] sm:$0xff]
      %v946 = vperm.slane %v325, 6
      %v947 = vmul.f32 %v914, %v946
      %v948 = vmul.f32 %v915, %v946
      %v949 = vmul.f32 %v916, %v946
      %v950 = vmul.f32 %v917, %v946
      %v951 = vmul.f32 %v918, %v946
      %v952 = vmul.f32 %v919, %v946
      %v953 = vmul.f32 %v920, %v946
      %v954 = vmul.f32 %v921, %v946
      %v955 = vmul.f32 %v922, %v946
      %v956 = vmul.f32 %v923, %v946
      %v957 = vmul.f32 %v924, %v946
      %v958 = vmul.f32 %v925, %v946
      %v959 = vmul.f32 %v926, %v946
      %v960 = vmul.f32 %v927, %v946
      %v961 = vmul.f32 %v928, %v946
      %v962 = vmul.f32 %v929, %v946
      %v963 = vmul.f32 %v930, %v946
      %v964 = vmul.f32 %v931, %v946
      %v965 = vmul.f32 %v932, %v946
      %v966 = vmul.f32 %v933, %v946
      %v967 = vmul.f32 %v934, %v946
      %v968 = vmul.f32 %v935, %v946
      %v969 = vmul.f32 %v936, %v946
      %v970 = vmul.f32 %v937, %v946
      %v971 = vmul.f32 %v938, %v946
      %v972 = vmul.f32 %v939, %v946
      %v973 = vmul.f32 %v940, %v946
      %v974 = vmul.f32 %v941, %v946
      %v975 = vmul.f32 %v942, %v946
      %v976 = vmul.f32 %v943, %v946
      %v977 = vmul.f32 %v944, %v946
      %v978 = vmul.f32 %v945, %v946
      %v979 = vadd.f32 %v882, %v947
      %v980 = vadd.f32 %v883, %v948
      %v981 = vadd.f32 %v884, %v949
      %v982 = vadd.f32 %v885, %v950
      %v983 = vadd.f32 %v886, %v951
      %v984 = vadd.f32 %v887, %v952
      %v985 = vadd.f32 %v888, %v953
      %v986 = vadd.f32 %v889, %v954
      %v987 = vadd.f32 %v890, %v955
      %v988 = vadd.f32 %v891, %v956
      %v989 = vadd.f32 %v892, %v957
      %v990 = vadd.f32 %v893, %v958
      %v991 = vadd.f32 %v894, %v959
      %v992 = vadd.f32 %v895, %v960
      %v993 = vadd.f32 %v896, %v961
      %v994 = vadd.f32 %v897, %v962
      %v995 = vadd.f32 %v898, %v963
      %v996 = vadd.f32 %v899, %v964
      %v997 = vadd.f32 %v900, %v965
      %v998 = vadd.f32 %v901, %v966
      %v999 = vadd.f32 %v902, %v967
      %v1000 = vadd.f32 %v903, %v968
      %v1001 = vadd.f32 %v904, %v969
      %v1002 = vadd.f32 %v905, %v970
      %v1003 = vadd.f32 %v906, %v971
      %v1004 = vadd.f32 %v907, %v972
      %v1005 = vadd.f32 %v908, %v973
      %v1006 = vadd.f32 %v909, %v974
      %v1007 = vadd.f32 %v910, %v975
      %v1008 = vadd.f32 %v911, %v976
      %v1009 = vadd.f32 %v912, %v977
      %v1010 = vadd.f32 %v913, %v978
      %v1011 = vld [vmem:[%s816 + $0x2] sm:$0xff]
      %v1012 = vld [vmem:[%s816 + $0xa] sm:$0xff]
      %v1013 = vld [vmem:[%s816 + $0x1a] sm:$0xff]
      %v1014 = vld [vmem:[%s816 + $0x22] sm:$0xff]
      %v1015 = vld [vmem:[%s816 + $0x32] sm:$0xff]
      %v1016 = vld [vmem:[%s816 + $0x3a] sm:$0xff]
      %v1017 = vld [vmem:[%s816 + $0x4a] sm:$0xff]
      %v1018 = vld [vmem:[%s816 + $0x52] sm:$0xff]
      %v1019 = vld [vmem:[%s816 + $0x62] sm:$0xff]
      %v1020 = vld [vmem:[%s816 + $0x6a] sm:$0xff]
      %v1021 = vld [vmem:[%s816 + $0x7a] sm:$0xff]
      %v1022 = vld [vmem:[%s816 + $0x82] sm:$0xff]
      %v1023 = vld [vmem:[%s816 + $0x92] sm:$0xff]
      %v1024 = vld [vmem:[%s816 + $0x9a] sm:$0xff]
      %v1025 = vld [vmem:[%s816 + $0xaa] sm:$0xff]
      %v1026 = vld [vmem:[%s816 + $0xb2] sm:$0xff]
      %v1027 = vld [vmem:[%s816 + $0xc2] sm:$0xff]
      %v1028 = vld [vmem:[%s816 + $0xca] sm:$0xff]
      %v1029 = vld [vmem:[%s816 + $0xda] sm:$0xff]
      %v1030 = vld [vmem:[%s816 + $0xe2] sm:$0xff]
      %v1031 = vld [vmem:[%s816 + $0xf2] sm:$0xff]
      %v1032 = vld [vmem:[%s816 + $0xfa] sm:$0xff]
      %v1033 = vld [vmem:[%s816 + $0x10a] sm:$0xff]
      %v1034 = vld [vmem:[%s816 + $0x112] sm:$0xff]
      %v1035 = vld [vmem:[%s816 + $0x122] sm:$0xff]
      %v1036 = vld [vmem:[%s816 + $0x12a] sm:$0xff]
      %v1037 = vld [vmem:[%s816 + $0x13a] sm:$0xff]
      %v1038 = vld [vmem:[%s816 + $0x142] sm:$0xff]
      %v1039 = vld [vmem:[%s816 + $0x152] sm:$0xff]
      %v1040 = vld [vmem:[%s816 + $0x15a] sm:$0xff]
      %v1041 = vld [vmem:[%s816 + $0x16a] sm:$0xff]
      %v1042 = vld [vmem:[%s816 + $0x172] sm:$0xff]
      %v1043 = vperm.slane %v325, 7
      %v1044 = vmul.f32 %v1011, %v1043
      %v1045 = vmul.f32 %v1012, %v1043
      %v1046 = vmul.f32 %v1013, %v1043
      %v1047 = vmul.f32 %v1014, %v1043
      %v1048 = vmul.f32 %v1015, %v1043
      %v1049 = vmul.f32 %v1016, %v1043
      %v1050 = vmul.f32 %v1017, %v1043
      %v1051 = vmul.f32 %v1018, %v1043
      %v1052 = vmul.f32 %v1019, %v1043
      %v1053 = vmul.f32 %v1020, %v1043
      %v1054 = vmul.f32 %v1021, %v1043
      %v1055 = vmul.f32 %v1022, %v1043
      %v1056 = vmul.f32 %v1023, %v1043
      %v1057 = vmul.f32 %v1024, %v1043
      %v1058 = vmul.f32 %v1025, %v1043
      %v1059 = vmul.f32 %v1026, %v1043
      %v1060 = vmul.f32 %v1027, %v1043
      %v1061 = vmul.f32 %v1028, %v1043
      %v1062 = vmul.f32 %v1029, %v1043
      %v1063 = vmul.f32 %v1030, %v1043
      %v1064 = vmul.f32 %v1031, %v1043
      %v1065 = vmul.f32 %v1032, %v1043
      %v1066 = vmul.f32 %v1033, %v1043
      %v1067 = vmul.f32 %v1034, %v1043
      %v1068 = vmul.f32 %v1035, %v1043
      %v1069 = vmul.f32 %v1036, %v1043
      %v1070 = vmul.f32 %v1037, %v1043
      %v1071 = vmul.f32 %v1038, %v1043
      %v1072 = vmul.f32 %v1039, %v1043
      %v1073 = vmul.f32 %v1040, %v1043
      %v1074 = vmul.f32 %v1041, %v1043
      %v1075 = vmul.f32 %v1042, %v1043
      %v1076 = vadd.f32 %v979, %v1044
      %v1077 = vadd.f32 %v980, %v1045
      %v1078 = vadd.f32 %v981, %v1046
      %v1079 = vadd.f32 %v982, %v1047
      %v1080 = vadd.f32 %v983, %v1048
      %v1081 = vadd.f32 %v984, %v1049
      %v1082 = vadd.f32 %v985, %v1050
      %v1083 = vadd.f32 %v986, %v1051
      %v1084 = vadd.f32 %v987, %v1052
      %v1085 = vadd.f32 %v988, %v1053
      %v1086 = vadd.f32 %v989, %v1054
      %v1087 = vadd.f32 %v990, %v1055
      %v1088 = vadd.f32 %v991, %v1056
      %v1089 = vadd.f32 %v992, %v1057
      %v1090 = vadd.f32 %v993, %v1058
      %v1091 = vadd.f32 %v994, %v1059
      %v1092 = vadd.f32 %v995, %v1060
      %v1093 = vadd.f32 %v996, %v1061
      %v1094 = vadd.f32 %v997, %v1062
      %v1095 = vadd.f32 %v998, %v1063
      %v1096 = vadd.f32 %v999, %v1064
      %v1097 = vadd.f32 %v1000, %v1065
      %v1098 = vadd.f32 %v1001, %v1066
      %v1099 = vadd.f32 %v1002, %v1067
      %v1100 = vadd.f32 %v1003, %v1068
      %v1101 = vadd.f32 %v1004, %v1069
      %v1102 = vadd.f32 %v1005, %v1070
      %v1103 = vadd.f32 %v1006, %v1071
      %v1104 = vadd.f32 %v1007, %v1072
      %v1105 = vadd.f32 %v1008, %v1073
      %v1106 = vadd.f32 %v1009, %v1074
      %v1107 = vadd.f32 %v1010, %v1075
      %v1108 = vld [vmem:[%s816 + $0x3] sm:$0xff]
      %v1109 = vld [vmem:[%s816 + $0xb] sm:$0xff]
      %v1110 = vld [vmem:[%s816 + $0x1b] sm:$0xff]
      %v1111 = vld [vmem:[%s816 + $0x23] sm:$0xff]
      %v1112 = vld [vmem:[%s816 + $0x33] sm:$0xff]
      %v1113 = vld [vmem:[%s816 + $0x3b] sm:$0xff]
      %v1114 = vld [vmem:[%s816 + $0x4b] sm:$0xff]
      %v1115 = vld [vmem:[%s816 + $0x53] sm:$0xff]
      %v1116 = vld [vmem:[%s816 + $0x63] sm:$0xff]
      %v1117 = vld [vmem:[%s816 + $0x6b] sm:$0xff]
      %v1118 = vld [vmem:[%s816 + $0x7b] sm:$0xff]
      %v1119 = vld [vmem:[%s816 + $0x83] sm:$0xff]
      %v1120 = vld [vmem:[%s816 + $0x93] sm:$0xff]
      %v1121 = vld [vmem:[%s816 + $0x9b] sm:$0xff]
      %v1122 = vld [vmem:[%s816 + $0xab] sm:$0xff]
      %v1123 = vld [vmem:[%s816 + $0xb3] sm:$0xff]
      %v1124 = vld [vmem:[%s816 + $0xc3] sm:$0xff]
      %v1125 = vld [vmem:[%s816 + $0xcb] sm:$0xff]
      %v1126 = vld [vmem:[%s816 + $0xdb] sm:$0xff]
      %v1127 = vld [vmem:[%s816 + $0xe3] sm:$0xff]
      %v1128 = vld [vmem:[%s816 + $0xf3] sm:$0xff]
      %v1129 = vld [vmem:[%s816 + $0xfb] sm:$0xff]
      %v1130 = vld [vmem:[%s816 + $0x10b] sm:$0xff]
      %v1131 = vld [vmem:[%s816 + $0x113] sm:$0xff]
      %v1132 = vld [vmem:[%s816 + $0x123] sm:$0xff]
      %v1133 = vld [vmem:[%s816 + $0x12b] sm:$0xff]
      %v1134 = vld [vmem:[%s816 + $0x13b] sm:$0xff]
      %v1135 = vld [vmem:[%s816 + $0x143] sm:$0xff]
      %v1136 = vld [vmem:[%s816 + $0x153] sm:$0xff]
      %v1137 = vld [vmem:[%s816 + $0x15b] sm:$0xff]
      %v1138 = vld [vmem:[%s816 + $0x16b] sm:$0xff]
      %v1139 = vld [vmem:[%s816 + $0x173] sm:$0xff]
      %v1140 = vperm.slane %v326, 0
      %v1141 = vmul.f32 %v1108, %v1140
      %v1142 = vmul.f32 %v1109, %v1140
      %v1143 = vmul.f32 %v1110, %v1140
      %v1144 = vmul.f32 %v1111, %v1140
      %v1145 = vmul.f32 %v1112, %v1140
      %v1146 = vmul.f32 %v1113, %v1140
      %v1147 = vmul.f32 %v1114, %v1140
      %v1148 = vmul.f32 %v1115, %v1140
      %v1149 = vmul.f32 %v1116, %v1140
      %v1150 = vmul.f32 %v1117, %v1140
      %v1151 = vmul.f32 %v1118, %v1140
      %v1152 = vmul.f32 %v1119, %v1140
      %v1153 = vmul.f32 %v1120, %v1140
      %v1154 = vmul.f32 %v1121, %v1140
      %v1155 = vmul.f32 %v1122, %v1140
      %v1156 = vmul.f32 %v1123, %v1140
      %v1157 = vmul.f32 %v1124, %v1140
      %v1158 = vmul.f32 %v1125, %v1140
      %v1159 = vmul.f32 %v1126, %v1140
      %v1160 = vmul.f32 %v1127, %v1140
      %v1161 = vmul.f32 %v1128, %v1140
      %v1162 = vmul.f32 %v1129, %v1140
      %v1163 = vmul.f32 %v1130, %v1140
      %v1164 = vmul.f32 %v1131, %v1140
      %v1165 = vmul.f32 %v1132, %v1140
      %v1166 = vmul.f32 %v1133, %v1140
      %v1167 = vmul.f32 %v1134, %v1140
      %v1168 = vmul.f32 %v1135, %v1140
      %v1169 = vmul.f32 %v1136, %v1140
      %v1170 = vmul.f32 %v1137, %v1140
      %v1171 = vmul.f32 %v1138, %v1140
      %v1172 = vmul.f32 %v1139, %v1140
      %v1173 = vadd.f32 %v1076, %v1141
      %v1174 = vadd.f32 %v1077, %v1142
      %v1175 = vadd.f32 %v1078, %v1143
      %v1176 = vadd.f32 %v1079, %v1144
      %v1177 = vadd.f32 %v1080, %v1145
      %v1178 = vadd.f32 %v1081, %v1146
      %v1179 = vadd.f32 %v1082, %v1147
      %v1180 = vadd.f32 %v1083, %v1148
      %v1181 = vadd.f32 %v1084, %v1149
      %v1182 = vadd.f32 %v1085, %v1150
      %v1183 = vadd.f32 %v1086, %v1151
      %v1184 = vadd.f32 %v1087, %v1152
      %v1185 = vadd.f32 %v1088, %v1153
      %v1186 = vadd.f32 %v1089, %v1154
      %v1187 = vadd.f32 %v1090, %v1155
      %v1188 = vadd.f32 %v1091, %v1156
      %v1189 = vadd.f32 %v1092, %v1157
      %v1190 = vadd.f32 %v1093, %v1158
      %v1191 = vadd.f32 %v1094, %v1159
      %v1192 = vadd.f32 %v1095, %v1160
      %v1193 = vadd.f32 %v1096, %v1161
      %v1194 = vadd.f32 %v1097, %v1162
      %v1195 = vadd.f32 %v1098, %v1163
      %v1196 = vadd.f32 %v1099, %v1164
      %v1197 = vadd.f32 %v1100, %v1165
      %v1198 = vadd.f32 %v1101, %v1166
      %v1199 = vadd.f32 %v1102, %v1167
      %v1200 = vadd.f32 %v1103, %v1168
      %v1201 = vadd.f32 %v1104, %v1169
      %v1202 = vadd.f32 %v1105, %v1170
      %v1203 = vadd.f32 %v1106, %v1171
      %v1204 = vadd.f32 %v1107, %v1172
      %v1205 = vld [vmem:[%s816 + $0x4] sm:$0xff]
      %v1206 = vld [vmem:[%s816 + $0xc] sm:$0xff]
      %v1207 = vld [vmem:[%s816 + $0x1c] sm:$0xff]
      %v1208 = vld [vmem:[%s816 + $0x24] sm:$0xff]
      %v1209 = vld [vmem:[%s816 + $0x34] sm:$0xff]
      %v1210 = vld [vmem:[%s816 + $0x3c] sm:$0xff]
      %v1211 = vld [vmem:[%s816 + $0x4c] sm:$0xff]
      %v1212 = vld [vmem:[%s816 + $0x54] sm:$0xff]
      %v1213 = vld [vmem:[%s816 + $0x64] sm:$0xff]
      %v1214 = vld [vmem:[%s816 + $0x6c] sm:$0xff]
      %v1215 = vld [vmem:[%s816 + $0x7c] sm:$0xff]
      %v1216 = vld [vmem:[%s816 + $0x84] sm:$0xff]
      %v1217 = vld [vmem:[%s816 + $0x94] sm:$0xff]
      %v1218 = vld [vmem:[%s816 + $0x9c] sm:$0xff]
      %v1219 = vld [vmem:[%s816 + $0xac] sm:$0xff]
      %v1220 = vld [vmem:[%s816 + $0xb4] sm:$0xff]
      %v1221 = vld [vmem:[%s816 + $0xc4] sm:$0xff]
      %v1222 = vld [vmem:[%s816 + $0xcc] sm:$0xff]
      %v1223 = vld [vmem:[%s816 + $0xdc] sm:$0xff]
      %v1224 = vld [vmem:[%s816 + $0xe4] sm:$0xff]
      %v1225 = vld [vmem:[%s816 + $0xf4] sm:$0xff]
      %v1226 = vld [vmem:[%s816 + $0xfc] sm:$0xff]
      %v1227 = vld [vmem:[%s816 + $0x10c] sm:$0xff]
      %v1228 = vld [vmem:[%s816 + $0x114] sm:$0xff]
      %v1229 = vld [vmem:[%s816 + $0x124] sm:$0xff]
      %v1230 = vld [vmem:[%s816 + $0x12c] sm:$0xff]
      %v1231 = vld [vmem:[%s816 + $0x13c] sm:$0xff]
      %v1232 = vld [vmem:[%s816 + $0x144] sm:$0xff]
      %v1233 = vld [vmem:[%s816 + $0x154] sm:$0xff]
      %v1234 = vld [vmem:[%s816 + $0x15c] sm:$0xff]
      %v1235 = vld [vmem:[%s816 + $0x16c] sm:$0xff]
      %v1236 = vld [vmem:[%s816 + $0x174] sm:$0xff]
      %v1237 = vperm.slane %v326, 1
      %v1238 = vmul.f32 %v1205, %v1237
      %v1239 = vmul.f32 %v1206, %v1237
      %v1240 = vmul.f32 %v1207, %v1237
      %v1241 = vmul.f32 %v1208, %v1237
      %v1242 = vmul.f32 %v1209, %v1237
      %v1243 = vmul.f32 %v1210, %v1237
      %v1244 = vmul.f32 %v1211, %v1237
      %v1245 = vmul.f32 %v1212, %v1237
      %v1246 = vmul.f32 %v1213, %v1237
      %v1247 = vmul.f32 %v1214, %v1237
      %v1248 = vmul.f32 %v1215, %v1237
      %v1249 = vmul.f32 %v1216, %v1237
      %v1250 = vmul.f32 %v1217, %v1237
      %v1251 = vmul.f32 %v1218, %v1237
      %v1252 = vmul.f32 %v1219, %v1237
      %v1253 = vmul.f32 %v1220, %v1237
      %v1254 = vmul.f32 %v1221, %v1237
      %v1255 = vmul.f32 %v1222, %v1237
      %v1256 = vmul.f32 %v1223, %v1237
      %v1257 = vmul.f32 %v1224, %v1237
      %v1258 = vmul.f32 %v1225, %v1237
      %v1259 = vmul.f32 %v1226, %v1237
      %v1260 = vmul.f32 %v1227, %v1237
      %v1261 = vmul.f32 %v1228, %v1237
      %v1262 = vmul.f32 %v1229, %v1237
      %v1263 = vmul.f32 %v1230, %v1237
      %v1264 = vmul.f32 %v1231, %v1237
      %v1265 = vmul.f32 %v1232, %v1237
      %v1266 = vmul.f32 %v1233, %v1237
      %v1267 = vmul.f32 %v1234, %v1237
      %v1268 = vmul.f32 %v1235, %v1237
      %v1269 = vmul.f32 %v1236, %v1237
      %v1270 = vadd.f32 %v1173, %v1238
      %v1271 = vadd.f32 %v1174, %v1239
      %v1272 = vadd.f32 %v1175, %v1240
      %v1273 = vadd.f32 %v1176, %v1241
      %v1274 = vadd.f32 %v1177, %v1242
      %v1275 = vadd.f32 %v1178, %v1243
      %v1276 = vadd.f32 %v1179, %v1244
      %v1277 = vadd.f32 %v1180, %v1245
      %v1278 = vadd.f32 %v1181, %v1246
      %v1279 = vadd.f32 %v1182, %v1247
      %v1280 = vadd.f32 %v1183, %v1248
      %v1281 = vadd.f32 %v1184, %v1249
      %v1282 = vadd.f32 %v1185, %v1250
      %v1283 = vadd.f32 %v1186, %v1251
      %v1284 = vadd.f32 %v1187, %v1252
      %v1285 = vadd.f32 %v1188, %v1253
      %v1286 = vadd.f32 %v1189, %v1254
      %v1287 = vadd.f32 %v1190, %v1255
      %v1288 = vadd.f32 %v1191, %v1256
      %v1289 = vadd.f32 %v1192, %v1257
      %v1290 = vadd.f32 %v1193, %v1258
      %v1291 = vadd.f32 %v1194, %v1259
      %v1292 = vadd.f32 %v1195, %v1260
      %v1293 = vadd.f32 %v1196, %v1261
      %v1294 = vadd.f32 %v1197, %v1262
      %v1295 = vadd.f32 %v1198, %v1263
      %v1296 = vadd.f32 %v1199, %v1264
      %v1297 = vadd.f32 %v1200, %v1265
      %v1298 = vadd.f32 %v1201, %v1266
      %v1299 = vadd.f32 %v1202, %v1267
      %v1300 = vadd.f32 %v1203, %v1268
      %v1301 = vadd.f32 %v1204, %v1269
      %v1302 = vld [vmem:[%s292] sm:$0xff]
      %v1303 = vld [vmem:[%s292 + $0x8] sm:$0xff]
      %v1304 = vld [vmem:[%s292 + $0x18] sm:$0xff]
      %v1305 = vld [vmem:[%s292 + $0x20] sm:$0xff]
      %v1306 = vld [vmem:[%s292 + $0x30] sm:$0xff]
      %v1307 = vld [vmem:[%s292 + $0x38] sm:$0xff]
      %v1308 = vld [vmem:[%s292 + $0x48] sm:$0xff]
      %v1309 = vld [vmem:[%s292 + $0x50] sm:$0xff]
      %v1310 = vld [vmem:[%s292 + $0x60] sm:$0xff]
      %v1311 = vld [vmem:[%s292 + $0x68] sm:$0xff]
      %v1312 = vld [vmem:[%s292 + $0x78] sm:$0xff]
      %v1313 = vld [vmem:[%s292 + $0x80] sm:$0xff]
      %v1314 = vld [vmem:[%s292 + $0x90] sm:$0xff]
      %v1315 = vld [vmem:[%s292 + $0x98] sm:$0xff]
      %v1316 = vld [vmem:[%s292 + $0xa8] sm:$0xff]
      %v1317 = vld [vmem:[%s292 + $0xb0] sm:$0xff]
      %v1318 = vld [vmem:[%s292 + $0xc0] sm:$0xff]
      %v1319 = vld [vmem:[%s292 + $0xc8] sm:$0xff]
      %v1320 = vld [vmem:[%s292 + $0xd8] sm:$0xff]
      %v1321 = vld [vmem:[%s292 + $0xe0] sm:$0xff]
      %v1322 = vld [vmem:[%s292 + $0xf0] sm:$0xff]
      %v1323 = vld [vmem:[%s292 + $0xf8] sm:$0xff]
      %v1324 = vld [vmem:[%s292 + $0x108] sm:$0xff]
      %v1325 = vld [vmem:[%s292 + $0x110] sm:$0xff]
      %v1326 = vld [vmem:[%s292 + $0x120] sm:$0xff]
      %v1327 = vld [vmem:[%s292 + $0x128] sm:$0xff]
      %v1328 = vld [vmem:[%s292 + $0x138] sm:$0xff]
      %v1329 = vld [vmem:[%s292 + $0x140] sm:$0xff]
      %v1330 = vld [vmem:[%s292 + $0x150] sm:$0xff]
      %v1331 = vld [vmem:[%s292 + $0x158] sm:$0xff]
      %v1332 = vld [vmem:[%s292 + $0x168] sm:$0xff]
      %v1333 = vld [vmem:[%s292 + $0x170] sm:$0xff]
      %v1334 = vperm.slane %v326, 2
      %v1335 = vmul.f32 %v1302, %v1334
      %v1336 = vmul.f32 %v1303, %v1334
      %v1337 = vmul.f32 %v1304, %v1334
      %v1338 = vmul.f32 %v1305, %v1334
      %v1339 = vmul.f32 %v1306, %v1334
      %v1340 = vmul.f32 %v1307, %v1334
      %v1341 = vmul.f32 %v1308, %v1334
      %v1342 = vmul.f32 %v1309, %v1334
      %v1343 = vmul.f32 %v1310, %v1334
      %v1344 = vmul.f32 %v1311, %v1334
      %v1345 = vmul.f32 %v1312, %v1334
      %v1346 = vmul.f32 %v1313, %v1334
      %v1347 = vmul.f32 %v1314, %v1334
      %v1348 = vmul.f32 %v1315, %v1334
      %v1349 = vmul.f32 %v1316, %v1334
      %v1350 = vmul.f32 %v1317, %v1334
      %v1351 = vmul.f32 %v1318, %v1334
      %v1352 = vmul.f32 %v1319, %v1334
      %v1353 = vmul.f32 %v1320, %v1334
      %v1354 = vmul.f32 %v1321, %v1334
      %v1355 = vmul.f32 %v1322, %v1334
      %v1356 = vmul.f32 %v1323, %v1334
      %v1357 = vmul.f32 %v1324, %v1334
      %v1358 = vmul.f32 %v1325, %v1334
      %v1359 = vmul.f32 %v1326, %v1334
      %v1360 = vmul.f32 %v1327, %v1334
      %v1361 = vmul.f32 %v1328, %v1334
      %v1362 = vmul.f32 %v1329, %v1334
      %v1363 = vmul.f32 %v1330, %v1334
      %v1364 = vmul.f32 %v1331, %v1334
      %v1365 = vmul.f32 %v1332, %v1334
      %v1366 = vmul.f32 %v1333, %v1334
      %v1367 = vadd.f32 %v1270, %v1335
      %v1368 = vadd.f32 %v1271, %v1336
      %v1369 = vadd.f32 %v1272, %v1337
      %v1370 = vadd.f32 %v1273, %v1338
      %v1371 = vadd.f32 %v1274, %v1339
      %v1372 = vadd.f32 %v1275, %v1340
      %v1373 = vadd.f32 %v1276, %v1341
      %v1374 = vadd.f32 %v1277, %v1342
      %v1375 = vadd.f32 %v1278, %v1343
      %v1376 = vadd.f32 %v1279, %v1344
      %v1377 = vadd.f32 %v1280, %v1345
      %v1378 = vadd.f32 %v1281, %v1346
      %v1379 = vadd.f32 %v1282, %v1347
      %v1380 = vadd.f32 %v1283, %v1348
      %v1381 = vadd.f32 %v1284, %v1349
      %v1382 = vadd.f32 %v1285, %v1350
      %v1383 = vadd.f32 %v1286, %v1351
      %v1384 = vadd.f32 %v1287, %v1352
      %v1385 = vadd.f32 %v1288, %v1353
      %v1386 = vadd.f32 %v1289, %v1354
      %v1387 = vadd.f32 %v1290, %v1355
      %v1388 = vadd.f32 %v1291, %v1356
      %v1389 = vadd.f32 %v1292, %v1357
      %v1390 = vadd.f32 %v1293, %v1358
      %v1391 = vadd.f32 %v1294, %v1359
      %v1392 = vadd.f32 %v1295, %v1360
      %v1393 = vadd.f32 %v1296, %v1361
      %v1394 = vadd.f32 %v1297, %v1362
      %v1395 = vadd.f32 %v1298, %v1363
      %v1396 = vadd.f32 %v1299, %v1364
      %v1397 = vadd.f32 %v1300, %v1365
      %v1398 = vadd.f32 %v1301, %v1366
      %v1399 = vld [vmem:[%s292 + $0x1] sm:$0xff]
      %v1400 = vld [vmem:[%s292 + $0x9] sm:$0xff]
      %v1401 = vld [vmem:[%s292 + $0x19] sm:$0xff]
      %v1402 = vld [vmem:[%s292 + $0x21] sm:$0xff]
      %v1403 = vld [vmem:[%s292 + $0x31] sm:$0xff]
      %v1404 = vld [vmem:[%s292 + $0x39] sm:$0xff]
      %v1405 = vld [vmem:[%s292 + $0x49] sm:$0xff]
      %v1406 = vld [vmem:[%s292 + $0x51] sm:$0xff]
      %v1407 = vld [vmem:[%s292 + $0x61] sm:$0xff]
      %v1408 = vld [vmem:[%s292 + $0x69] sm:$0xff]
      %v1409 = vld [vmem:[%s292 + $0x79] sm:$0xff]
      %v1410 = vld [vmem:[%s292 + $0x81] sm:$0xff]
      %v1411 = vld [vmem:[%s292 + $0x91] sm:$0xff]
      %v1412 = vld [vmem:[%s292 + $0x99] sm:$0xff]
      %v1413 = vld [vmem:[%s292 + $0xa9] sm:$0xff]
      %v1414 = vld [vmem:[%s292 + $0xb1] sm:$0xff]
      %v1415 = vld [vmem:[%s292 + $0xc1] sm:$0xff]
      %v1416 = vld [vmem:[%s292 + $0xc9] sm:$0xff]
      %v1417 = vld [vmem:[%s292 + $0xd9] sm:$0xff]
      %v1418 = vld [vmem:[%s292 + $0xe1] sm:$0xff]
      %v1419 = vld [vmem:[%s292 + $0xf1] sm:$0xff]
      %v1420 = vld [vmem:[%s292 + $0xf9] sm:$0xff]
      %v1421 = vld [vmem:[%s292 + $0x109] sm:$0xff]
      %v1422 = vld [vmem:[%s292 + $0x111] sm:$0xff]
      %v1423 = vld [vmem:[%s292 + $0x121] sm:$0xff]
      %v1424 = vld [vmem:[%s292 + $0x129] sm:$0xff]
      %v1425 = vld [vmem:[%s292 + $0x139] sm:$0xff]
      %v1426 = vld [vmem:[%s292 + $0x141] sm:$0xff]
      %v1427 = vld [vmem:[%s292 + $0x151] sm:$0xff]
      %v1428 = vld [vmem:[%s292 + $0x159] sm:$0xff]
      %v1429 = vld [vmem:[%s292 + $0x169] sm:$0xff]
      %v1430 = vld [vmem:[%s292 + $0x171] sm:$0xff]
      %v1431 = vperm.slane %v326, 3
      %v1432 = vmul.f32 %v1399, %v1431
      %v1433 = vmul.f32 %v1400, %v1431
      %v1434 = vmul.f32 %v1401, %v1431
      %v1435 = vmul.f32 %v1402, %v1431
      %v1436 = vmul.f32 %v1403, %v1431
      %v1437 = vmul.f32 %v1404, %v1431
      %v1438 = vmul.f32 %v1405, %v1431
      %v1439 = vmul.f32 %v1406, %v1431
      %v1440 = vmul.f32 %v1407, %v1431
      %v1441 = vmul.f32 %v1408, %v1431
      %v1442 = vmul.f32 %v1409, %v1431
      %v1443 = vmul.f32 %v1410, %v1431
      %v1444 = vmul.f32 %v1411, %v1431
      %v1445 = vmul.f32 %v1412, %v1431
      %v1446 = vmul.f32 %v1413, %v1431
      %v1447 = vmul.f32 %v1414, %v1431
      %v1448 = vmul.f32 %v1415, %v1431
      %v1449 = vmul.f32 %v1416, %v1431
      %v1450 = vmul.f32 %v1417, %v1431
      %v1451 = vmul.f32 %v1418, %v1431
      %v1452 = vmul.f32 %v1419, %v1431
      %v1453 = vmul.f32 %v1420, %v1431
      %v1454 = vmul.f32 %v1421, %v1431
      %v1455 = vmul.f32 %v1422, %v1431
      %v1456 = vmul.f32 %v1423, %v1431
      %v1457 = vmul.f32 %v1424, %v1431
      %v1458 = vmul.f32 %v1425, %v1431
      %v1459 = vmul.f32 %v1426, %v1431
      %v1460 = vmul.f32 %v1427, %v1431
      %v1461 = vmul.f32 %v1428, %v1431
      %v1462 = vmul.f32 %v1429, %v1431
      %v1463 = vmul.f32 %v1430, %v1431
      %v1464 = vadd.f32 %v1367, %v1432
      %v1465 = vadd.f32 %v1368, %v1433
      %v1466 = vadd.f32 %v1369, %v1434
      %v1467 = vadd.f32 %v1370, %v1435
      %v1468 = vadd.f32 %v1371, %v1436
      %v1469 = vadd.f32 %v1372, %v1437
      %v1470 = vadd.f32 %v1373, %v1438
      %v1471 = vadd.f32 %v1374, %v1439
      %v1472 = vadd.f32 %v1375, %v1440
      %v1473 = vadd.f32 %v1376, %v1441
      %v1474 = vadd.f32 %v1377, %v1442
      %v1475 = vadd.f32 %v1378, %v1443
      %v1476 = vadd.f32 %v1379, %v1444
      %v1477 = vadd.f32 %v1380, %v1445
      %v1478 = vadd.f32 %v1381, %v1446
      %v1479 = vadd.f32 %v1382, %v1447
      %v1480 = vadd.f32 %v1383, %v1448
      %v1481 = vadd.f32 %v1384, %v1449
      %v1482 = vadd.f32 %v1385, %v1450
      %v1483 = vadd.f32 %v1386, %v1451
      %v1484 = vadd.f32 %v1387, %v1452
      %v1485 = vadd.f32 %v1388, %v1453
      %v1486 = vadd.f32 %v1389, %v1454
      %v1487 = vadd.f32 %v1390, %v1455
      %v1488 = vadd.f32 %v1391, %v1456
      %v1489 = vadd.f32 %v1392, %v1457
      %v1490 = vadd.f32 %v1393, %v1458
      %v1491 = vadd.f32 %v1394, %v1459
      %v1492 = vadd.f32 %v1395, %v1460
      %v1493 = vadd.f32 %v1396, %v1461
      %v1494 = vadd.f32 %v1397, %v1462
      %v1495 = vadd.f32 %v1398, %v1463
      %v1496 = vld [vmem:[%s292 + $0x2] sm:$0xff]
      %v1497 = vld [vmem:[%s292 + $0xa] sm:$0xff]
      %v1498 = vld [vmem:[%s292 + $0x1a] sm:$0xff]
      %v1499 = vld [vmem:[%s292 + $0x22] sm:$0xff]
      %v1500 = vld [vmem:[%s292 + $0x32] sm:$0xff]
      %v1501 = vld [vmem:[%s292 + $0x3a] sm:$0xff]
      %v1502 = vld [vmem:[%s292 + $0x4a] sm:$0xff]
      %v1503 = vld [vmem:[%s292 + $0x52] sm:$0xff]
      %v1504 = vld [vmem:[%s292 + $0x62] sm:$0xff]
      %v1505 = vld [vmem:[%s292 + $0x6a] sm:$0xff]
      %v1506 = vld [vmem:[%s292 + $0x7a] sm:$0xff]
      %v1507 = vld [vmem:[%s292 + $0x82] sm:$0xff]
      %v1508 = vld [vmem:[%s292 + $0x92] sm:$0xff]
      %v1509 = vld [vmem:[%s292 + $0x9a] sm:$0xff]
      %v1510 = vld [vmem:[%s292 + $0xaa] sm:$0xff]
      %v1511 = vld [vmem:[%s292 + $0xb2] sm:$0xff]
      %v1512 = vld [vmem:[%s292 + $0xc2] sm:$0xff]
      %v1513 = vld [vmem:[%s292 + $0xca] sm:$0xff]
      %v1514 = vld [vmem:[%s292 + $0xda] sm:$0xff]
      %v1515 = vld [vmem:[%s292 + $0xe2] sm:$0xff]
      %v1516 = vld [vmem:[%s292 + $0xf2] sm:$0xff]
      %v1517 = vld [vmem:[%s292 + $0xfa] sm:$0xff]
      %v1518 = vld [vmem:[%s292 + $0x10a] sm:$0xff]
      %v1519 = vld [vmem:[%s292 + $0x112] sm:$0xff]
      %v1520 = vld [vmem:[%s292 + $0x122] sm:$0xff]
      %v1521 = vld [vmem:[%s292 + $0x12a] sm:$0xff]
      %v1522 = vld [vmem:[%s292 + $0x13a] sm:$0xff]
      %v1523 = vld [vmem:[%s292 + $0x142] sm:$0xff]
      %v1524 = vld [vmem:[%s292 + $0x152] sm:$0xff]
      %v1525 = vld [vmem:[%s292 + $0x15a] sm:$0xff]
      %v1526 = vld [vmem:[%s292 + $0x16a] sm:$0xff]
      %v1527 = vld [vmem:[%s292 + $0x172] sm:$0xff]
      %v1528 = vperm.slane %v326, 4
      %v1529 = vmul.f32 %v1496, %v1528
      %v1530 = vmul.f32 %v1497, %v1528
      %v1531 = vmul.f32 %v1498, %v1528
      %v1532 = vmul.f32 %v1499, %v1528
      %v1533 = vmul.f32 %v1500, %v1528
      %v1534 = vmul.f32 %v1501, %v1528
      %v1535 = vmul.f32 %v1502, %v1528
      %v1536 = vmul.f32 %v1503, %v1528
      %v1537 = vmul.f32 %v1504, %v1528
      %v1538 = vmul.f32 %v1505, %v1528
      %v1539 = vmul.f32 %v1506, %v1528
      %v1540 = vmul.f32 %v1507, %v1528
      %v1541 = vmul.f32 %v1508, %v1528
      %v1542 = vmul.f32 %v1509, %v1528
      %v1543 = vmul.f32 %v1510, %v1528
      %v1544 = vmul.f32 %v1511, %v1528
      %v1545 = vmul.f32 %v1512, %v1528
      %v1546 = vmul.f32 %v1513, %v1528
      %v1547 = vmul.f32 %v1514, %v1528
      %v1548 = vmul.f32 %v1515, %v1528
      %v1549 = vmul.f32 %v1516, %v1528
      %v1550 = vmul.f32 %v1517, %v1528
      %v1551 = vmul.f32 %v1518, %v1528
      %v1552 = vmul.f32 %v1519, %v1528
      %v1553 = vmul.f32 %v1520, %v1528
      %v1554 = vmul.f32 %v1521, %v1528
      %v1555 = vmul.f32 %v1522, %v1528
      %v1556 = vmul.f32 %v1523, %v1528
      %v1557 = vmul.f32 %v1524, %v1528
      %v1558 = vmul.f32 %v1525, %v1528
      %v1559 = vmul.f32 %v1526, %v1528
      %v1560 = vmul.f32 %v1527, %v1528
      %v1561 = vadd.f32 %v1464, %v1529
      %v1562 = vadd.f32 %v1465, %v1530
      %v1563 = vadd.f32 %v1466, %v1531
      %v1564 = vadd.f32 %v1467, %v1532
      %v1565 = vadd.f32 %v1468, %v1533
      %v1566 = vadd.f32 %v1469, %v1534
      %v1567 = vadd.f32 %v1470, %v1535
      %v1568 = vadd.f32 %v1471, %v1536
      %v1569 = vadd.f32 %v1472, %v1537
      %v1570 = vadd.f32 %v1473, %v1538
      %v1571 = vadd.f32 %v1474, %v1539
      %v1572 = vadd.f32 %v1475, %v1540
      %v1573 = vadd.f32 %v1476, %v1541
      %v1574 = vadd.f32 %v1477, %v1542
      %v1575 = vadd.f32 %v1478, %v1543
      %v1576 = vadd.f32 %v1479, %v1544
      %v1577 = vadd.f32 %v1480, %v1545
      %v1578 = vadd.f32 %v1481, %v1546
      %v1579 = vadd.f32 %v1482, %v1547
      %v1580 = vadd.f32 %v1483, %v1548
      %v1581 = vadd.f32 %v1484, %v1549
      %v1582 = vadd.f32 %v1485, %v1550
      %v1583 = vadd.f32 %v1486, %v1551
      %v1584 = vadd.f32 %v1487, %v1552
      %v1585 = vadd.f32 %v1488, %v1553
      %v1586 = vadd.f32 %v1489, %v1554
      %v1587 = vadd.f32 %v1490, %v1555
      %v1588 = vadd.f32 %v1491, %v1556
      %v1589 = vadd.f32 %v1492, %v1557
      %v1590 = vadd.f32 %v1493, %v1558
      %v1591 = vadd.f32 %v1494, %v1559
      %v1592 = vadd.f32 %v1495, %v1560
      %v1593 = vld [vmem:[%s292 + $0x3] sm:$0xff]
      %v1594 = vld [vmem:[%s292 + $0xb] sm:$0xff]
      %v1595 = vld [vmem:[%s292 + $0x1b] sm:$0xff]
      %v1596 = vld [vmem:[%s292 + $0x23] sm:$0xff]
      %v1597 = vld [vmem:[%s292 + $0x33] sm:$0xff]
      %v1598 = vld [vmem:[%s292 + $0x3b] sm:$0xff]
      %v1599 = vld [vmem:[%s292 + $0x4b] sm:$0xff]
      %v1600 = vld [vmem:[%s292 + $0x53] sm:$0xff]
      %v1601 = vld [vmem:[%s292 + $0x63] sm:$0xff]
      %v1602 = vld [vmem:[%s292 + $0x6b] sm:$0xff]
      %v1603 = vld [vmem:[%s292 + $0x7b] sm:$0xff]
      %v1604 = vld [vmem:[%s292 + $0x83] sm:$0xff]
      %v1605 = vld [vmem:[%s292 + $0x93] sm:$0xff]
      %v1606 = vld [vmem:[%s292 + $0x9b] sm:$0xff]
      %v1607 = vld [vmem:[%s292 + $0xab] sm:$0xff]
      %v1608 = vld [vmem:[%s292 + $0xb3] sm:$0xff]
      %v1609 = vld [vmem:[%s292 + $0xc3] sm:$0xff]
      %v1610 = vld [vmem:[%s292 + $0xcb] sm:$0xff]
      %v1611 = vld [vmem:[%s292 + $0xdb] sm:$0xff]
      %v1612 = vld [vmem:[%s292 + $0xe3] sm:$0xff]
      %v1613 = vld [vmem:[%s292 + $0xf3] sm:$0xff]
      %v1614 = vld [vmem:[%s292 + $0xfb] sm:$0xff]
      %v1615 = vld [vmem:[%s292 + $0x10b] sm:$0xff]
      %v1616 = vld [vmem:[%s292 + $0x113] sm:$0xff]
      %v1617 = vld [vmem:[%s292 + $0x123] sm:$0xff]
      %v1618 = vld [vmem:[%s292 + $0x12b] sm:$0xff]
      %v1619 = vld [vmem:[%s292 + $0x13b] sm:$0xff]
      %v1620 = vld [vmem:[%s292 + $0x143] sm:$0xff]
      %v1621 = vld [vmem:[%s292 + $0x153] sm:$0xff]
      %v1622 = vld [vmem:[%s292 + $0x15b] sm:$0xff]
      %v1623 = vld [vmem:[%s292 + $0x16b] sm:$0xff]
      %v1624 = vld [vmem:[%s292 + $0x173] sm:$0xff]
      %v1625 = vperm.slane %v326, 5
      %v1626 = vmul.f32 %v1593, %v1625
      %v1627 = vmul.f32 %v1594, %v1625
      %v1628 = vmul.f32 %v1595, %v1625
      %v1629 = vmul.f32 %v1596, %v1625
      %v1630 = vmul.f32 %v1597, %v1625
      %v1631 = vmul.f32 %v1598, %v1625
      %v1632 = vmul.f32 %v1599, %v1625
      %v1633 = vmul.f32 %v1600, %v1625
      %v1634 = vmul.f32 %v1601, %v1625
      %v1635 = vmul.f32 %v1602, %v1625
      %v1636 = vmul.f32 %v1603, %v1625
      %v1637 = vmul.f32 %v1604, %v1625
      %v1638 = vmul.f32 %v1605, %v1625
      %v1639 = vmul.f32 %v1606, %v1625
      %v1640 = vmul.f32 %v1607, %v1625
      %v1641 = vmul.f32 %v1608, %v1625
      %v1642 = vmul.f32 %v1609, %v1625
      %v1643 = vmul.f32 %v1610, %v1625
      %v1644 = vmul.f32 %v1611, %v1625
      %v1645 = vmul.f32 %v1612, %v1625
      %v1646 = vmul.f32 %v1613, %v1625
      %v1647 = vmul.f32 %v1614, %v1625
      %v1648 = vmul.f32 %v1615, %v1625
      %v1649 = vmul.f32 %v1616, %v1625
      %v1650 = vmul.f32 %v1617, %v1625
      %v1651 = vmul.f32 %v1618, %v1625
      %v1652 = vmul.f32 %v1619, %v1625
      %v1653 = vmul.f32 %v1620, %v1625
      %v1654 = vmul.f32 %v1621, %v1625
      %v1655 = vmul.f32 %v1622, %v1625
      %v1656 = vmul.f32 %v1623, %v1625
      %v1657 = vmul.f32 %v1624, %v1625
      %v1658 = vadd.f32 %v1561, %v1626
      %v1659 = vadd.f32 %v1562, %v1627
      %v1660 = vadd.f32 %v1563, %v1628
      %v1661 = vadd.f32 %v1564, %v1629
      %v1662 = vadd.f32 %v1565, %v1630
      %v1663 = vadd.f32 %v1566, %v1631
      %v1664 = vadd.f32 %v1567, %v1632
      %v1665 = vadd.f32 %v1568, %v1633
      %v1666 = vadd.f32 %v1569, %v1634
      %v1667 = vadd.f32 %v1570, %v1635
      %v1668 = vadd.f32 %v1571, %v1636
      %v1669 = vadd.f32 %v1572, %v1637
      %v1670 = vadd.f32 %v1573, %v1638
      %v1671 = vadd.f32 %v1574, %v1639
      %v1672 = vadd.f32 %v1575, %v1640
      %v1673 = vadd.f32 %v1576, %v1641
      %v1674 = vadd.f32 %v1577, %v1642
      %v1675 = vadd.f32 %v1578, %v1643
      %v1676 = vadd.f32 %v1579, %v1644
      %v1677 = vadd.f32 %v1580, %v1645
      %v1678 = vadd.f32 %v1581, %v1646
      %v1679 = vadd.f32 %v1582, %v1647
      %v1680 = vadd.f32 %v1583, %v1648
      %v1681 = vadd.f32 %v1584, %v1649
      %v1682 = vadd.f32 %v1585, %v1650
      %v1683 = vadd.f32 %v1586, %v1651
      %v1684 = vadd.f32 %v1587, %v1652
      %v1685 = vadd.f32 %v1588, %v1653
      %v1686 = vadd.f32 %v1589, %v1654
      %v1687 = vadd.f32 %v1590, %v1655
      %v1688 = vadd.f32 %v1591, %v1656
      %v1689 = vadd.f32 %v1592, %v1657
      %v1690 = vld [vmem:[%s292 + $0x4] sm:$0xff]
      %v1691 = vld [vmem:[%s292 + $0xc] sm:$0xff]
      %v1692 = vld [vmem:[%s292 + $0x1c] sm:$0xff]
      %v1693 = vld [vmem:[%s292 + $0x24] sm:$0xff]
      %v1694 = vld [vmem:[%s292 + $0x34] sm:$0xff]
      %v1695 = vld [vmem:[%s292 + $0x3c] sm:$0xff]
      %v1696 = vld [vmem:[%s292 + $0x4c] sm:$0xff]
      %v1697 = vld [vmem:[%s292 + $0x54] sm:$0xff]
      %v1698 = vld [vmem:[%s292 + $0x64] sm:$0xff]
      %v1699 = vld [vmem:[%s292 + $0x6c] sm:$0xff]
      %v1700 = vld [vmem:[%s292 + $0x7c] sm:$0xff]
      %v1701 = vld [vmem:[%s292 + $0x84] sm:$0xff]
      %v1702 = vld [vmem:[%s292 + $0x94] sm:$0xff]
      %v1703 = vld [vmem:[%s292 + $0x9c] sm:$0xff]
      %v1704 = vld [vmem:[%s292 + $0xac] sm:$0xff]
      %v1705 = vld [vmem:[%s292 + $0xb4] sm:$0xff]
      %v1706 = vld [vmem:[%s292 + $0xc4] sm:$0xff]
      %v1707 = vld [vmem:[%s292 + $0xcc] sm:$0xff]
      %v1708 = vld [vmem:[%s292 + $0xdc] sm:$0xff]
      %v1709 = vld [vmem:[%s292 + $0xe4] sm:$0xff]
      %v1710 = vld [vmem:[%s292 + $0xf4] sm:$0xff]
      %v1711 = vld [vmem:[%s292 + $0xfc] sm:$0xff]
      %v1712 = vld [vmem:[%s292 + $0x10c] sm:$0xff]
      %v1713 = vld [vmem:[%s292 + $0x114] sm:$0xff]
      %v1714 = vld [vmem:[%s292 + $0x124] sm:$0xff]
      %v1715 = vld [vmem:[%s292 + $0x12c] sm:$0xff]
      %v1716 = vld [vmem:[%s292 + $0x13c] sm:$0xff]
      %v1717 = vld [vmem:[%s292 + $0x144] sm:$0xff]
      %v1718 = vld [vmem:[%s292 + $0x154] sm:$0xff]
      %v1719 = vld [vmem:[%s292 + $0x15c] sm:$0xff]
      %v1720 = vld [vmem:[%s292 + $0x16c] sm:$0xff]
      %v1721 = vld [vmem:[%s292 + $0x174] sm:$0xff]
      %v1722 = vperm.slane %v326, 6
      %v1723 = vmul.f32 %v1690, %v1722
      %v1724 = vmul.f32 %v1691, %v1722
      %v1725 = vmul.f32 %v1692, %v1722
      %v1726 = vmul.f32 %v1693, %v1722
      %v1727 = vmul.f32 %v1694, %v1722
      %v1728 = vmul.f32 %v1695, %v1722
      %v1729 = vmul.f32 %v1696, %v1722
      %v1730 = vmul.f32 %v1697, %v1722
      %v1731 = vmul.f32 %v1698, %v1722
      %v1732 = vmul.f32 %v1699, %v1722
      %v1733 = vmul.f32 %v1700, %v1722
      %v1734 = vmul.f32 %v1701, %v1722
      %v1735 = vmul.f32 %v1702, %v1722
      %v1736 = vmul.f32 %v1703, %v1722
      %v1737 = vmul.f32 %v1704, %v1722
      %v1738 = vmul.f32 %v1705, %v1722
      %v1739 = vmul.f32 %v1706, %v1722
      %v1740 = vmul.f32 %v1707, %v1722
      %v1741 = vmul.f32 %v1708, %v1722
      %v1742 = vmul.f32 %v1709, %v1722
      %v1743 = vmul.f32 %v1710, %v1722
      %v1744 = vmul.f32 %v1711, %v1722
      %v1745 = vmul.f32 %v1712, %v1722
      %v1746 = vmul.f32 %v1713, %v1722
      %v1747 = vmul.f32 %v1714, %v1722
      %v1748 = vmul.f32 %v1715, %v1722
      %v1749 = vmul.f32 %v1716, %v1722
      %v1750 = vmul.f32 %v1717, %v1722
      %v1751 = vmul.f32 %v1718, %v1722
      %v1752 = vmul.f32 %v1719, %v1722
      %v1753 = vmul.f32 %v1720, %v1722
      %v1754 = vmul.f32 %v1721, %v1722
      %v1755 = vadd.f32 %v1658, %v1723
      %v1756 = vadd.f32 %v1659, %v1724
      %v1757 = vadd.f32 %v1660, %v1725
      %v1758 = vadd.f32 %v1661, %v1726
      %v1759 = vadd.f32 %v1662, %v1727
      %v1760 = vadd.f32 %v1663, %v1728
      %v1761 = vadd.f32 %v1664, %v1729
      %v1762 = vadd.f32 %v1665, %v1730
      %v1763 = vadd.f32 %v1666, %v1731
      %v1764 = vadd.f32 %v1667, %v1732
      %v1765 = vadd.f32 %v1668, %v1733
      %v1766 = vadd.f32 %v1669, %v1734
      %v1767 = vadd.f32 %v1670, %v1735
      %v1768 = vadd.f32 %v1671, %v1736
      %v1769 = vadd.f32 %v1672, %v1737
      %v1770 = vadd.f32 %v1673, %v1738
      %v1771 = vadd.f32 %v1674, %v1739
      %v1772 = vadd.f32 %v1675, %v1740
      %v1773 = vadd.f32 %v1676, %v1741
      %v1774 = vadd.f32 %v1677, %v1742
      %v1775 = vadd.f32 %v1678, %v1743
      %v1776 = vadd.f32 %v1679, %v1744
      %v1777 = vadd.f32 %v1680, %v1745
      %v1778 = vadd.f32 %v1681, %v1746
      %v1779 = vadd.f32 %v1682, %v1747
      %v1780 = vadd.f32 %v1683, %v1748
      %v1781 = vadd.f32 %v1684, %v1749
      %v1782 = vadd.f32 %v1685, %v1750
      %v1783 = vadd.f32 %v1686, %v1751
      %v1784 = vadd.f32 %v1687, %v1752
      %v1785 = vadd.f32 %v1688, %v1753
      %v1786 = vadd.f32 %v1689, %v1754
      %s1787 = scalar_lea.vmem [#allocation2], 72
      %v1788 = vld [vmem:[%s1787] sm:$0xff]
      %v1789 = vld [vmem:[%s1787 + $0x8] sm:$0xff]
      %v1790 = vld [vmem:[%s1787 + $0x18] sm:$0xff]
      %v1791 = vld [vmem:[%s1787 + $0x20] sm:$0xff]
      %v1792 = vld [vmem:[%s1787 + $0x30] sm:$0xff]
      %v1793 = vld [vmem:[%s1787 + $0x38] sm:$0xff]
      %v1794 = vld [vmem:[%s1787 + $0x48] sm:$0xff]
      %v1795 = vld [vmem:[%s1787 + $0x50] sm:$0xff]
      %v1796 = vld [vmem:[%s1787 + $0x60] sm:$0xff]
      %v1797 = vld [vmem:[%s1787 + $0x68] sm:$0xff]
      %v1798 = vld [vmem:[%s1787 + $0x78] sm:$0xff]
      %v1799 = vld [vmem:[%s1787 + $0x80] sm:$0xff]
      %v1800 = vld [vmem:[%s1787 + $0x90] sm:$0xff]
      %v1801 = vld [vmem:[%s1787 + $0x98] sm:$0xff]
      %v1802 = vld [vmem:[%s1787 + $0xa8] sm:$0xff]
      %v1803 = vld [vmem:[%s1787 + $0xb0] sm:$0xff]
      %v1804 = vld [vmem:[%s1787 + $0xc0] sm:$0xff]
      %v1805 = vld [vmem:[%s1787 + $0xc8] sm:$0xff]
      %v1806 = vld [vmem:[%s1787 + $0xd8] sm:$0xff]
      %v1807 = vld [vmem:[%s1787 + $0xe0] sm:$0xff]
      %v1808 = vld [vmem:[%s1787 + $0xf0] sm:$0xff]
      %v1809 = vld [vmem:[%s1787 + $0xf8] sm:$0xff]
      %v1810 = vld [vmem:[%s1787 + $0x108] sm:$0xff]
      %v1811 = vld [vmem:[%s1787 + $0x110] sm:$0xff]
      %v1812 = vld [vmem:[%s1787 + $0x120] sm:$0xff]
      %v1813 = vld [vmem:[%s1787 + $0x128] sm:$0xff]
      %v1814 = vld [vmem:[%s1787 + $0x138] sm:$0xff]
      %v1815 = vld [vmem:[%s1787 + $0x140] sm:$0xff]
      %v1816 = vld [vmem:[%s1787 + $0x150] sm:$0xff]
      %v1817 = vld [vmem:[%s1787 + $0x158] sm:$0xff]
      %v1818 = vld [vmem:[%s1787 + $0x168] sm:$0xff]
      %v1819 = vld [vmem:[%s1787 + $0x170] sm:$0xff]
      %v1820 = vperm.slane %v326, 7
      %v1821 = vmul.f32 %v1788, %v1820
      %v1822 = vmul.f32 %v1789, %v1820
      %v1823 = vmul.f32 %v1790, %v1820
      %v1824 = vmul.f32 %v1791, %v1820
      %v1825 = vmul.f32 %v1792, %v1820
      %v1826 = vmul.f32 %v1793, %v1820
      %v1827 = vmul.f32 %v1794, %v1820
      %v1828 = vmul.f32 %v1795, %v1820
      %v1829 = vmul.f32 %v1796, %v1820
      %v1830 = vmul.f32 %v1797, %v1820
      %v1831 = vmul.f32 %v1798, %v1820
      %v1832 = vmul.f32 %v1799, %v1820
      %v1833 = vmul.f32 %v1800, %v1820
      %v1834 = vmul.f32 %v1801, %v1820
      %v1835 = vmul.f32 %v1802, %v1820
      %v1836 = vmul.f32 %v1803, %v1820
      %v1837 = vmul.f32 %v1804, %v1820
      %v1838 = vmul.f32 %v1805, %v1820
      %v1839 = vmul.f32 %v1806, %v1820
      %v1840 = vmul.f32 %v1807, %v1820
      %v1841 = vmul.f32 %v1808, %v1820
      %v1842 = vmul.f32 %v1809, %v1820
      %v1843 = vmul.f32 %v1810, %v1820
      %v1844 = vmul.f32 %v1811, %v1820
      %v1845 = vmul.f32 %v1812, %v1820
      %v1846 = vmul.f32 %v1813, %v1820
      %v1847 = vmul.f32 %v1814, %v1820
      %v1848 = vmul.f32 %v1815, %v1820
      %v1849 = vmul.f32 %v1816, %v1820
      %v1850 = vmul.f32 %v1817, %v1820
      %v1851 = vmul.f32 %v1818, %v1820
      %v1852 = vmul.f32 %v1819, %v1820
      %v1853 = vadd.f32 %v1755, %v1821
      %v1854 = vadd.f32 %v1756, %v1822
      %v1855 = vadd.f32 %v1757, %v1823
      %v1856 = vadd.f32 %v1758, %v1824
      %v1857 = vadd.f32 %v1759, %v1825
      %v1858 = vadd.f32 %v1760, %v1826
      %v1859 = vadd.f32 %v1761, %v1827
      %v1860 = vadd.f32 %v1762, %v1828
      %v1861 = vadd.f32 %v1763, %v1829
      %v1862 = vadd.f32 %v1764, %v1830
      %v1863 = vadd.f32 %v1765, %v1831
      %v1864 = vadd.f32 %v1766, %v1832
      %v1865 = vadd.f32 %v1767, %v1833
      %v1866 = vadd.f32 %v1768, %v1834
      %v1867 = vadd.f32 %v1769, %v1835
      %v1868 = vadd.f32 %v1770, %v1836
      %v1869 = vadd.f32 %v1771, %v1837
      %v1870 = vadd.f32 %v1772, %v1838
      %v1871 = vadd.f32 %v1773, %v1839
      %v1872 = vadd.f32 %v1774, %v1840
      %v1873 = vadd.f32 %v1775, %v1841
      %v1874 = vadd.f32 %v1776, %v1842
      %v1875 = vadd.f32 %v1777, %v1843
      %v1876 = vadd.f32 %v1778, %v1844
      %v1877 = vadd.f32 %v1779, %v1845
      %v1878 = vadd.f32 %v1780, %v1846
      %v1879 = vadd.f32 %v1781, %v1847
      %v1880 = vadd.f32 %v1782, %v1848
      %v1881 = vadd.f32 %v1783, %v1849
      %v1882 = vadd.f32 %v1784, %v1850
      %v1883 = vadd.f32 %v1785, %v1851
      %v1884 = vadd.f32 %v1786, %v1852
      %v1885 = vld [vmem:[%s1787 + $0x1] sm:$0xff]
      %v1886 = vld [vmem:[%s1787 + $0x9] sm:$0xff]
      %v1887 = vld [vmem:[%s1787 + $0x19] sm:$0xff]
      %v1888 = vld [vmem:[%s1787 + $0x21] sm:$0xff]
      %v1889 = vld [vmem:[%s1787 + $0x31] sm:$0xff]
      %v1890 = vld [vmem:[%s1787 + $0x39] sm:$0xff]
      %v1891 = vld [vmem:[%s1787 + $0x49] sm:$0xff]
      %v1892 = vld [vmem:[%s1787 + $0x51] sm:$0xff]
      %v1893 = vld [vmem:[%s1787 + $0x61] sm:$0xff]
      %v1894 = vld [vmem:[%s1787 + $0x69] sm:$0xff]
      %v1895 = vld [vmem:[%s1787 + $0x79] sm:$0xff]
      %v1896 = vld [vmem:[%s1787 + $0x81] sm:$0xff]
      %v1897 = vld [vmem:[%s1787 + $0x91] sm:$0xff]
      %v1898 = vld [vmem:[%s1787 + $0x99] sm:$0xff]
      %v1899 = vld [vmem:[%s1787 + $0xa9] sm:$0xff]
      %v1900 = vld [vmem:[%s1787 + $0xb1] sm:$0xff]
      %v1901 = vld [vmem:[%s1787 + $0xc1] sm:$0xff]
      %v1902 = vld [vmem:[%s1787 + $0xc9] sm:$0xff]
      %v1903 = vld [vmem:[%s1787 + $0xd9] sm:$0xff]
      %v1904 = vld [vmem:[%s1787 + $0xe1] sm:$0xff]
      %v1905 = vld [vmem:[%s1787 + $0xf1] sm:$0xff]
      %v1906 = vld [vmem:[%s1787 + $0xf9] sm:$0xff]
      %v1907 = vld [vmem:[%s1787 + $0x109] sm:$0xff]
      %v1908 = vld [vmem:[%s1787 + $0x111] sm:$0xff]
      %v1909 = vld [vmem:[%s1787 + $0x121] sm:$0xff]
      %v1910 = vld [vmem:[%s1787 + $0x129] sm:$0xff]
      %v1911 = vld [vmem:[%s1787 + $0x139] sm:$0xff]
      %v1912 = vld [vmem:[%s1787 + $0x141] sm:$0xff]
      %v1913 = vld [vmem:[%s1787 + $0x151] sm:$0xff]
      %v1914 = vld [vmem:[%s1787 + $0x159] sm:$0xff]
      %v1915 = vld [vmem:[%s1787 + $0x169] sm:$0xff]
      %v1916 = vld [vmem:[%s1787 + $0x171] sm:$0xff]
      %v1917 = vperm.slane %v327, 0
      %v1918 = vmul.f32 %v1885, %v1917
      %v1919 = vmul.f32 %v1886, %v1917
      %v1920 = vmul.f32 %v1887, %v1917
      %v1921 = vmul.f32 %v1888, %v1917
      %v1922 = vmul.f32 %v1889, %v1917
      %v1923 = vmul.f32 %v1890, %v1917
      %v1924 = vmul.f32 %v1891, %v1917
      %v1925 = vmul.f32 %v1892, %v1917
      %v1926 = vmul.f32 %v1893, %v1917
      %v1927 = vmul.f32 %v1894, %v1917
      %v1928 = vmul.f32 %v1895, %v1917
      %v1929 = vmul.f32 %v1896, %v1917
      %v1930 = vmul.f32 %v1897, %v1917
      %v1931 = vmul.f32 %v1898, %v1917
      %v1932 = vmul.f32 %v1899, %v1917
      %v1933 = vmul.f32 %v1900, %v1917
      %v1934 = vmul.f32 %v1901, %v1917
      %v1935 = vmul.f32 %v1902, %v1917
      %v1936 = vmul.f32 %v1903, %v1917
      %v1937 = vmul.f32 %v1904, %v1917
      %v1938 = vmul.f32 %v1905, %v1917
      %v1939 = vmul.f32 %v1906, %v1917
      %v1940 = vmul.f32 %v1907, %v1917
      %v1941 = vmul.f32 %v1908, %v1917
      %v1942 = vmul.f32 %v1909, %v1917
      %v1943 = vmul.f32 %v1910, %v1917
      %v1944 = vmul.f32 %v1911, %v1917
      %v1945 = vmul.f32 %v1912, %v1917
      %v1946 = vmul.f32 %v1913, %v1917
      %v1947 = vmul.f32 %v1914, %v1917
      %v1948 = vmul.f32 %v1915, %v1917
      %v1949 = vmul.f32 %v1916, %v1917
      %v1950 = vadd.f32 %v1853, %v1918
      %v1951 = vadd.f32 %v1854, %v1919
      %v1952 = vadd.f32 %v1855, %v1920
      %v1953 = vadd.f32 %v1856, %v1921
      %v1954 = vadd.f32 %v1857, %v1922
      %v1955 = vadd.f32 %v1858, %v1923
      %v1956 = vadd.f32 %v1859, %v1924
      %v1957 = vadd.f32 %v1860, %v1925
      %v1958 = vadd.f32 %v1861, %v1926
      %v1959 = vadd.f32 %v1862, %v1927
      %v1960 = vadd.f32 %v1863, %v1928
      %v1961 = vadd.f32 %v1864, %v1929
      %v1962 = vadd.f32 %v1865, %v1930
      %v1963 = vadd.f32 %v1866, %v1931
      %v1964 = vadd.f32 %v1867, %v1932
      %v1965 = vadd.f32 %v1868, %v1933
      %v1966 = vadd.f32 %v1869, %v1934
      %v1967 = vadd.f32 %v1870, %v1935
      %v1968 = vadd.f32 %v1871, %v1936
      %v1969 = vadd.f32 %v1872, %v1937
      %v1970 = vadd.f32 %v1873, %v1938
      %v1971 = vadd.f32 %v1874, %v1939
      %v1972 = vadd.f32 %v1875, %v1940
      %v1973 = vadd.f32 %v1876, %v1941
      %v1974 = vadd.f32 %v1877, %v1942
      %v1975 = vadd.f32 %v1878, %v1943
      %v1976 = vadd.f32 %v1879, %v1944
      %v1977 = vadd.f32 %v1880, %v1945
      %v1978 = vadd.f32 %v1881, %v1946
      %v1979 = vadd.f32 %v1882, %v1947
      %v1980 = vadd.f32 %v1883, %v1948
      %v1981 = vadd.f32 %v1884, %v1949
      %v1982 = vld [vmem:[%s1787 + $0x2] sm:$0xff]
      %v1983 = vld [vmem:[%s1787 + $0xa] sm:$0xff]
      %v1984 = vld [vmem:[%s1787 + $0x1a] sm:$0xff]
      %v1985 = vld [vmem:[%s1787 + $0x22] sm:$0xff]
      %v1986 = vld [vmem:[%s1787 + $0x32] sm:$0xff]
      %v1987 = vld [vmem:[%s1787 + $0x3a] sm:$0xff]
      %v1988 = vld [vmem:[%s1787 + $0x4a] sm:$0xff]
      %v1989 = vld [vmem:[%s1787 + $0x52] sm:$0xff]
      %v1990 = vld [vmem:[%s1787 + $0x62] sm:$0xff]
      %v1991 = vld [vmem:[%s1787 + $0x6a] sm:$0xff]
      %v1992 = vld [vmem:[%s1787 + $0x7a] sm:$0xff]
      %v1993 = vld [vmem:[%s1787 + $0x82] sm:$0xff]
      %v1994 = vld [vmem:[%s1787 + $0x92] sm:$0xff]
      %v1995 = vld [vmem:[%s1787 + $0x9a] sm:$0xff]
      %v1996 = vld [vmem:[%s1787 + $0xaa] sm:$0xff]
      %v1997 = vld [vmem:[%s1787 + $0xb2] sm:$0xff]
      %v1998 = vld [vmem:[%s1787 + $0xc2] sm:$0xff]
      %v1999 = vld [vmem:[%s1787 + $0xca] sm:$0xff]
      %v2000 = vld [vmem:[%s1787 + $0xda] sm:$0xff]
      %v2001 = vld [vmem:[%s1787 + $0xe2] sm:$0xff]
      %v2002 = vld [vmem:[%s1787 + $0xf2] sm:$0xff]
      %v2003 = vld [vmem:[%s1787 + $0xfa] sm:$0xff]
      %v2004 = vld [vmem:[%s1787 + $0x10a] sm:$0xff]
      %v2005 = vld [vmem:[%s1787 + $0x112] sm:$0xff]
      %v2006 = vld [vmem:[%s1787 + $0x122] sm:$0xff]
      %v2007 = vld [vmem:[%s1787 + $0x12a] sm:$0xff]
      %v2008 = vld [vmem:[%s1787 + $0x13a] sm:$0xff]
      %v2009 = vld [vmem:[%s1787 + $0x142] sm:$0xff]
      %v2010 = vld [vmem:[%s1787 + $0x152] sm:$0xff]
      %v2011 = vld [vmem:[%s1787 + $0x15a] sm:$0xff]
      %v2012 = vld [vmem:[%s1787 + $0x16a] sm:$0xff]
      %v2013 = vld [vmem:[%s1787 + $0x172] sm:$0xff]
      %v2014 = vperm.slane %v327, 1
      %v2015 = vmul.f32 %v1982, %v2014
      %v2016 = vmul.f32 %v1983, %v2014
      %v2017 = vmul.f32 %v1984, %v2014
      %v2018 = vmul.f32 %v1985, %v2014
      %v2019 = vmul.f32 %v1986, %v2014
      %v2020 = vmul.f32 %v1987, %v2014
      %v2021 = vmul.f32 %v1988, %v2014
      %v2022 = vmul.f32 %v1989, %v2014
      %v2023 = vmul.f32 %v1990, %v2014
      %v2024 = vmul.f32 %v1991, %v2014
      %v2025 = vmul.f32 %v1992, %v2014
      %v2026 = vmul.f32 %v1993, %v2014
      %v2027 = vmul.f32 %v1994, %v2014
      %v2028 = vmul.f32 %v1995, %v2014
      %v2029 = vmul.f32 %v1996, %v2014
      %v2030 = vmul.f32 %v1997, %v2014
      %v2031 = vmul.f32 %v1998, %v2014
      %v2032 = vmul.f32 %v1999, %v2014
      %v2033 = vmul.f32 %v2000, %v2014
      %v2034 = vmul.f32 %v2001, %v2014
      %v2035 = vmul.f32 %v2002, %v2014
      %v2036 = vmul.f32 %v2003, %v2014
      %v2037 = vmul.f32 %v2004, %v2014
      %v2038 = vmul.f32 %v2005, %v2014
      %v2039 = vmul.f32 %v2006, %v2014
      %v2040 = vmul.f32 %v2007, %v2014
      %v2041 = vmul.f32 %v2008, %v2014
      %v2042 = vmul.f32 %v2009, %v2014
      %v2043 = vmul.f32 %v2010, %v2014
      %v2044 = vmul.f32 %v2011, %v2014
      %v2045 = vmul.f32 %v2012, %v2014
      %v2046 = vmul.f32 %v2013, %v2014
      %v2047 = vadd.f32 %v1950, %v2015
      %v2048 = vadd.f32 %v1951, %v2016
      %v2049 = vadd.f32 %v1952, %v2017
      %v2050 = vadd.f32 %v1953, %v2018
      %v2051 = vadd.f32 %v1954, %v2019
      %v2052 = vadd.f32 %v1955, %v2020
      %v2053 = vadd.f32 %v1956, %v2021
      %v2054 = vadd.f32 %v1957, %v2022
      %v2055 = vadd.f32 %v1958, %v2023
      %v2056 = vadd.f32 %v1959, %v2024
      %v2057 = vadd.f32 %v1960, %v2025
      %v2058 = vadd.f32 %v1961, %v2026
      %v2059 = vadd.f32 %v1962, %v2027
      %v2060 = vadd.f32 %v1963, %v2028
      %v2061 = vadd.f32 %v1964, %v2029
      %v2062 = vadd.f32 %v1965, %v2030
      %v2063 = vadd.f32 %v1966, %v2031
      %v2064 = vadd.f32 %v1967, %v2032
      %v2065 = vadd.f32 %v1968, %v2033
      %v2066 = vadd.f32 %v1969, %v2034
      %v2067 = vadd.f32 %v1970, %v2035
      %v2068 = vadd.f32 %v1971, %v2036
      %v2069 = vadd.f32 %v1972, %v2037
      %v2070 = vadd.f32 %v1973, %v2038
      %v2071 = vadd.f32 %v1974, %v2039
      %v2072 = vadd.f32 %v1975, %v2040
      %v2073 = vadd.f32 %v1976, %v2041
      %v2074 = vadd.f32 %v1977, %v2042
      %v2075 = vadd.f32 %v1978, %v2043
      %v2076 = vadd.f32 %v1979, %v2044
      %v2077 = vadd.f32 %v1980, %v2045
      %v2078 = vadd.f32 %v1981, %v2046
      %v2079 = vld [vmem:[%s1787 + $0x3] sm:$0xff]
      %v2080 = vld [vmem:[%s1787 + $0xb] sm:$0xff]
      %v2081 = vld [vmem:[%s1787 + $0x1b] sm:$0xff]
      %v2082 = vld [vmem:[%s1787 + $0x23] sm:$0xff]
      %v2083 = vld [vmem:[%s1787 + $0x33] sm:$0xff]
      %v2084 = vld [vmem:[%s1787 + $0x3b] sm:$0xff]
      %v2085 = vld [vmem:[%s1787 + $0x4b] sm:$0xff]
      %v2086 = vld [vmem:[%s1787 + $0x53] sm:$0xff]
      %v2087 = vld [vmem:[%s1787 + $0x63] sm:$0xff]
      %v2088 = vld [vmem:[%s1787 + $0x6b] sm:$0xff]
      %v2089 = vld [vmem:[%s1787 + $0x7b] sm:$0xff]
      %v2090 = vld [vmem:[%s1787 + $0x83] sm:$0xff]
      %v2091 = vld [vmem:[%s1787 + $0x93] sm:$0xff]
      %v2092 = vld [vmem:[%s1787 + $0x9b] sm:$0xff]
      %v2093 = vld [vmem:[%s1787 + $0xab] sm:$0xff]
      %v2094 = vld [vmem:[%s1787 + $0xb3] sm:$0xff]
      %v2095 = vld [vmem:[%s1787 + $0xc3] sm:$0xff]
      %v2096 = vld [vmem:[%s1787 + $0xcb] sm:$0xff]
      %v2097 = vld [vmem:[%s1787 + $0xdb] sm:$0xff]
      %v2098 = vld [vmem:[%s1787 + $0xe3] sm:$0xff]
      %v2099 = vld [vmem:[%s1787 + $0xf3] sm:$0xff]
      %v2100 = vld [vmem:[%s1787 + $0xfb] sm:$0xff]
      %v2101 = vld [vmem:[%s1787 + $0x10b] sm:$0xff]
      %v2102 = vld [vmem:[%s1787 + $0x113] sm:$0xff]
      %v2103 = vld [vmem:[%s1787 + $0x123] sm:$0xff]
      %v2104 = vld [vmem:[%s1787 + $0x12b] sm:$0xff]
      %v2105 = vld [vmem:[%s1787 + $0x13b] sm:$0xff]
      %v2106 = vld [vmem:[%s1787 + $0x143] sm:$0xff]
      %v2107 = vld [vmem:[%s1787 + $0x153] sm:$0xff]
      %v2108 = vld [vmem:[%s1787 + $0x15b] sm:$0xff]
      %v2109 = vld [vmem:[%s1787 + $0x16b] sm:$0xff]
      %v2110 = vld [vmem:[%s1787 + $0x173] sm:$0xff]
      %v2111 = vperm.slane %v327, 2
      %v2112 = vmul.f32 %v2079, %v2111
      %v2113 = vmul.f32 %v2080, %v2111
      %v2114 = vmul.f32 %v2081, %v2111
      %v2115 = vmul.f32 %v2082, %v2111
      %v2116 = vmul.f32 %v2083, %v2111
      %v2117 = vmul.f32 %v2084, %v2111
      %v2118 = vmul.f32 %v2085, %v2111
      %v2119 = vmul.f32 %v2086, %v2111
      %v2120 = vmul.f32 %v2087, %v2111
      %v2121 = vmul.f32 %v2088, %v2111
      %v2122 = vmul.f32 %v2089, %v2111
      %v2123 = vmul.f32 %v2090, %v2111
      %v2124 = vmul.f32 %v2091, %v2111
      %v2125 = vmul.f32 %v2092, %v2111
      %v2126 = vmul.f32 %v2093, %v2111
      %v2127 = vmul.f32 %v2094, %v2111
      %v2128 = vmul.f32 %v2095, %v2111
      %v2129 = vmul.f32 %v2096, %v2111
      %v2130 = vmul.f32 %v2097, %v2111
      %v2131 = vmul.f32 %v2098, %v2111
      %v2132 = vmul.f32 %v2099, %v2111
      %v2133 = vmul.f32 %v2100, %v2111
      %v2134 = vmul.f32 %v2101, %v2111
      %v2135 = vmul.f32 %v2102, %v2111
      %v2136 = vmul.f32 %v2103, %v2111
      %v2137 = vmul.f32 %v2104, %v2111
      %v2138 = vmul.f32 %v2105, %v2111
      %v2139 = vmul.f32 %v2106, %v2111
      %v2140 = vmul.f32 %v2107, %v2111
      %v2141 = vmul.f32 %v2108, %v2111
      %v2142 = vmul.f32 %v2109, %v2111
      %v2143 = vmul.f32 %v2110, %v2111
      %v2144 = vadd.f32 %v2047, %v2112
      %v2145 = vadd.f32 %v2048, %v2113
      %v2146 = vadd.f32 %v2049, %v2114
      %v2147 = vadd.f32 %v2050, %v2115
      %v2148 = vadd.f32 %v2051, %v2116
      %v2149 = vadd.f32 %v2052, %v2117
      %v2150 = vadd.f32 %v2053, %v2118
      %v2151 = vadd.f32 %v2054, %v2119
      %v2152 = vadd.f32 %v2055, %v2120
      %v2153 = vadd.f32 %v2056, %v2121
      %v2154 = vadd.f32 %v2057, %v2122
      %v2155 = vadd.f32 %v2058, %v2123
      %v2156 = vadd.f32 %v2059, %v2124
      %v2157 = vadd.f32 %v2060, %v2125
      %v2158 = vadd.f32 %v2061, %v2126
      %v2159 = vadd.f32 %v2062, %v2127
      %v2160 = vadd.f32 %v2063, %v2128
      %v2161 = vadd.f32 %v2064, %v2129
      %v2162 = vadd.f32 %v2065, %v2130
      %v2163 = vadd.f32 %v2066, %v2131
      %v2164 = vadd.f32 %v2067, %v2132
      %v2165 = vadd.f32 %v2068, %v2133
      %v2166 = vadd.f32 %v2069, %v2134
      %v2167 = vadd.f32 %v2070, %v2135
      %v2168 = vadd.f32 %v2071, %v2136
      %v2169 = vadd.f32 %v2072, %v2137
      %v2170 = vadd.f32 %v2073, %v2138
      %v2171 = vadd.f32 %v2074, %v2139
      %v2172 = vadd.f32 %v2075, %v2140
      %v2173 = vadd.f32 %v2076, %v2141
      %v2174 = vadd.f32 %v2077, %v2142
      %v2175 = vadd.f32 %v2078, %v2143
      %v2176 = vld [vmem:[%s1787 + $0x4] sm:$0xff]
      %v2177 = vld [vmem:[%s1787 + $0xc] sm:$0xff]
      %v2178 = vld [vmem:[%s1787 + $0x1c] sm:$0xff]
      %v2179 = vld [vmem:[%s1787 + $0x24] sm:$0xff]
      %v2180 = vld [vmem:[%s1787 + $0x34] sm:$0xff]
      %v2181 = vld [vmem:[%s1787 + $0x3c] sm:$0xff]
      %v2182 = vld [vmem:[%s1787 + $0x4c] sm:$0xff]
      %v2183 = vld [vmem:[%s1787 + $0x54] sm:$0xff]
      %v2184 = vld [vmem:[%s1787 + $0x64] sm:$0xff]
      %v2185 = vld [vmem:[%s1787 + $0x6c] sm:$0xff]
      %v2186 = vld [vmem:[%s1787 + $0x7c] sm:$0xff]
      %v2187 = vld [vmem:[%s1787 + $0x84] sm:$0xff]
      %v2188 = vld [vmem:[%s1787 + $0x94] sm:$0xff]
      %v2189 = vld [vmem:[%s1787 + $0x9c] sm:$0xff]
      %v2190 = vld [vmem:[%s1787 + $0xac] sm:$0xff]
      %v2191 = vld [vmem:[%s1787 + $0xb4] sm:$0xff]
      %v2192 = vld [vmem:[%s1787 + $0xc4] sm:$0xff]
      %v2193 = vld [vmem:[%s1787 + $0xcc] sm:$0xff]
      %v2194 = vld [vmem:[%s1787 + $0xdc] sm:$0xff]
      %v2195 = vld [vmem:[%s1787 + $0xe4] sm:$0xff]
      %v2196 = vld [vmem:[%s1787 + $0xf4] sm:$0xff]
      %v2197 = vld [vmem:[%s1787 + $0xfc] sm:$0xff]
      %v2198 = vld [vmem:[%s1787 + $0x10c] sm:$0xff]
      %v2199 = vld [vmem:[%s1787 + $0x114] sm:$0xff]
      %v2200 = vld [vmem:[%s1787 + $0x124] sm:$0xff]
      %v2201 = vld [vmem:[%s1787 + $0x12c] sm:$0xff]
      %v2202 = vld [vmem:[%s1787 + $0x13c] sm:$0xff]
      %v2203 = vld [vmem:[%s1787 + $0x144] sm:$0xff]
      %v2204 = vld [vmem:[%s1787 + $0x154] sm:$0xff]
      %v2205 = vld [vmem:[%s1787 + $0x15c] sm:$0xff]
      %v2206 = vld [vmem:[%s1787 + $0x16c] sm:$0xff]
      %v2207 = vld [vmem:[%s1787 + $0x174] sm:$0xff]
      %v2208 = vperm.slane %v327, 3
      %v2209 = vmul.f32 %v2176, %v2208
      %v2210 = vmul.f32 %v2177, %v2208
      %v2211 = vmul.f32 %v2178, %v2208
      %v2212 = vmul.f32 %v2179, %v2208
      %v2213 = vmul.f32 %v2180, %v2208
      %v2214 = vmul.f32 %v2181, %v2208
      %v2215 = vmul.f32 %v2182, %v2208
      %v2216 = vmul.f32 %v2183, %v2208
      %v2217 = vmul.f32 %v2184, %v2208
      %v2218 = vmul.f32 %v2185, %v2208
      %v2219 = vmul.f32 %v2186, %v2208
      %v2220 = vmul.f32 %v2187, %v2208
      %v2221 = vmul.f32 %v2188, %v2208
      %v2222 = vmul.f32 %v2189, %v2208
      %v2223 = vmul.f32 %v2190, %v2208
      %v2224 = vmul.f32 %v2191, %v2208
      %v2225 = vmul.f32 %v2192, %v2208
      %v2226 = vmul.f32 %v2193, %v2208
      %v2227 = vmul.f32 %v2194, %v2208
      %v2228 = vmul.f32 %v2195, %v2208
      %v2229 = vmul.f32 %v2196, %v2208
      %v2230 = vmul.f32 %v2197, %v2208
      %v2231 = vmul.f32 %v2198, %v2208
      %v2232 = vmul.f32 %v2199, %v2208
      %v2233 = vmul.f32 %v2200, %v2208
      %v2234 = vmul.f32 %v2201, %v2208
      %v2235 = vmul.f32 %v2202, %v2208
      %v2236 = vmul.f32 %v2203, %v2208
      %v2237 = vmul.f32 %v2204, %v2208
      %v2238 = vmul.f32 %v2205, %v2208
      %v2239 = vmul.f32 %v2206, %v2208
      %v2240 = vmul.f32 %v2207, %v2208
      %v2241 = vadd.f32 %v2144, %v2209
      %v2242 = vadd.f32 %v2145, %v2210
      %v2243 = vadd.f32 %v2146, %v2211
      %v2244 = vadd.f32 %v2147, %v2212
      %v2245 = vadd.f32 %v2148, %v2213
      %v2246 = vadd.f32 %v2149, %v2214
      %v2247 = vadd.f32 %v2150, %v2215
      %v2248 = vadd.f32 %v2151, %v2216
      %v2249 = vadd.f32 %v2152, %v2217
      %v2250 = vadd.f32 %v2153, %v2218
      %v2251 = vadd.f32 %v2154, %v2219
      %v2252 = vadd.f32 %v2155, %v2220
      %v2253 = vadd.f32 %v2156, %v2221
      %v2254 = vadd.f32 %v2157, %v2222
      %v2255 = vadd.f32 %v2158, %v2223
      %v2256 = vadd.f32 %v2159, %v2224
      %v2257 = vadd.f32 %v2160, %v2225
      %v2258 = vadd.f32 %v2161, %v2226
      %v2259 = vadd.f32 %v2162, %v2227
      %v2260 = vadd.f32 %v2163, %v2228
      %v2261 = vadd.f32 %v2164, %v2229
      %v2262 = vadd.f32 %v2165, %v2230
      %v2263 = vadd.f32 %v2166, %v2231
      %v2264 = vadd.f32 %v2167, %v2232
      %v2265 = vadd.f32 %v2168, %v2233
      %v2266 = vadd.f32 %v2169, %v2234
      %v2267 = vadd.f32 %v2170, %v2235
      %v2268 = vadd.f32 %v2171, %v2236
      %v2269 = vadd.f32 %v2172, %v2237
      %v2270 = vadd.f32 %v2173, %v2238
      %v2271 = vadd.f32 %v2174, %v2239
      %v2272 = vadd.f32 %v2175, %v2240
      %s2273 = scalar_lea.vmem [#allocation2], 96
      %v2274 = vld [vmem:[%s2273] sm:$0xff]
      %v2275 = vld [vmem:[%s2273 + $0x8] sm:$0xff]
      %v2276 = vld [vmem:[%s2273 + $0x18] sm:$0xff]
      %v2277 = vld [vmem:[%s2273 + $0x20] sm:$0xff]
      %v2278 = vld [vmem:[%s2273 + $0x30] sm:$0xff]
      %v2279 = vld [vmem:[%s2273 + $0x38] sm:$0xff]
      %v2280 = vld [vmem:[%s2273 + $0x48] sm:$0xff]
      %v2281 = vld [vmem:[%s2273 + $0x50] sm:$0xff]
      %v2282 = vld [vmem:[%s2273 + $0x60] sm:$0xff]
      %v2283 = vld [vmem:[%s2273 + $0x68] sm:$0xff]
      %v2284 = vld [vmem:[%s2273 + $0x78] sm:$0xff]
      %v2285 = vld [vmem:[%s2273 + $0x80] sm:$0xff]
      %v2286 = vld [vmem:[%s2273 + $0x90] sm:$0xff]
      %v2287 = vld [vmem:[%s2273 + $0x98] sm:$0xff]
      %v2288 = vld [vmem:[%s2273 + $0xa8] sm:$0xff]
      %v2289 = vld [vmem:[%s2273 + $0xb0] sm:$0xff]
      %v2290 = vld [vmem:[%s2273 + $0xc0] sm:$0xff]
      %v2291 = vld [vmem:[%s2273 + $0xc8] sm:$0xff]
      %v2292 = vld [vmem:[%s2273 + $0xd8] sm:$0xff]
      %v2293 = vld [vmem:[%s2273 + $0xe0] sm:$0xff]
      %v2294 = vld [vmem:[%s2273 + $0xf0] sm:$0xff]
      %v2295 = vld [vmem:[%s2273 + $0xf8] sm:$0xff]
      %v2296 = vld [vmem:[%s2273 + $0x108] sm:$0xff]
      %v2297 = vld [vmem:[%s2273 + $0x110] sm:$0xff]
      %v2298 = vld [vmem:[%s2273 + $0x120] sm:$0xff]
      %v2299 = vld [vmem:[%s2273 + $0x128] sm:$0xff]
      %v2300 = vld [vmem:[%s2273 + $0x138] sm:$0xff]
      %v2301 = vld [vmem:[%s2273 + $0x140] sm:$0xff]
      %v2302 = vld [vmem:[%s2273 + $0x150] sm:$0xff]
      %v2303 = vld [vmem:[%s2273 + $0x158] sm:$0xff]
      %v2304 = vld [vmem:[%s2273 + $0x168] sm:$0xff]
      %v2305 = vld [vmem:[%s2273 + $0x170] sm:$0xff]
      %v2306 = vperm.slane %v327, 4
      %v2307 = vmul.f32 %v2274, %v2306
      %v2308 = vmul.f32 %v2275, %v2306
      %v2309 = vmul.f32 %v2276, %v2306
      %v2310 = vmul.f32 %v2277, %v2306
      %v2311 = vmul.f32 %v2278, %v2306
      %v2312 = vmul.f32 %v2279, %v2306
      %v2313 = vmul.f32 %v2280, %v2306
      %v2314 = vmul.f32 %v2281, %v2306
      %v2315 = vmul.f32 %v2282, %v2306
      %v2316 = vmul.f32 %v2283, %v2306
      %v2317 = vmul.f32 %v2284, %v2306
      %v2318 = vmul.f32 %v2285, %v2306
      %v2319 = vmul.f32 %v2286, %v2306
      %v2320 = vmul.f32 %v2287, %v2306
      %v2321 = vmul.f32 %v2288, %v2306
      %v2322 = vmul.f32 %v2289, %v2306
      %v2323 = vmul.f32 %v2290, %v2306
      %v2324 = vmul.f32 %v2291, %v2306
      %v2325 = vmul.f32 %v2292, %v2306
      %v2326 = vmul.f32 %v2293, %v2306
      %v2327 = vmul.f32 %v2294, %v2306
      %v2328 = vmul.f32 %v2295, %v2306
      %v2329 = vmul.f32 %v2296, %v2306
      %v2330 = vmul.f32 %v2297, %v2306
      %v2331 = vmul.f32 %v2298, %v2306
      %v2332 = vmul.f32 %v2299, %v2306
      %v2333 = vmul.f32 %v2300, %v2306
      %v2334 = vmul.f32 %v2301, %v2306
      %v2335 = vmul.f32 %v2302, %v2306
      %v2336 = vmul.f32 %v2303, %v2306
      %v2337 = vmul.f32 %v2304, %v2306
      %v2338 = vmul.f32 %v2305, %v2306
      %v2339 = vadd.f32 %v2241, %v2307
      %v2340 = vadd.f32 %v2242, %v2308
      %v2341 = vadd.f32 %v2243, %v2309
      %v2342 = vadd.f32 %v2244, %v2310
      %v2343 = vadd.f32 %v2245, %v2311
      %v2344 = vadd.f32 %v2246, %v2312
      %v2345 = vadd.f32 %v2247, %v2313
      %v2346 = vadd.f32 %v2248, %v2314
      %v2347 = vadd.f32 %v2249, %v2315
      %v2348 = vadd.f32 %v2250, %v2316
      %v2349 = vadd.f32 %v2251, %v2317
      %v2350 = vadd.f32 %v2252, %v2318
      %v2351 = vadd.f32 %v2253, %v2319
      %v2352 = vadd.f32 %v2254, %v2320
      %v2353 = vadd.f32 %v2255, %v2321
      %v2354 = vadd.f32 %v2256, %v2322
      %v2355 = vadd.f32 %v2257, %v2323
      %v2356 = vadd.f32 %v2258, %v2324
      %v2357 = vadd.f32 %v2259, %v2325
      %v2358 = vadd.f32 %v2260, %v2326
      %v2359 = vadd.f32 %v2261, %v2327
      %v2360 = vadd.f32 %v2262, %v2328
      %v2361 = vadd.f32 %v2263, %v2329
      %v2362 = vadd.f32 %v2264, %v2330
      %v2363 = vadd.f32 %v2265, %v2331
      %v2364 = vadd.f32 %v2266, %v2332
      %v2365 = vadd.f32 %v2267, %v2333
      %v2366 = vadd.f32 %v2268, %v2334
      %v2367 = vadd.f32 %v2269, %v2335
      %v2368 = vadd.f32 %v2270, %v2336
      %v2369 = vadd.f32 %v2271, %v2337
      %v2370 = vadd.f32 %v2272, %v2338
      %v2371 = vld [vmem:[%s2273 + $0x1] sm:$0xff]
      %v2372 = vld [vmem:[%s2273 + $0x9] sm:$0xff]
      %v2373 = vld [vmem:[%s2273 + $0x19] sm:$0xff]
      %v2374 = vld [vmem:[%s2273 + $0x21] sm:$0xff]
      %v2375 = vld [vmem:[%s2273 + $0x31] sm:$0xff]
      %v2376 = vld [vmem:[%s2273 + $0x39] sm:$0xff]
      %v2377 = vld [vmem:[%s2273 + $0x49] sm:$0xff]
      %v2378 = vld [vmem:[%s2273 + $0x51] sm:$0xff]
      %v2379 = vld [vmem:[%s2273 + $0x61] sm:$0xff]
      %v2380 = vld [vmem:[%s2273 + $0x69] sm:$0xff]
      %v2381 = vld [vmem:[%s2273 + $0x79] sm:$0xff]
      %v2382 = vld [vmem:[%s2273 + $0x81] sm:$0xff]
      %v2383 = vld [vmem:[%s2273 + $0x91] sm:$0xff]
      %v2384 = vld [vmem:[%s2273 + $0x99] sm:$0xff]
      %v2385 = vld [vmem:[%s2273 + $0xa9] sm:$0xff]
      %v2386 = vld [vmem:[%s2273 + $0xb1] sm:$0xff]
      %v2387 = vld [vmem:[%s2273 + $0xc1] sm:$0xff]
      %v2388 = vld [vmem:[%s2273 + $0xc9] sm:$0xff]
      %v2389 = vld [vmem:[%s2273 + $0xd9] sm:$0xff]
      %v2390 = vld [vmem:[%s2273 + $0xe1] sm:$0xff]
      %v2391 = vld [vmem:[%s2273 + $0xf1] sm:$0xff]
      %v2392 = vld [vmem:[%s2273 + $0xf9] sm:$0xff]
      %v2393 = vld [vmem:[%s2273 + $0x109] sm:$0xff]
      %v2394 = vld [vmem:[%s2273 + $0x111] sm:$0xff]
      %v2395 = vld [vmem:[%s2273 + $0x121] sm:$0xff]
      %v2396 = vld [vmem:[%s2273 + $0x129] sm:$0xff]
      %v2397 = vld [vmem:[%s2273 + $0x139] sm:$0xff]
      %v2398 = vld [vmem:[%s2273 + $0x141] sm:$0xff]
      %v2399 = vld [vmem:[%s2273 + $0x151] sm:$0xff]
      %v2400 = vld [vmem:[%s2273 + $0x159] sm:$0xff]
      %v2401 = vld [vmem:[%s2273 + $0x169] sm:$0xff]
      %v2402 = vld [vmem:[%s2273 + $0x171] sm:$0xff]
      %v2403 = vperm.slane %v327, 5
      %v2404 = vmul.f32 %v2371, %v2403
      %v2405 = vmul.f32 %v2372, %v2403
      %v2406 = vmul.f32 %v2373, %v2403
      %v2407 = vmul.f32 %v2374, %v2403
      %v2408 = vmul.f32 %v2375, %v2403
      %v2409 = vmul.f32 %v2376, %v2403
      %v2410 = vmul.f32 %v2377, %v2403
      %v2411 = vmul.f32 %v2378, %v2403
      %v2412 = vmul.f32 %v2379, %v2403
      %v2413 = vmul.f32 %v2380, %v2403
      %v2414 = vmul.f32 %v2381, %v2403
      %v2415 = vmul.f32 %v2382, %v2403
      %v2416 = vmul.f32 %v2383, %v2403
      %v2417 = vmul.f32 %v2384, %v2403
      %v2418 = vmul.f32 %v2385, %v2403
      %v2419 = vmul.f32 %v2386, %v2403
      %v2420 = vmul.f32 %v2387, %v2403
      %v2421 = vmul.f32 %v2388, %v2403
      %v2422 = vmul.f32 %v2389, %v2403
      %v2423 = vmul.f32 %v2390, %v2403
      %v2424 = vmul.f32 %v2391, %v2403
      %v2425 = vmul.f32 %v2392, %v2403
      %v2426 = vmul.f32 %v2393, %v2403
      %v2427 = vmul.f32 %v2394, %v2403
      %v2428 = vmul.f32 %v2395, %v2403
      %v2429 = vmul.f32 %v2396, %v2403
      %v2430 = vmul.f32 %v2397, %v2403
      %v2431 = vmul.f32 %v2398, %v2403
      %v2432 = vmul.f32 %v2399, %v2403
      %v2433 = vmul.f32 %v2400, %v2403
      %v2434 = vmul.f32 %v2401, %v2403
      %v2435 = vmul.f32 %v2402, %v2403
      %v2436 = vadd.f32 %v2339, %v2404
      %v2437 = vadd.f32 %v2340, %v2405
      %v2438 = vadd.f32 %v2341, %v2406
      %v2439 = vadd.f32 %v2342, %v2407
      %v2440 = vadd.f32 %v2343, %v2408
      %v2441 = vadd.f32 %v2344, %v2409
      %v2442 = vadd.f32 %v2345, %v2410
      %v2443 = vadd.f32 %v2346, %v2411
      %v2444 = vadd.f32 %v2347, %v2412
      %v2445 = vadd.f32 %v2348, %v2413
      %v2446 = vadd.f32 %v2349, %v2414
      %v2447 = vadd.f32 %v2350, %v2415
      %v2448 = vadd.f32 %v2351, %v2416
      %v2449 = vadd.f32 %v2352, %v2417
      %v2450 = vadd.f32 %v2353, %v2418
      %v2451 = vadd.f32 %v2354, %v2419
      %v2452 = vadd.f32 %v2355, %v2420
      %v2453 = vadd.f32 %v2356, %v2421
      %v2454 = vadd.f32 %v2357, %v2422
      %v2455 = vadd.f32 %v2358, %v2423
      %v2456 = vadd.f32 %v2359, %v2424
      %v2457 = vadd.f32 %v2360, %v2425
      %v2458 = vadd.f32 %v2361, %v2426
      %v2459 = vadd.f32 %v2362, %v2427
      %v2460 = vadd.f32 %v2363, %v2428
      %v2461 = vadd.f32 %v2364, %v2429
      %v2462 = vadd.f32 %v2365, %v2430
      %v2463 = vadd.f32 %v2366, %v2431
      %v2464 = vadd.f32 %v2367, %v2432
      %v2465 = vadd.f32 %v2368, %v2433
      %v2466 = vadd.f32 %v2369, %v2434
      %v2467 = vadd.f32 %v2370, %v2435
      %v2468 = vld [vmem:[%s2273 + $0x2] sm:$0xff]
      %v2469 = vld [vmem:[%s2273 + $0xa] sm:$0xff]
      %v2470 = vld [vmem:[%s2273 + $0x1a] sm:$0xff]
      %v2471 = vld [vmem:[%s2273 + $0x22] sm:$0xff]
      %v2472 = vld [vmem:[%s2273 + $0x32] sm:$0xff]
      %v2473 = vld [vmem:[%s2273 + $0x3a] sm:$0xff]
      %v2474 = vld [vmem:[%s2273 + $0x4a] sm:$0xff]
      %v2475 = vld [vmem:[%s2273 + $0x52] sm:$0xff]
      %v2476 = vld [vmem:[%s2273 + $0x62] sm:$0xff]
      %v2477 = vld [vmem:[%s2273 + $0x6a] sm:$0xff]
      %v2478 = vld [vmem:[%s2273 + $0x7a] sm:$0xff]
      %v2479 = vld [vmem:[%s2273 + $0x82] sm:$0xff]
      %v2480 = vld [vmem:[%s2273 + $0x92] sm:$0xff]
      %v2481 = vld [vmem:[%s2273 + $0x9a] sm:$0xff]
      %v2482 = vld [vmem:[%s2273 + $0xaa] sm:$0xff]
      %v2483 = vld [vmem:[%s2273 + $0xb2] sm:$0xff]
      %v2484 = vld [vmem:[%s2273 + $0xc2] sm:$0xff]
      %v2485 = vld [vmem:[%s2273 + $0xca] sm:$0xff]
      %v2486 = vld [vmem:[%s2273 + $0xda] sm:$0xff]
      %v2487 = vld [vmem:[%s2273 + $0xe2] sm:$0xff]
      %v2488 = vld [vmem:[%s2273 + $0xf2] sm:$0xff]
      %v2489 = vld [vmem:[%s2273 + $0xfa] sm:$0xff]
      %v2490 = vld [vmem:[%s2273 + $0x10a] sm:$0xff]
      %v2491 = vld [vmem:[%s2273 + $0x112] sm:$0xff]
      %v2492 = vld [vmem:[%s2273 + $0x122] sm:$0xff]
      %v2493 = vld [vmem:[%s2273 + $0x12a] sm:$0xff]
      %v2494 = vld [vmem:[%s2273 + $0x13a] sm:$0xff]
      %v2495 = vld [vmem:[%s2273 + $0x142] sm:$0xff]
      %v2496 = vld [vmem:[%s2273 + $0x152] sm:$0xff]
      %v2497 = vld [vmem:[%s2273 + $0x15a] sm:$0xff]
      %v2498 = vld [vmem:[%s2273 + $0x16a] sm:$0xff]
      %v2499 = vld [vmem:[%s2273 + $0x172] sm:$0xff]
      %v2500 = vperm.slane %v327, 6
      %v2501 = vmul.f32 %v2468, %v2500
      %v2502 = vmul.f32 %v2469, %v2500
      %v2503 = vmul.f32 %v2470, %v2500
      %v2504 = vmul.f32 %v2471, %v2500
      %v2505 = vmul.f32 %v2472, %v2500
      %v2506 = vmul.f32 %v2473, %v2500
      %v2507 = vmul.f32 %v2474, %v2500
      %v2508 = vmul.f32 %v2475, %v2500
      %v2509 = vmul.f32 %v2476, %v2500
      %v2510 = vmul.f32 %v2477, %v2500
      %v2511 = vmul.f32 %v2478, %v2500
      %v2512 = vmul.f32 %v2479, %v2500
      %v2513 = vmul.f32 %v2480, %v2500
      %v2514 = vmul.f32 %v2481, %v2500
      %v2515 = vmul.f32 %v2482, %v2500
      %v2516 = vmul.f32 %v2483, %v2500
      %v2517 = vmul.f32 %v2484, %v2500
      %v2518 = vmul.f32 %v2485, %v2500
      %v2519 = vmul.f32 %v2486, %v2500
      %v2520 = vmul.f32 %v2487, %v2500
      %v2521 = vmul.f32 %v2488, %v2500
      %v2522 = vmul.f32 %v2489, %v2500
      %v2523 = vmul.f32 %v2490, %v2500
      %v2524 = vmul.f32 %v2491, %v2500
      %v2525 = vmul.f32 %v2492, %v2500
      %v2526 = vmul.f32 %v2493, %v2500
      %v2527 = vmul.f32 %v2494, %v2500
      %v2528 = vmul.f32 %v2495, %v2500
      %v2529 = vmul.f32 %v2496, %v2500
      %v2530 = vmul.f32 %v2497, %v2500
      %v2531 = vmul.f32 %v2498, %v2500
      %v2532 = vmul.f32 %v2499, %v2500
      %v2533 = vadd.f32 %v2436, %v2501
      %v2534 = vadd.f32 %v2437, %v2502
      %v2535 = vadd.f32 %v2438, %v2503
      %v2536 = vadd.f32 %v2439, %v2504
      %v2537 = vadd.f32 %v2440, %v2505
      %v2538 = vadd.f32 %v2441, %v2506
      %v2539 = vadd.f32 %v2442, %v2507
      %v2540 = vadd.f32 %v2443, %v2508
      %v2541 = vadd.f32 %v2444, %v2509
      %v2542 = vadd.f32 %v2445, %v2510
      %v2543 = vadd.f32 %v2446, %v2511
      %v2544 = vadd.f32 %v2447, %v2512
      %v2545 = vadd.f32 %v2448, %v2513
      %v2546 = vadd.f32 %v2449, %v2514
      %v2547 = vadd.f32 %v2450, %v2515
      %v2548 = vadd.f32 %v2451, %v2516
      %v2549 = vadd.f32 %v2452, %v2517
      %v2550 = vadd.f32 %v2453, %v2518
      %v2551 = vadd.f32 %v2454, %v2519
      %v2552 = vadd.f32 %v2455, %v2520
      %v2553 = vadd.f32 %v2456, %v2521
      %v2554 = vadd.f32 %v2457, %v2522
      %v2555 = vadd.f32 %v2458, %v2523
      %v2556 = vadd.f32 %v2459, %v2524
      %v2557 = vadd.f32 %v2460, %v2525
      %v2558 = vadd.f32 %v2461, %v2526
      %v2559 = vadd.f32 %v2462, %v2527
      %v2560 = vadd.f32 %v2463, %v2528
      %v2561 = vadd.f32 %v2464, %v2529
      %v2562 = vadd.f32 %v2465, %v2530
      %v2563 = vadd.f32 %v2466, %v2531
      %v2564 = vadd.f32 %v2467, %v2532
      %v2565 = vld [vmem:[%s2273 + $0x3] sm:$0xff]
      %v2566 = vld [vmem:[%s2273 + $0xb] sm:$0xff]
      %v2567 = vld [vmem:[%s2273 + $0x1b] sm:$0xff]
      %v2568 = vld [vmem:[%s2273 + $0x23] sm:$0xff]
      %v2569 = vld [vmem:[%s2273 + $0x33] sm:$0xff]
      %v2570 = vld [vmem:[%s2273 + $0x3b] sm:$0xff]
      %v2571 = vld [vmem:[%s2273 + $0x4b] sm:$0xff]
      %v2572 = vld [vmem:[%s2273 + $0x53] sm:$0xff]
      %v2573 = vld [vmem:[%s2273 + $0x63] sm:$0xff]
      %v2574 = vld [vmem:[%s2273 + $0x6b] sm:$0xff]
      %v2575 = vld [vmem:[%s2273 + $0x7b] sm:$0xff]
      %v2576 = vld [vmem:[%s2273 + $0x83] sm:$0xff]
      %v2577 = vld [vmem:[%s2273 + $0x93] sm:$0xff]
      %v2578 = vld [vmem:[%s2273 + $0x9b] sm:$0xff]
      %v2579 = vld [vmem:[%s2273 + $0xab] sm:$0xff]
      %v2580 = vld [vmem:[%s2273 + $0xb3] sm:$0xff]
      %v2581 = vld [vmem:[%s2273 + $0xc3] sm:$0xff]
      %v2582 = vld [vmem:[%s2273 + $0xcb] sm:$0xff]
      %v2583 = vld [vmem:[%s2273 + $0xdb] sm:$0xff]
      %v2584 = vld [vmem:[%s2273 + $0xe3] sm:$0xff]
      %v2585 = vld [vmem:[%s2273 + $0xf3] sm:$0xff]
      %v2586 = vld [vmem:[%s2273 + $0xfb] sm:$0xff]
      %v2587 = vld [vmem:[%s2273 + $0x10b] sm:$0xff]
      %v2588 = vld [vmem:[%s2273 + $0x113] sm:$0xff]
      %v2589 = vld [vmem:[%s2273 + $0x123] sm:$0xff]
      %v2590 = vld [vmem:[%s2273 + $0x12b] sm:$0xff]
      %v2591 = vld [vmem:[%s2273 + $0x13b] sm:$0xff]
      %v2592 = vld [vmem:[%s2273 + $0x143] sm:$0xff]
      %v2593 = vld [vmem:[%s2273 + $0x153] sm:$0xff]
      %v2594 = vld [vmem:[%s2273 + $0x15b] sm:$0xff]
      %v2595 = vld [vmem:[%s2273 + $0x16b] sm:$0xff]
      %v2596 = vld [vmem:[%s2273 + $0x173] sm:$0xff]
      %v2597 = vperm.slane %v327, 7
      %v2598 = vmul.f32 %v2565, %v2597
      %v2599 = vmul.f32 %v2566, %v2597
      %v2600 = vmul.f32 %v2567, %v2597
      %v2601 = vmul.f32 %v2568, %v2597
      %v2602 = vmul.f32 %v2569, %v2597
      %v2603 = vmul.f32 %v2570, %v2597
      %v2604 = vmul.f32 %v2571, %v2597
      %v2605 = vmul.f32 %v2572, %v2597
      %v2606 = vmul.f32 %v2573, %v2597
      %v2607 = vmul.f32 %v2574, %v2597
      %v2608 = vmul.f32 %v2575, %v2597
      %v2609 = vmul.f32 %v2576, %v2597
      %v2610 = vmul.f32 %v2577, %v2597
      %v2611 = vmul.f32 %v2578, %v2597
      %v2612 = vmul.f32 %v2579, %v2597
      %v2613 = vmul.f32 %v2580, %v2597
      %v2614 = vmul.f32 %v2581, %v2597
      %v2615 = vmul.f32 %v2582, %v2597
      %v2616 = vmul.f32 %v2583, %v2597
      %v2617 = vmul.f32 %v2584, %v2597
      %v2618 = vmul.f32 %v2585, %v2597
      %v2619 = vmul.f32 %v2586, %v2597
      %v2620 = vmul.f32 %v2587, %v2597
      %v2621 = vmul.f32 %v2588, %v2597
      %v2622 = vmul.f32 %v2589, %v2597
      %v2623 = vmul.f32 %v2590, %v2597
      %v2624 = vmul.f32 %v2591, %v2597
      %v2625 = vmul.f32 %v2592, %v2597
      %v2626 = vmul.f32 %v2593, %v2597
      %v2627 = vmul.f32 %v2594, %v2597
      %v2628 = vmul.f32 %v2595, %v2597
      %v2629 = vmul.f32 %v2596, %v2597
      %v2630 = vadd.f32 %v2533, %v2598
      %v2631 = vadd.f32 %v2534, %v2599
      %v2632 = vadd.f32 %v2535, %v2600
      %v2633 = vadd.f32 %v2536, %v2601
      %v2634 = vadd.f32 %v2537, %v2602
      %v2635 = vadd.f32 %v2538, %v2603
      %v2636 = vadd.f32 %v2539, %v2604
      %v2637 = vadd.f32 %v2540, %v2605
      %v2638 = vadd.f32 %v2541, %v2606
      %v2639 = vadd.f32 %v2542, %v2607
      %v2640 = vadd.f32 %v2543, %v2608
      %v2641 = vadd.f32 %v2544, %v2609
      %v2642 = vadd.f32 %v2545, %v2610
      %v2643 = vadd.f32 %v2546, %v2611
      %v2644 = vadd.f32 %v2547, %v2612
      %v2645 = vadd.f32 %v2548, %v2613
      %v2646 = vadd.f32 %v2549, %v2614
      %v2647 = vadd.f32 %v2550, %v2615
      %v2648 = vadd.f32 %v2551, %v2616
      %v2649 = vadd.f32 %v2552, %v2617
      %v2650 = vadd.f32 %v2553, %v2618
      %v2651 = vadd.f32 %v2554, %v2619
      %v2652 = vadd.f32 %v2555, %v2620
      %v2653 = vadd.f32 %v2556, %v2621
      %v2654 = vadd.f32 %v2557, %v2622
      %v2655 = vadd.f32 %v2558, %v2623
      %v2656 = vadd.f32 %v2559, %v2624
      %v2657 = vadd.f32 %v2560, %v2625
      %v2658 = vadd.f32 %v2561, %v2626
      %v2659 = vadd.f32 %v2562, %v2627
      %v2660 = vadd.f32 %v2563, %v2628
      %v2661 = vadd.f32 %v2564, %v2629
      %v2662 = vld [vmem:[%s2273 + $0x4] sm:$0xff]
      %v2663 = vld [vmem:[%s2273 + $0xc] sm:$0xff]
      %v2664 = vld [vmem:[%s2273 + $0x1c] sm:$0xff]
      %v2665 = vld [vmem:[%s2273 + $0x24] sm:$0xff]
      %v2666 = vld [vmem:[%s2273 + $0x34] sm:$0xff]
      %v2667 = vld [vmem:[%s2273 + $0x3c] sm:$0xff]
      %v2668 = vld [vmem:[%s2273 + $0x4c] sm:$0xff]
      %v2669 = vld [vmem:[%s2273 + $0x54] sm:$0xff]
      %v2670 = vld [vmem:[%s2273 + $0x64] sm:$0xff]
      %v2671 = vld [vmem:[%s2273 + $0x6c] sm:$0xff]
      %v2672 = vld [vmem:[%s2273 + $0x7c] sm:$0xff]
      %v2673 = vld [vmem:[%s2273 + $0x84] sm:$0xff]
      %v2674 = vld [vmem:[%s2273 + $0x94] sm:$0xff]
      %v2675 = vld [vmem:[%s2273 + $0x9c] sm:$0xff]
      %v2676 = vld [vmem:[%s2273 + $0xac] sm:$0xff]
      %v2677 = vld [vmem:[%s2273 + $0xb4] sm:$0xff]
      %v2678 = vld [vmem:[%s2273 + $0xc4] sm:$0xff]
      %v2679 = vld [vmem:[%s2273 + $0xcc] sm:$0xff]
      %v2680 = vld [vmem:[%s2273 + $0xdc] sm:$0xff]
      %v2681 = vld [vmem:[%s2273 + $0xe4] sm:$0xff]
      %v2682 = vld [vmem:[%s2273 + $0xf4] sm:$0xff]
      %v2683 = vld [vmem:[%s2273 + $0xfc] sm:$0xff]
      %v2684 = vld [vmem:[%s2273 + $0x10c] sm:$0xff]
      %v2685 = vld [vmem:[%s2273 + $0x114] sm:$0xff]
      %v2686 = vld [vmem:[%s2273 + $0x124] sm:$0xff]
      %v2687 = vld [vmem:[%s2273 + $0x12c] sm:$0xff]
      %v2688 = vld [vmem:[%s2273 + $0x13c] sm:$0xff]
      %v2689 = vld [vmem:[%s2273 + $0x144] sm:$0xff]
      %v2690 = vld [vmem:[%s2273 + $0x154] sm:$0xff]
      %v2691 = vld [vmem:[%s2273 + $0x15c] sm:$0xff]
      %v2692 = vld [vmem:[%s2273 + $0x16c] sm:$0xff]
      %v2693 = vld [vmem:[%s2273 + $0x174] sm:$0xff]
      %v2694 = vperm.slane %v328, 0
      %v2695 = vmul.f32 %v2662, %v2694
      %v2696 = vmul.f32 %v2663, %v2694
      %v2697 = vmul.f32 %v2664, %v2694
      %v2698 = vmul.f32 %v2665, %v2694
      %v2699 = vmul.f32 %v2666, %v2694
      %v2700 = vmul.f32 %v2667, %v2694
      %v2701 = vmul.f32 %v2668, %v2694
      %v2702 = vmul.f32 %v2669, %v2694
      %v2703 = vmul.f32 %v2670, %v2694
      %v2704 = vmul.f32 %v2671, %v2694
      %v2705 = vmul.f32 %v2672, %v2694
      %v2706 = vmul.f32 %v2673, %v2694
      %v2707 = vmul.f32 %v2674, %v2694
      %v2708 = vmul.f32 %v2675, %v2694
      %v2709 = vmul.f32 %v2676, %v2694
      %v2710 = vmul.f32 %v2677, %v2694
      %v2711 = vmul.f32 %v2678, %v2694
      %v2712 = vmul.f32 %v2679, %v2694
      %v2713 = vmul.f32 %v2680, %v2694
      %v2714 = vmul.f32 %v2681, %v2694
      %v2715 = vmul.f32 %v2682, %v2694
      %v2716 = vmul.f32 %v2683, %v2694
      %v2717 = vmul.f32 %v2684, %v2694
      %v2718 = vmul.f32 %v2685, %v2694
      %v2719 = vmul.f32 %v2686, %v2694
      %v2720 = vmul.f32 %v2687, %v2694
      %v2721 = vmul.f32 %v2688, %v2694
      %v2722 = vmul.f32 %v2689, %v2694
      %v2723 = vmul.f32 %v2690, %v2694
      %v2724 = vmul.f32 %v2691, %v2694
      %v2725 = vmul.f32 %v2692, %v2694
      %v2726 = vmul.f32 %v2693, %v2694
      %v2727 = vadd.f32 %v2630, %v2695
      %v2728 = vadd.f32 %v2631, %v2696
      %v2729 = vadd.f32 %v2632, %v2697
      %v2730 = vadd.f32 %v2633, %v2698
      %v2731 = vadd.f32 %v2634, %v2699
      %v2732 = vadd.f32 %v2635, %v2700
      %v2733 = vadd.f32 %v2636, %v2701
      %v2734 = vadd.f32 %v2637, %v2702
      %v2735 = vadd.f32 %v2638, %v2703
      %v2736 = vadd.f32 %v2639, %v2704
      %v2737 = vadd.f32 %v2640, %v2705
      %v2738 = vadd.f32 %v2641, %v2706
      %v2739 = vadd.f32 %v2642, %v2707
      %v2740 = vadd.f32 %v2643, %v2708
      %v2741 = vadd.f32 %v2644, %v2709
      %v2742 = vadd.f32 %v2645, %v2710
      %v2743 = vadd.f32 %v2646, %v2711
      %v2744 = vadd.f32 %v2647, %v2712
      %v2745 = vadd.f32 %v2648, %v2713
      %v2746 = vadd.f32 %v2649, %v2714
      %v2747 = vadd.f32 %v2650, %v2715
      %v2748 = vadd.f32 %v2651, %v2716
      %v2749 = vadd.f32 %v2652, %v2717
      %v2750 = vadd.f32 %v2653, %v2718
      %v2751 = vadd.f32 %v2654, %v2719
      %v2752 = vadd.f32 %v2655, %v2720
      %v2753 = vadd.f32 %v2656, %v2721
      %v2754 = vadd.f32 %v2657, %v2722
      %v2755 = vadd.f32 %v2658, %v2723
      %v2756 = vadd.f32 %v2659, %v2724
      %v2757 = vadd.f32 %v2660, %v2725
      %v2758 = vadd.f32 %v2661, %v2726
      %v2760 = vperm.slane %v330, 0
      %v2762 = vadd.f32 %v2727, %v2760
      %v2763 = vadd.f32 %v2728, %v2760
      %v2764 = vadd.f32 %v2729, %v2760
      %v2765 = vadd.f32 %v2730, %v2760
      %v2766 = vadd.f32 %v2731, %v2760
      %v2767 = vadd.f32 %v2732, %v2760
      %v2768 = vadd.f32 %v2733, %v2760
      %v2769 = vadd.f32 %v2734, %v2760
      %v2770 = vadd.f32 %v2735, %v2760
      %v2771 = vadd.f32 %v2736, %v2760
      %v2772 = vadd.f32 %v2737, %v2760
      %v2773 = vadd.f32 %v2738, %v2760
      %v2774 = vadd.f32 %v2739, %v2760
      %v2775 = vadd.f32 %v2740, %v2760
      %v2776 = vadd.f32 %v2741, %v2760
      %v2777 = vadd.f32 %v2742, %v2760
      %v2778 = vadd.f32 %v2743, %v2760
      %v2779 = vadd.f32 %v2744, %v2760
      %v2780 = vadd.f32 %v2745, %v2760
      %v2781 = vadd.f32 %v2746, %v2760
      %v2782 = vadd.f32 %v2747, %v2760
      %v2783 = vadd.f32 %v2748, %v2760
      %v2784 = vadd.f32 %v2749, %v2760
      %v2785 = vadd.f32 %v2750, %v2760
      %v2786 = vadd.f32 %v2751, %v2760
      %v2787 = vadd.f32 %v2752, %v2760
      %v2788 = vadd.f32 %v2753, %v2760
      %v2789 = vadd.f32 %v2754, %v2760
      %v2790 = vadd.f32 %v2755, %v2760
      %v2791 = vadd.f32 %v2756, %v2760
      %v2792 = vadd.f32 %v2757, %v2760
      %v2793 = vadd.f32 %v2758, %v2760
      %v2795 = vperm.slane %v329, 0
      %v2797 = vmul.f32 %v2795, %v2762
      %v2798 = vmul.f32 %v2795, %v2763
      %v2799 = vmul.f32 %v2795, %v2764
      %v2800 = vmul.f32 %v2795, %v2765
      %v2801 = vmul.f32 %v2795, %v2766
      %v2802 = vmul.f32 %v2795, %v2767
      %v2803 = vmul.f32 %v2795, %v2768
      %v2804 = vmul.f32 %v2795, %v2769
      %v2805 = vmul.f32 %v2795, %v2770
      %v2806 = vmul.f32 %v2795, %v2771
      %v2807 = vmul.f32 %v2795, %v2772
      %v2808 = vmul.f32 %v2795, %v2773
      %v2809 = vmul.f32 %v2795, %v2774
      %v2810 = vmul.f32 %v2795, %v2775
      %v2811 = vmul.f32 %v2795, %v2776
      %v2812 = vmul.f32 %v2795, %v2777
      %v2813 = vmul.f32 %v2795, %v2778
      %v2814 = vmul.f32 %v2795, %v2779
      %v2815 = vmul.f32 %v2795, %v2780
      %v2816 = vmul.f32 %v2795, %v2781
      %v2817 = vmul.f32 %v2795, %v2782
      %v2818 = vmul.f32 %v2795, %v2783
      %v2819 = vmul.f32 %v2795, %v2784
      %v2820 = vmul.f32 %v2795, %v2785
      %v2821 = vmul.f32 %v2795, %v2786
      %v2822 = vmul.f32 %v2795, %v2787
      %v2823 = vmul.f32 %v2795, %v2788
      %v2824 = vmul.f32 %v2795, %v2789
      %v2825 = vmul.f32 %v2795, %v2790
      %v2826 = vmul.f32 %v2795, %v2791
      %v2827 = vmul.f32 %v2795, %v2792
      %v2828 = vmul.f32 %v2795, %v2793
      %2829 = vst.msk [vmem:[%s197] sm:$0xff] %vm198, %v2797
      %2830 = vst.msk [vmem:[%s197 + $0x8] sm:$0xff] %vm198, %v2798
      %2831 = vst.msk [vmem:[%s197 + $0x10] sm:$0xff] %vm198, %v2799
      %2832 = vst.msk [vmem:[%s197 + $0x18] sm:$0xff] %vm198, %v2800
      %2833 = vst.msk [vmem:[%s197 + $0x20] sm:$0xff] %vm198, %v2801
      %2834 = vst.msk [vmem:[%s197 + $0x28] sm:$0xff] %vm198, %v2802
      %2835 = vst.msk [vmem:[%s197 + $0x30] sm:$0xff] %vm198, %v2803
      %2836 = vst.msk [vmem:[%s197 + $0x38] sm:$0xff] %vm198, %v2804
      %2837 = vst.msk [vmem:[%s197 + $0x40] sm:$0xff] %vm198, %v2805
      %2838 = vst.msk [vmem:[%s197 + $0x48] sm:$0xff] %vm198, %v2806
      %2839 = vst.msk [vmem:[%s197 + $0x50] sm:$0xff] %vm198, %v2807
      %2840 = vst.msk [vmem:[%s197 + $0x58] sm:$0xff] %vm198, %v2808
      %2841 = vst.msk [vmem:[%s197 + $0x60] sm:$0xff] %vm198, %v2809
      %2842 = vst.msk [vmem:[%s197 + $0x68] sm:$0xff] %vm198, %v2810
      %2843 = vst.msk [vmem:[%s197 + $0x70] sm:$0xff] %vm198, %v2811
      %2844 = vst.msk [vmem:[%s197 + $0x78] sm:$0xff] %vm198, %v2812
      %2845 = vst.msk [vmem:[%s197 + $0x80] sm:$0xff] %vm198, %v2813
      %2846 = vst.msk [vmem:[%s197 + $0x88] sm:$0xff] %vm198, %v2814
      %2847 = vst.msk [vmem:[%s197 + $0x90] sm:$0xff] %vm198, %v2815
      %2848 = vst.msk [vmem:[%s197 + $0x98] sm:$0xff] %vm198, %v2816
      %2849 = vst.msk [vmem:[%s197 + $0xa0] sm:$0xff] %vm198, %v2817
      %2850 = vst.msk [vmem:[%s197 + $0xa8] sm:$0xff] %vm198, %v2818
      %2851 = vst.msk [vmem:[%s197 + $0xb0] sm:$0xff] %vm198, %v2819
      %2852 = vst.msk [vmem:[%s197 + $0xb8] sm:$0xff] %vm198, %v2820
      %2853 = vst.msk [vmem:[%s197 + $0xc0] sm:$0xff] %vm198, %v2821
      %2854 = vst.msk [vmem:[%s197 + $0xc8] sm:$0xff] %vm198, %v2822
      %2855 = vst.msk [vmem:[%s197 + $0xd0] sm:$0xff] %vm198, %v2823
      %2856 = vst.msk [vmem:[%s197 + $0xd8] sm:$0xff] %vm198, %v2824
      %2857 = vst.msk [vmem:[%s197 + $0xe0] sm:$0xff] %vm198, %v2825
      %2858 = vst.msk [vmem:[%s197 + $0xe8] sm:$0xff] %vm198, %v2826
      %2859 = vst.msk [vmem:[%s197 + $0xf0] sm:$0xff] %vm198, %v2827
      %2860 = vst.msk [vmem:[%s197 + $0xf8] sm:$0xff] %vm198, %v2828
      %p2861 = scmp.lt.s32.totalorder %s15, 1
      %s2862 = scalar_select %p2861, %s15, 1
      %s2863 = smul.addr %s2862, 32
      %s2864 = smul.addr %s2863, 8
      %s2865 = scalar_lea.vmem %s4, %s2864
      // Predicated region
      $region37: #{tpu_custom_call.1} parent=35 // pred_check
        %p2866 = pneg %p122
      $region38: #{tpu_custom_call.1} parent=35 // pred_check_branch
        %2868 = sbr.rel (%p2866) target = $region40
      $region39: #{tpu_custom_call.1} parent=35 // pred_region
        _
      $region40: #{tpu_custom_call.1} parent=35 // pred_fallthru
        _
    $region36: #{tpu_custom_call.1} parent=5 // pred_fallthru
      _
    %p2869 = scmp.le.s32.totalorder 2, %s10
    // Predicated region
    $region41: #{tpu_custom_call.1} parent=5 // pred_check
      %p2870 = pneg %p2869
    $region42: #{tpu_custom_call.1} parent=5 // pred_check_branch
      %2872 = sbr.rel (%p2870) target = $region44
    $region43: #{tpu_custom_call.1} parent=5 // pred_region
      %s2873 = ssub.s32 %s10, 2
      // Predicated region
      $region45: #{tpu_custom_call.1} parent=43 // pred_check
        %p2874 = pneg %p128
      $region46: #{tpu_custom_call.1} parent=43 // pred_check_branch
        %2876 = sbr.rel (%p2874) target = $region48
      $region47: #{tpu_custom_call.1} parent=43 // pred_region
        %p2877 = scmp.lt.s32.totalorder %s16, 1
        %s2878 = scalar_select %p2877, %s16, 1
        %s2879 = smul.addr %s2878, 32
        %s2880 = smul.addr %s2879, 8
        %s2881 = scalar_lea.vmem %s4, %s2880
      $region48: #{tpu_custom_call.1} parent=43 // pred_fallthru
        _
    $region44: #{tpu_custom_call.1} parent=5 // pred_fallthru
      _
  $region6: #{tpu_custom_call.1} parent=0 // loop_footer
    %s14 = sadd.s32 1, %s10
  $region7: #{tpu_custom_call.1} parent=0 // loop_footer_branch
    %9 = sbr.rel target = $region3
  $region8: #{tpu_custom_call.1} parent=0 // loop_exit
    _

</llo_original>
